<compile_context>
chip_gen: v7x
topology: tpu7x:2x2x1
jax: 0.10.0
libtpu: 0.0.40
codegen_flags: <defaults>
</compile_context>

<pallas_src>
import jax
import jax.numpy as jnp
from jax.experimental import pallas as pl
from jax.experimental.pallas import tpu as pltpu

IMG = 784        # flattened MNIST image width
IMG_PAD = 896    # 7 * 128 lanes: lane-dense K for enc1 and lane-dense recon store


def _rup(x, m):
    return ((x + m - 1) // m) * m


def init_params(key, features, neurons):
    """nn.Linear-style U(-1/sqrt(fan_in), 1/sqrt(fan_in)); weights stored (in, out)."""
    layer_dims = {
        "e1": (IMG, neurons), "e2": (neurons, neurons), "e3": (neurons, features),
        "mu": (features, features), "lv": (features, features),
        "d1": (features, neurons), "d2": (neurons, neurons), "d3": (neurons, IMG),
    }
    params = {}
    for name, (fan_in, fan_out) in sorted(layer_dims.items()):
        key, kw, kb = jax.random.split(key, 3)
        bound = 1.0 / jnp.sqrt(jnp.float32(fan_in))
        params["w" + name] = jax.random.uniform(
            kw, (fan_in, fan_out), jnp.float32, minval=-bound, maxval=bound)
        params["b" + name] = jax.random.uniform(
            kb, (1, fan_out), jnp.float32, minval=-bound, maxval=bound)
    return params


def pack_params(params, eps, features, neurons):
    """One-time host-side packing of weights / biases / eps into 3 slabs."""
    N, F = neurons, features

    # Fused mu|logvar head: one (F, 2F) weight, one (1, 2F) bias.
    whead = jnp.concatenate([params["wmu"], params["wlv"]], axis=1)
    bhead = jnp.concatenate([params["bmu"], params["blv"]], axis=1)

    # ---- weight slab: every weight except dec3, stacked along rows ----
    # we1 is padded to 896 rows (zeros) so the enc1 matmul K is 7 full lane tiles
    # (x is zero-padded to 896 columns to match).
    wsegs = [("we1", params["we1"], IMG_PAD),
             ("we2", params["we2"], None),
             ("we3", params["we3"], None),
             ("whead", whead, None),
             ("wd1", params["wd1"], None),
             ("wd2", params["wd2"], None)]
    wcols = max(N, 2 * F)
    w_off, off = {}, 0
    for name, w, rows_pad in wsegs:
        w_off[name] = off
        rows = rows_pad if rows_pad is not None else w.shape[0]
        off += _rup(rows, 8)                 # keep every segment sublane-aligned
    wslab = jnp.zeros((off, wcols), jnp.float32)
    for name, w, _ in wsegs:
        r, c = w.shape
        wslab = wslab.at[w_off[name]:w_off[name] + r, 0:c].set(w)

    # ---- dec3, lane-dense: (N, 896) weight, (1, 896) bias (zero padded) ----
    wd3 = jnp.zeros((N, IMG_PAD), jnp.float32).at[:, :IMG].set(params["wd3"])
    bd3 = jnp.zeros((1, IMG_PAD), jnp.float32).at[:, :IMG].set(params["bd3"])

    # ---- bias slab (+ eps): one row, each segment 128-lane aligned ----
    bsegs = [("be1", params["be1"]), ("be2", params["be2"]), ("be3", params["be3"]),
             ("bhead", bhead), ("eps", eps), ("bd1", params["bd1"]),
             ("bd2", params["bd2"]), ("bd3", bd3)]
    b_off, off = {}, 0
    for name, b in bsegs:
        b_off[name] = off
        off += _rup(b.shape[1], 128)
    bslab = jnp.zeros((1, off), jnp.float32)
    for name, b in bsegs:
        bslab = bslab.at[:, b_off[name]:b_off[name] + b.shape[1]].set(b)

    return wslab, wd3, bslab, w_off, b_off


def _make_kernel(N, F, w_off, b_off, col_head):
    """Kernel closure over static layout constants (no runtime cost)."""

    def kernel(x_ref, wslab_ref, wd3_ref, b_ref, out_ref):
        def bias(name, width):
            o = b_off[name]
            return b_ref[:, o:o + width]                        # (1, width) row

        def wseg(name, rows, cols):
            o = w_off[name]
            return wslab_ref[o:o + rows, 0:cols]                # static slice load

        def lin(h, w, bname, width):
            return jnp.dot(h, w, preferred_element_type=jnp.float32) + bias(bname, width)

        def relu(v):
            return jnp.maximum(v, 0.0)

        x = x_ref[...]                                           # (TB, 896) lane-dense

        # ---- Encoder2 ----
        h = relu(lin(x, wseg("we1", IMG_PAD, N), "be1", N))
        h = relu(lin(h, wseg("we2", N, N), "be2", N))
        h = lin(h, wseg("we3", N, F), "be3", F)                  # enc3: no relu
        head = lin(h, wseg("whead", F, 2 * F), "bhead", 2 * F)   # fused mu|logvar
        mu = head[:, 0:F]
        logvar = head[:, F:2 * F]

        # reparameterize: torch.randn(features) * exp(0.5*logvar) + mu
        # (a single (1, F) noise row shared across the batch, exactly as the spec)
        eps = bias("eps", F)
        encoding = eps * jnp.exp(0.5 * logvar) + mu

        # ---- Decoder2 (lane-dense 896-wide dec3) ----
        d = relu(lin(encoding, wseg("wd1", F, N), "bd1", N))
        d = relu(lin(d, wseg("wd2", N, N), "bd2", N))
        logits = jnp.dot(d, wd3_ref[...], preferred_element_type=jnp.float32) + bias("bd3", IMG_PAD)
        recon = 0.5 * (jnp.tanh(0.5 * logits) + 1.0)             # sigmoid, single EUP op

        # ---- packed output: recon (unmasked, 7 full lane tiles) | mu|logvar head ----
        out_ref[:, 0:IMG_PAD] = recon
        out_ref[:, col_head:col_head + 2 * F] = head
        # remaining pad lanes are never read back (wrapper slices them away)

    return kernel


def vae2_forward(x, wslab, wd3, bslab, w_off, b_off, features, neurons, tb=128):
    """Batch-gridded fused forward.  tb=128 suits v5e; use tb=256 on v6e/v7x."""
    B = x.shape[0]
    N, F = neurons, features
    col_head = IMG_PAD
    outw = IMG_PAD + _rup(2 * F, 128)                 # 1024 packed lanes

    # Pad batch to a tile multiple and lanes to 896 (zeros) host-side.
    B_pad = _rup(B, tb)
    xp = jnp.zeros((B_pad, IMG_PAD), jnp.float32).at[:B, :IMG].set(x)

    kernel = _make_kernel(N, F, w_off, b_off, col_head)

    # Advisory cost per grid step (proportional to the batch tile).
    flops = 2 * tb * (IMG_PAD * N + N * N + N * F + F * (2 * F) + F * N + N * N + N * IMG_PAD)
    transcendentals = tb * (F + IMG_PAD)              # exp for reparam + tanh for sigmoid
    bytes_accessed = 4 * (tb * IMG_PAD + wslab.size + wd3.size + bslab.size + tb * outw)

    packed = pl.pallas_call(
        kernel,
        out_shape=jax.ShapeDtypeStruct((B_pad, outw), jnp.float32),
        grid=(B_pad // tb,),
        in_specs=[
            pl.BlockSpec((tb, IMG_PAD), lambda i: (i, 0)),     # x: batch-tiled
            pl.BlockSpec(wslab.shape, lambda i: (0, 0)),       # slabs: VMEM-resident
            pl.BlockSpec(wd3.shape, lambda i: (0, 0)),
            pl.BlockSpec(bslab.shape, lambda i: (0, 0)),
        ],
        out_specs=pl.BlockSpec((tb, outw), lambda i: (i, 0)),
        compiler_params=pltpu.CompilerParams(
            dimension_semantics=("parallel",),                 # megacore on v7x
            vmem_limit_bytes=16 * 1024 * 1024),
        cost_estimate=pl.CostEstimate(
            flops=flops, transcendentals=transcendentals, bytes_accessed=bytes_accessed),
    )(xp, wslab, wd3, bslab)

    recon = packed[:B, 0:IMG]
    mu = packed[:B, col_head:col_head + F]
    logvar = packed[:B, col_head + F:col_head + 2 * F]
    return recon, mu, logvar


def reference_forward(x, params, eps):
    """Pure-JAX reference of the exact same Vae2 math (sanity check)."""
    relu = lambda v: jnp.maximum(v, 0.0)
    lin = lambda v, n: v @ params["w" + n] + params["b" + n]
    h = relu(lin(x, "e1"))
    h = relu(lin(h, "e2"))
    h = lin(h, "e3")
    mu = lin(h, "mu")
    logvar = lin(h, "lv")
    enc = eps * jnp.exp(0.5 * logvar) + mu
    d = relu(lin(enc, "d1"))
    d = relu(lin(d, "d2"))
    recon = jax.nn.sigmoid(lin(d, "d3"))
    return recon, mu, logvar


if __name__ == "__main__":
    FEATURES = 8
    NEURONS = 32
    BATCH = 256          # multiple batch tiles -> real grid (2 steps at TB=128)
    TB = 128             # v5e MXU M fill; use 256 on v6e/v7x

    root = jax.random.PRNGKey(0)
    k_params, k_x, k_eps = jax.random.split(root, 3)

    params = init_params(k_params, FEATURES, NEURONS)
    x = jax.random.uniform(k_x, (BATCH, IMG), jnp.float32)         # flattened image batch
    eps = jax.random.normal(k_eps, (1, FEATURES), jnp.float32)     # torch.randn(features)

    wslab, wd3, bslab, w_off, b_off = pack_params(params, eps, FEATURES, NEURONS)

    recon, mu, logvar = vae2_forward(
        x, wslab, wd3, bslab, w_off, b_off, FEATURES, NEURONS, tb=TB)
    jax.block_until_ready((recon, mu, logvar))

    r_ref, mu_ref, lv_ref = reference_forward(x, params, eps)
    assert recon.shape == (BATCH, IMG) and mu.shape == (BATCH, FEATURES)
    assert logvar.shape == (BATCH, FEATURES)
    assert jnp.allclose(recon, r_ref, atol=1e-4), float(jnp.abs(recon - r_ref).max())
    assert jnp.allclose(mu, mu_ref, atol=1e-4), float(jnp.abs(mu - mu_ref).max())
    assert jnp.allclose(logvar, lv_ref, atol=1e-4), float(jnp.abs(logvar - lv_ref).max())

    print("KERNEL_OK")
</pallas_src>

<mosaic_0001>
module attributes {stable_mosaic.version = 11 : i64} {
  func.func @kernel(%arg0: i32, %arg1: memref<128x896xf32, #tpu.memory_space<vmem>>, %arg2: memref<1008x32xf32, #tpu.memory_space<vmem>>, %arg3: memref<32x896xf32, #tpu.memory_space<vmem>>, %arg4: memref<1x1792xf32, #tpu.memory_space<vmem>>, %arg5: memref<128x1024xf32, #tpu.memory_space<vmem>>) attributes {dimension_semantics = [#tpu.dimension_semantics<parallel>], iteration_bounds = array<i64: 2>, scalar_prefetch = 0 : i64, scratch_operands = 0 : i64, tpu.core_type = #tpu.core_type<tc>, window_params = [{transform_indices = @transform_0, window_bounds = array<i64: 128, 896>}, {pipeline_mode = #tpu.pipeline_mode<synchronous>, transform_indices = @transform_1, window_bounds = array<i64: 1008, 32>}, {pipeline_mode = #tpu.pipeline_mode<synchronous>, transform_indices = @transform_2, window_bounds = array<i64: 32, 896>}, {pipeline_mode = #tpu.pipeline_mode<synchronous>, transform_indices = @transform_3, window_bounds = array<i64: 1, 1792>}, {transform_indices = @transform_4, window_bounds = array<i64: 128, 1024>}]} {
    %c0 = arith.constant 0 : index
    %c0_0 = arith.constant 0 : index
    %0 = vector.load %arg1[%c0, %c0_0] : memref<128x896xf32, #tpu.memory_space<vmem>>, vector<128x896xf32>
    %c0_1 = arith.constant 0 : index
    %c0_2 = arith.constant 0 : index
    %1 = vector.load %arg2[%c0_1, %c0_2] : memref<1008x32xf32, #tpu.memory_space<vmem>>, vector<896x32xf32>
    %cst = arith.constant dense<0.000000e+00> : vector<128x32xf32>
    %2 = tpu.matmul %0, %1, %cst {dimension_numbers = #tpu.dot_dimension_numbers<[1], [0], [0], [1], [0, 0, 1, 1], [], []>} : vector<128x896xf32>, vector<896x32xf32>, vector<128x32xf32> -> vector<128x32xf32>
    %c0_3 = arith.constant 0 : index
    %c0_4 = arith.constant 0 : index
    %3 = vector.load %arg4[%c0_3, %c0_4] : memref<1x1792xf32, #tpu.memory_space<vmem>>, vector<1x32xf32>
    %4 = vector.broadcast %3 : vector<1x32xf32> to vector<128x32xf32>
    %5 = arith.addf %2, %4 : vector<128x32xf32>
    %cst_5 = arith.constant 0.000000e+00 : f32
    %6 = vector.broadcast %cst_5 : f32 to vector<128x32xf32>
    %7 = arith.maximumf %5, %6 : vector<128x32xf32>
    %c896 = arith.constant 896 : index
    %c0_6 = arith.constant 0 : index
    %8 = vector.load %arg2[%c896, %c0_6] : memref<1008x32xf32, #tpu.memory_space<vmem>>, vector<32x32xf32>
    %cst_7 = arith.constant dense<0.000000e+00> : vector<128x32xf32>
    %9 = tpu.matmul %7, %8, %cst_7 {dimension_numbers = #tpu.dot_dimension_numbers<[1], [0], [0], [1], [0, 0, 1, 1], [], []>} : vector<128x32xf32>, vector<32x32xf32>, vector<128x32xf32> -> vector<128x32xf32>
    %c0_8 = arith.constant 0 : index
    %c128 = arith.constant 128 : index
    %10 = vector.load %arg4[%c0_8, %c128] : memref<1x1792xf32, #tpu.memory_space<vmem>>, vector<1x32xf32>
    %11 = vector.broadcast %10 : vector<1x32xf32> to vector<128x32xf32>
    %12 = arith.addf %9, %11 : vector<128x32xf32>
    %cst_9 = arith.constant 0.000000e+00 : f32
    %13 = vector.broadcast %cst_9 : f32 to vector<128x32xf32>
    %14 = arith.maximumf %12, %13 : vector<128x32xf32>
    %c928 = arith.constant 928 : index
    %c0_10 = arith.constant 0 : index
    %15 = vector.load %arg2[%c928, %c0_10] : memref<1008x32xf32, #tpu.memory_space<vmem>>, vector<32x8xf32>
    %cst_11 = arith.constant dense<0.000000e+00> : vector<128x8xf32>
    %16 = tpu.matmul %14, %15, %cst_11 {dimension_numbers = #tpu.dot_dimension_numbers<[1], [0], [0], [1], [0, 0, 1, 1], [], []>} : vector<128x32xf32>, vector<32x8xf32>, vector<128x8xf32> -> vector<128x8xf32>
    %c0_12 = arith.constant 0 : index
    %c256 = arith.constant 256 : index
    %17 = vector.load %arg4[%c0_12, %c256] : memref<1x1792xf32, #tpu.memory_space<vmem>>, vector<1x8xf32>
    %18 = vector.broadcast %17 : vector<1x8xf32> to vector<128x8xf32>
    %19 = arith.addf %16, %18 : vector<128x8xf32>
    %c960 = arith.constant 960 : index
    %c0_13 = arith.constant 0 : index
    %20 = vector.load %arg2[%c960, %c0_13] : memref<1008x32xf32, #tpu.memory_space<vmem>>, vector<8x16xf32>
    %cst_14 = arith.constant dense<0.000000e+00> : vector<128x16xf32>
    %21 = tpu.matmul %19, %20, %cst_14 {dimension_numbers = #tpu.dot_dimension_numbers<[1], [0], [0], [1], [0, 0, 1, 1], [], []>} : vector<128x8xf32>, vector<8x16xf32>, vector<128x16xf32> -> vector<128x16xf32>
    %c0_15 = arith.constant 0 : index
    %c384 = arith.constant 384 : index
    %22 = vector.load %arg4[%c0_15, %c384] : memref<1x1792xf32, #tpu.memory_space<vmem>>, vector<1x16xf32>
    %23 = vector.broadcast %22 : vector<1x16xf32> to vector<128x16xf32>
    %24 = arith.addf %21, %23 : vector<128x16xf32>
    %25 = vector.extract_strided_slice %24 {offsets = [0, 0], sizes = [128, 8], strides = [1, 1]} : vector<128x16xf32> to vector<128x8xf32>
    %26 = vector.extract_strided_slice %24 {offsets = [0, 8], sizes = [128, 8], strides = [1, 1]} : vector<128x16xf32> to vector<128x8xf32>
    %c0_16 = arith.constant 0 : index
    %c512 = arith.constant 512 : index
    %27 = vector.load %arg4[%c0_16, %c512] : memref<1x1792xf32, #tpu.memory_space<vmem>>, vector<1x8xf32>
    %cst_17 = arith.constant 5.000000e-01 : f32
    %28 = vector.broadcast %cst_17 : f32 to vector<128x8xf32>
    %29 = arith.mulf %28, %26 : vector<128x8xf32>
    %30 = math.exp %29 : vector<128x8xf32>
    %31 = vector.broadcast %27 : vector<1x8xf32> to vector<128x8xf32>
    %32 = arith.mulf %31, %30 : vector<128x8xf32>
    %33 = arith.addf %32, %25 : vector<128x8xf32>
    %c968 = arith.constant 968 : index
    %c0_18 = arith.constant 0 : index
    %34 = vector.load %arg2[%c968, %c0_18] : memref<1008x32xf32, #tpu.memory_space<vmem>>, vector<8x32xf32>
    %cst_19 = arith.constant dense<0.000000e+00> : vector<128x32xf32>
    %35 = tpu.matmul %33, %34, %cst_19 {dimension_numbers = #tpu.dot_dimension_numbers<[1], [0], [0], [1], [0, 0, 1, 1], [], []>} : vector<128x8xf32>, vector<8x32xf32>, vector<128x32xf32> -> vector<128x32xf32>
    %c0_20 = arith.constant 0 : index
    %c640 = arith.constant 640 : index
    %36 = vector.load %arg4[%c0_20, %c640] : memref<1x1792xf32, #tpu.memory_space<vmem>>, vector<1x32xf32>
    %37 = vector.broadcast %36 : vector<1x32xf32> to vector<128x32xf32>
    %38 = arith.addf %35, %37 : vector<128x32xf32>
    %cst_21 = arith.constant 0.000000e+00 : f32
    %39 = vector.broadcast %cst_21 : f32 to vector<128x32xf32>
    %40 = arith.maximumf %38, %39 : vector<128x32xf32>
    %c976 = arith.constant 976 : index
    %c0_22 = arith.constant 0 : index
    %41 = vector.load %arg2[%c976, %c0_22] : memref<1008x32xf32, #tpu.memory_space<vmem>>, vector<32x32xf32>
    %cst_23 = arith.constant dense<0.000000e+00> : vector<128x32xf32>
    %42 = tpu.matmul %40, %41, %cst_23 {dimension_numbers = #tpu.dot_dimension_numbers<[1], [0], [0], [1], [0, 0, 1, 1], [], []>} : vector<128x32xf32>, vector<32x32xf32>, vector<128x32xf32> -> vector<128x32xf32>
    %c0_24 = arith.constant 0 : index
    %c768 = arith.constant 768 : index
    %43 = vector.load %arg4[%c0_24, %c768] : memref<1x1792xf32, #tpu.memory_space<vmem>>, vector<1x32xf32>
    %44 = vector.broadcast %43 : vector<1x32xf32> to vector<128x32xf32>
    %45 = arith.addf %42, %44 : vector<128x32xf32>
    %cst_25 = arith.constant 0.000000e+00 : f32
    %46 = vector.broadcast %cst_25 : f32 to vector<128x32xf32>
    %47 = arith.maximumf %45, %46 : vector<128x32xf32>
    %c0_26 = arith.constant 0 : index
    %c0_27 = arith.constant 0 : index
    %48 = vector.load %arg3[%c0_26, %c0_27] : memref<32x896xf32, #tpu.memory_space<vmem>>, vector<32x896xf32>
    %cst_28 = arith.constant dense<0.000000e+00> : vector<128x896xf32>
    %49 = tpu.matmul %47, %48, %cst_28 {dimension_numbers = #tpu.dot_dimension_numbers<[1], [0], [0], [1], [0, 0, 1, 1], [], []>} : vector<128x32xf32>, vector<32x896xf32>, vector<128x896xf32> -> vector<128x896xf32>
    %c0_29 = arith.constant 0 : index
    %c896_30 = arith.constant 896 : index
    %50 = vector.load %arg4[%c0_29, %c896_30] : memref<1x1792xf32, #tpu.memory_space<vmem>>, vector<1x896xf32>
    %51 = vector.broadcast %50 : vector<1x896xf32> to vector<128x896xf32>
    %52 = arith.addf %49, %51 : vector<128x896xf32>
    %cst_31 = arith.constant 5.000000e-01 : f32
    %53 = vector.broadcast %cst_31 : f32 to vector<128x896xf32>
    %54 = arith.mulf %53, %52 : vector<128x896xf32>
    %55 = math.tanh %54 : vector<128x896xf32>
    %cst_32 = arith.constant 1.000000e+00 : f32
    %56 = vector.broadcast %cst_32 : f32 to vector<128x896xf32>
    %57 = arith.addf %55, %56 : vector<128x896xf32>
    %cst_33 = arith.constant 5.000000e-01 : f32
    %58 = vector.broadcast %cst_33 : f32 to vector<128x896xf32>
    %59 = arith.mulf %58, %57 : vector<128x896xf32>
    %c0_34 = arith.constant 0 : index
    %c0_35 = arith.constant 0 : index
    %60 = vector.load %arg5[%c0_34, %c0_35] : memref<128x1024xf32, #tpu.memory_space<vmem>>, vector<128x896xf32>
    tpu.vector_store %arg5[%c0_34, %c0_35], %59 {strides = array<i32>} : memref<128x1024xf32, #tpu.memory_space<vmem>>, vector<128x896xf32>,
    %c0_36 = arith.constant 0 : index
    %c896_37 = arith.constant 896 : index
    %61 = vector.load %arg5[%c0_36, %c896_37] : memref<128x1024xf32, #tpu.memory_space<vmem>>, vector<128x16xf32>
    tpu.vector_store %arg5[%c0_36, %c896_37], %24 {strides = array<i32>} : memref<128x1024xf32, #tpu.memory_space<vmem>>, vector<128x16xf32>,
    return
  }
  func.func @transform_0(%arg0: i32) -> (i32, i32) {
    %c0_i32 = arith.constant 0 : i32
    %c0_i32_0 = arith.constant 0 : i32
    return %arg0, %c0_i32 : i32, i32
  }
  func.func @transform_1(%arg0: i32) -> (i32, i32) {
    %c0_i32 = arith.constant 0 : i32
    %c0_i32_0 = arith.constant 0 : i32
    %c0_i32_1 = arith.constant 0 : i32
    return %c0_i32, %c0_i32_0 : i32, i32
  }
  func.func @transform_2(%arg0: i32) -> (i32, i32) {
    %c0_i32 = arith.constant 0 : i32
    %c0_i32_0 = arith.constant 0 : i32
    %c0_i32_1 = arith.constant 0 : i32
    return %c0_i32, %c0_i32_0 : i32, i32
  }
  func.func @transform_3(%arg0: i32) -> (i32, i32) {
    %c0_i32 = arith.constant 0 : i32
    %c0_i32_0 = arith.constant 0 : i32
    %c0_i32_1 = arith.constant 0 : i32
    return %c0_i32, %c0_i32_0 : i32, i32
  }
  func.func @transform_4(%arg0: i32) -> (i32, i32) {
    %c0_i32 = arith.constant 0 : i32
    %c0_i32_0 = arith.constant 0 : i32
    return %arg0, %c0_i32 : i32, i32
  }
}

</mosaic_0001>

<llo_original>
// kernel: tpu_custom_call.1
$region0: #{tpu_custom_call.1}
  #allocation0 [shape = 'u32[]', space=smem, size = 0x4, offset = 0x4, fixed_abs, tag = 'smem constant byte address 0x4 - core index']
  #allocation1 [shape = 'u32[144,128]{1,0:T(1,128)}', space=vmem, size = 0x12000, scoped, tag = 'internal scratch']
  %s0 = inlined_call_operand.hbm [shape: f32[256,896], index: 0, kind: input, shape index: {}]
  %s1 = inlined_call_operand.vmem [shape: f32[1008,32], index: 1, kind: input, shape index: {}]
  %s2 = inlined_call_operand.vmem [shape: f32[32,896], index: 2, kind: input, shape index: {}]
  %s3 = inlined_call_operand.vmem [shape: f32[1,1792], index: 3, kind: input, shape index: {}]
  %s4 = inlined_call_operand.hbm [shape: f32[256,1024], index: 4, kind: output, shape index: {}]
  %s5 = sld [smem:[#allocation0]]
  $region53: #{tpu_custom_call.1} parent=0
    _
  %s7 = ssub.s32 1, %s5
  %s8 = scalar_select 0, %s7, %s5
  $region1: #{tpu_custom_call.1} parent=0
    #allocation2 [shape = 'u8[917504]{0}', space=vmem, size = 0xe0000, scoped, tag = 'input window, operand 0']
    #allocation3 [shape = 's32[2]{0}', space=sflag, size = 0x8, scoped, tag = 'scoped memory for tpu_custom_call.1']
    #allocation4 [shape = 's32[2]{0}', space=sflag, size = 0x8, scoped, tag = 'scoped memory for tpu_custom_call.1']
    #allocation5 [shape = 'u8[1048576]{0}', space=vmem, size = 0x100000, scoped, tag = 'output window, operand 0']
    %9 = vsyncpa [#allocation3], 0
    %s10 = scalar_lea.sflag [#allocation3], 1
    %11 = vsyncpa %s10, 0
    %12 = vsyncpa [#allocation4], 0
    %s13 = scalar_lea.sflag [#allocation4], 1
    %14 = vsyncpa %s13, 0
    loop: start=0, step=1, limit=4
    $region2: #{tpu_custom_call.1} parent=1 // loop_pre_header
      _
    $region3: #{tpu_custom_call.1} parent=1 // loop_header
      %s16 = sphi 0, %s20
      %p17 = scmp.ge.s32.totalorder %s16, 4
      %s26 = sphi 0, %s28
      %s29 = sphi 0, %s26
      %s30 = sphi 0, %s29
      %s46 = sphi 0, %s30
      %s50 = sphi 0, %s50
      %s52 = sphi 0, %s50
      %s53 = sphi 0, %s52
      %s67 = sphi 0, %s53
      %s71 = sphi 0, %s71
      %s73 = sphi 0, %s71
      %s74 = sphi 0, %s73
      %s88 = sphi 0, %s74
      %s92 = sphi 0, %s92
      %s94 = sphi 0, %s92
      %s95 = sphi 0, %s94
      %s109 = sphi 0, %s95
      %s115 = sphi 0, %s117
      %s118 = sphi 0, %s115
      %s119 = sphi 0, %s118
      %s135 = sphi 0, %s119
    $region4: #{tpu_custom_call.1} parent=1 // loop_header_branch
      %19 = sbr.rel (%p17) target = $region8
    $region5: #{tpu_custom_call.1} parent=1 // loop_body
      %s21 = ssub.s32 %s16, 1
      %s22 = ssub.s32 %s16, 2
      %s23 = sadd.s32 %s16, 1
      %s24 = ssub.s32 %s16, %s23
      %p25 = scmp.eq.s32.totalorder %s24, 0
      %s27 = sadd.s32 %s26, 1
      %s28 = scalar_select %p25, %s26, %s27
      %p31 = pneg %p25
      %p32 = scmp.eq.s32.totalorder %s16, 1
      %p33 = por %p31, %p32
      %p34 = scmp.ne.s32.totalorder %s26, %s29
      %p35 = scmp.eq.s32.totalorder %s16, 0
      %p36 = por %p34, %p35
      %p37 = scmp.ne.s32.totalorder %s26, %s29
      %p38 = scmp.eq.s32.totalorder %s21, 1
      %p39 = por %p37, %p38
      %p40 = scmp.ne.s32.totalorder %s29, %s30
      %p41 = scmp.eq.s32.totalorder %s21, 0
      %p42 = por %p40, %p41
      %p43 = scmp.ne.s32.totalorder %s29, %s30
      %p44 = scmp.eq.s32.totalorder %s22, 1
      %p45 = por %p43, %p44
      %p47 = scmp.ne.s32.totalorder %s30, %s46
      %p48 = scmp.eq.s32.totalorder %s22, 0
      %p49 = por %p47, %p48
      %s51 = sadd.s32 %s50, 1
      %p54 = scmp.eq.s32.totalorder %s16, 1
      %p55 = scmp.ne.s32.totalorder %s50, %s52
      %p56 = scmp.eq.s32.totalorder %s16, 0
      %p57 = por %p55, %p56
      %p58 = scmp.ne.s32.totalorder %s50, %s52
      %p59 = scmp.eq.s32.totalorder %s21, 1
      %p60 = por %p58, %p59
      %p61 = scmp.ne.s32.totalorder %s52, %s53
      %p62 = scmp.eq.s32.totalorder %s21, 0
      %p63 = por %p61, %p62
      %p64 = scmp.ne.s32.totalorder %s52, %s53
      %p65 = scmp.eq.s32.totalorder %s22, 1
      %p66 = por %p64, %p65
      %p68 = scmp.ne.s32.totalorder %s53, %s67
      %p69 = scmp.eq.s32.totalorder %s22, 0
      %p70 = por %p68, %p69
      %s72 = sadd.s32 %s71, 1
      %p75 = scmp.eq.s32.totalorder %s16, 1
      %p76 = scmp.ne.s32.totalorder %s71, %s73
      %p77 = scmp.eq.s32.totalorder %s16, 0
      %p78 = por %p76, %p77
      %p79 = scmp.ne.s32.totalorder %s71, %s73
      %p80 = scmp.eq.s32.totalorder %s21, 1
      %p81 = por %p79, %p80
      %p82 = scmp.ne.s32.totalorder %s73, %s74
      %p83 = scmp.eq.s32.totalorder %s21, 0
      %p84 = por %p82, %p83
      %p85 = scmp.ne.s32.totalorder %s73, %s74
      %p86 = scmp.eq.s32.totalorder %s22, 1
      %p87 = por %p85, %p86
      %p89 = scmp.ne.s32.totalorder %s74, %s88
      %p90 = scmp.eq.s32.totalorder %s22, 0
      %p91 = por %p89, %p90
      %s93 = sadd.s32 %s92, 1
      %p96 = scmp.eq.s32.totalorder %s16, 1
      %p97 = scmp.ne.s32.totalorder %s92, %s94
      %p98 = scmp.eq.s32.totalorder %s16, 0
      %p99 = por %p97, %p98
      %p100 = scmp.ne.s32.totalorder %s92, %s94
      %p101 = scmp.eq.s32.totalorder %s21, 1
      %p102 = por %p100, %p101
      %p103 = scmp.ne.s32.totalorder %s94, %s95
      %p104 = scmp.eq.s32.totalorder %s21, 0
      %p105 = por %p103, %p104
      %p106 = scmp.ne.s32.totalorder %s94, %s95
      %p107 = scmp.eq.s32.totalorder %s22, 1
      %p108 = por %p106, %p107
      %p110 = scmp.ne.s32.totalorder %s95, %s109
      %p111 = scmp.eq.s32.totalorder %s22, 0
      %p112 = por %p110, %p111
      %s113 = ssub.s32 %s16, %s23
      %p114 = scmp.eq.s32.totalorder %s113, 0
      %s116 = sadd.s32 %s115, 1
      %s117 = scalar_select %p114, %s115, %s116
      %p120 = pneg %p114
      %p121 = scmp.eq.s32.totalorder %s16, 1
      %p122 = por %p120, %p121
      %p123 = scmp.ne.s32.totalorder %s115, %s118
      %p124 = scmp.eq.s32.totalorder %s16, 0
      %p125 = por %p123, %p124
      %p126 = scmp.ne.s32.totalorder %s115, %s118
      %p127 = scmp.eq.s32.totalorder %s21, 1
      %p128 = por %p126, %p127
      %p129 = scmp.ne.s32.totalorder %s118, %s119
      %p130 = scmp.eq.s32.totalorder %s21, 0
      %p131 = por %p129, %p130
      %p132 = scmp.ne.s32.totalorder %s118, %s119
      %p133 = scmp.eq.s32.totalorder %s22, 1
      %p134 = por %p132, %p133
      %p136 = scmp.ne.s32.totalorder %s119, %s135
      %p137 = scmp.eq.s32.totalorder %s22, 0
      %p138 = por %p136, %p137
      %p139 = scmp.le.s32.totalorder 1, %s16
      %p140 = scmp.lt.s32.totalorder %s16, 3
      %p141 = pnand %p139, %p140
      %p142 = pneg %p141
      // Predicated region
      $region9: #{tpu_custom_call.1} parent=5 // pred_check
        _
      $region10: #{tpu_custom_call.1} parent=5 // pred_check_branch
        %144 = sbr.rel (%p141) target = $region12
      $region11: #{tpu_custom_call.1} parent=5 // pred_region
        %s145 = ssub.s32 %s16, 1
        // Predicated region
        $region13: #{tpu_custom_call.1} parent=11 // pred_check
          %p146 = pneg %p63
        $region14: #{tpu_custom_call.1} parent=11 // pred_check_branch
          %148 = sbr.rel (%p146) target = $region16
        $region15: #{tpu_custom_call.1} parent=11 // pred_region
          _
        $region16: #{tpu_custom_call.1} parent=11 // pred_fallthru
          _
        // Predicated region
        $region17: #{tpu_custom_call.1} parent=11 // pred_check
          %p149 = pneg %p84
        $region18: #{tpu_custom_call.1} parent=11 // pred_check_branch
          %151 = sbr.rel (%p149) target = $region20
        $region19: #{tpu_custom_call.1} parent=11 // pred_region
          _
        $region20: #{tpu_custom_call.1} parent=11 // pred_fallthru
          _
        // Predicated region
        $region21: #{tpu_custom_call.1} parent=11 // pred_check
          %p152 = pneg %p105
        $region22: #{tpu_custom_call.1} parent=11 // pred_check_branch
          %154 = sbr.rel (%p152) target = $region24
        $region23: #{tpu_custom_call.1} parent=11 // pred_region
          _
        $region24: #{tpu_custom_call.1} parent=11 // pred_fallthru
          _
      $region12: #{tpu_custom_call.1} parent=5 // pred_fallthru
        _
      %p155 = scmp.lt.s32.totalorder %s16, 2
      // Predicated region
      $region25: #{tpu_custom_call.1} parent=5 // pred_check
        %p156 = pneg %p155
      $region26: #{tpu_custom_call.1} parent=5 // pred_check_branch
        %158 = sbr.rel (%p156) target = $region28
      $region27: #{tpu_custom_call.1} parent=5 // pred_region
        // Predicated region
        $region29: #{tpu_custom_call.1} parent=27 // pred_check
          %p159 = pneg %p36
        $region30: #{tpu_custom_call.1} parent=27 // pred_check_branch
          %161 = sbr.rel (%p159) target = $region32
        $region31: #{tpu_custom_call.1} parent=27 // pred_region
          %s162 = sand.u32 %s26, 1
          %s163 = scalar_lea.sflag [#allocation3], %s162
          %s164 = sand.u32 %s26, 1
          %s165 = smul.addr %s164, 896
          %s166 = scalar_lea.vmem [#allocation2], %s165
          %s167 = smul.u32 16, %s16
          %s169 = ssub.s32 14336, 14336
          %170 = vsyncadd %s163, %s169
          %s171 = smul.addr %s167, 7
          %s172 = smul.addr %s171, 128
          %s173 = scalar_lea.hbm %s0, %s172
          %s174 = sshll.u32 %s166, 4
          %s175 = int_to_ptr.vmem [resolvable:$true] %s174
          %180 = dma.hbm_to_vmem [thread:$0]  %s173, 14336, %s175, %s163, 896, 896, 56
        $region32: #{tpu_custom_call.1} parent=27 // pred_fallthru
          _
      $region28: #{tpu_custom_call.1} parent=5 // pred_fallthru
        _
      %p181 = scmp.le.s32.totalorder 1, %s16
      %p182 = scmp.lt.s32.totalorder %s16, 3
      %p183 = pnand %p181, %p182
      %p184 = pneg %p183
      // Predicated region
      $region33: #{tpu_custom_call.1} parent=5 // pred_check
        _
      $region34: #{tpu_custom_call.1} parent=5 // pred_check_branch
        %186 = sbr.rel (%p183) target = $region36
      $region35: #{tpu_custom_call.1} parent=5 // pred_region
        %s187 = ssub.s32 %s16, 1
        %s188 = sand.u32 %s29, 1
        %s189 = scalar_lea.sflag [#allocation3], %s188
        %s190 = sand.u32 %s29, 1
        %s191 = smul.addr %s190, 896
        %s192 = scalar_lea.vmem [#allocation2], %s191
        // Predicated region
        $region37: #{tpu_custom_call.1} parent=35 // pred_check
          %p193 = pneg %p42
        $region38: #{tpu_custom_call.1} parent=35 // pred_check_branch
          %195 = sbr.rel (%p193) target = $region40
        $region39: #{tpu_custom_call.1} parent=35 // pred_region
          %196 = dma.done %s189, 14336
        $region40: #{tpu_custom_call.1} parent=35 // pred_fallthru
          _
        %s197 = sand.u32 %s29, 1
        %s198 = scalar_lea.sflag [#allocation3], %s197
        %s199 = sand.u32 %s29, 1
        %s200 = smul.addr %s199, 896
        %s201 = scalar_lea.vmem [#allocation2], %s200
        %p202 = pneg %p42
        %p203 = pneg %p39
        %p204 = pneg %p63
        %p205 = pneg %p60
        %p206 = pneg %p84
        %p207 = pneg %p81
        %p208 = pneg %p105
        %p209 = pneg %p102
        %p210 = pneg %p131
        %p211 = pneg %p128
        %s212 = sand.u32 %s118, 1
        %s213 = scalar_lea.sflag [#allocation4], %s212
        %s214 = sand.u32 %s118, 1
        %s215 = smul.addr %s214, 1024
        %s216 = scalar_lea.vmem [#allocation5], %s215
        %s217 = smul.u32 16, %s21
        %s218 = smul.u32 16, %s21
        %v219 = vld [vmem:[%s192] sm:$0xff]
        %v220 = vld [vmem:[%s192 + $0x8] sm:$0xff]
        %v221 = vld [vmem:[%s192 + $0x10] sm:$0xff]
        %v222 = vld [vmem:[%s192 + $0x18] sm:$0xff]
        %v223 = vld [vmem:[%s192 + $0x20] sm:$0xff]
        %v224 = vld [vmem:[%s192 + $0x28] sm:$0xff]
        %v225 = vld [vmem:[%s192 + $0x30] sm:$0xff]
        %v226 = vld [vmem:[%s192 + $0x38] sm:$0xff]
        %v227 = vld [vmem:[%s192 + $0x40] sm:$0xff]
        %v228 = vld [vmem:[%s192 + $0x48] sm:$0xff]
        %v229 = vld [vmem:[%s192 + $0x50] sm:$0xff]
        %v230 = vld [vmem:[%s192 + $0x58] sm:$0xff]
        %v231 = vld [vmem:[%s192 + $0x60] sm:$0xff]
        %v232 = vld [vmem:[%s192 + $0x68] sm:$0xff]
        %v233 = vld [vmem:[%s192 + $0x70] sm:$0xff]
        %v234 = vld [vmem:[%s192 + $0x78] sm:$0xff]
        %v235 = vld [vmem:[%s192 + $0x80] sm:$0xff]
        %v236 = vld [vmem:[%s192 + $0x88] sm:$0xff]
        %v237 = vld [vmem:[%s192 + $0x90] sm:$0xff]
        %v238 = vld [vmem:[%s192 + $0x98] sm:$0xff]
        %v239 = vld [vmem:[%s192 + $0xa0] sm:$0xff]
        %v240 = vld [vmem:[%s192 + $0xa8] sm:$0xff]
        %v241 = vld [vmem:[%s192 + $0xb0] sm:$0xff]
        %v242 = vld [vmem:[%s192 + $0xb8] sm:$0xff]
        %v243 = vld [vmem:[%s192 + $0xc0] sm:$0xff]
        %v244 = vld [vmem:[%s192 + $0xc8] sm:$0xff]
        %v245 = vld [vmem:[%s192 + $0xd0] sm:$0xff]
        %v246 = vld [vmem:[%s192 + $0xd8] sm:$0xff]
        %v247 = vld [vmem:[%s192 + $0xe0] sm:$0xff]
        %v248 = vld [vmem:[%s192 + $0xe8] sm:$0xff]
        %v249 = vld [vmem:[%s192 + $0xf0] sm:$0xff]
        %v250 = vld [vmem:[%s192 + $0xf8] sm:$0xff]
        %v251 = vld [vmem:[%s192 + $0x100] sm:$0xff]
        %v252 = vld [vmem:[%s192 + $0x108] sm:$0xff]
        %v253 = vld [vmem:[%s192 + $0x110] sm:$0xff]
        %v254 = vld [vmem:[%s192 + $0x118] sm:$0xff]
        %v255 = vld [vmem:[%s192 + $0x120] sm:$0xff]
        %v256 = vld [vmem:[%s192 + $0x128] sm:$0xff]
        %v257 = vld [vmem:[%s192 + $0x130] sm:$0xff]
        %v258 = vld [vmem:[%s192 + $0x138] sm:$0xff]
        %v259 = vld [vmem:[%s192 + $0x140] sm:$0xff]
        %v260 = vld [vmem:[%s192 + $0x148] sm:$0xff]
        %v261 = vld [vmem:[%s192 + $0x150] sm:$0xff]
        %v262 = vld [vmem:[%s192 + $0x158] sm:$0xff]
        %v263 = vld [vmem:[%s192 + $0x160] sm:$0xff]
        %v264 = vld [vmem:[%s192 + $0x168] sm:$0xff]
        %v265 = vld [vmem:[%s192 + $0x170] sm:$0xff]
        %v266 = vld [vmem:[%s192 + $0x178] sm:$0xff]
        %v267 = vld [vmem:[%s192 + $0x180] sm:$0xff]
        %v268 = vld [vmem:[%s192 + $0x188] sm:$0xff]
        %v269 = vld [vmem:[%s192 + $0x190] sm:$0xff]
        %v270 = vld [vmem:[%s192 + $0x198] sm:$0xff]
        %v271 = vld [vmem:[%s192 + $0x1a0] sm:$0xff]
        %v272 = vld [vmem:[%s192 + $0x1a8] sm:$0xff]
        %v273 = vld [vmem:[%s192 + $0x1b0] sm:$0xff]
        %v274 = vld [vmem:[%s192 + $0x1b8] sm:$0xff]
        %v275 = vld [vmem:[%s192 + $0x1c0] sm:$0xff]
        %v276 = vld [vmem:[%s192 + $0x1c8] sm:$0xff]
        %v277 = vld [vmem:[%s192 + $0x1d0] sm:$0xff]
        %v278 = vld [vmem:[%s192 + $0x1d8] sm:$0xff]
        %v279 = vld [vmem:[%s192 + $0x1e0] sm:$0xff]
        %v280 = vld [vmem:[%s192 + $0x1e8] sm:$0xff]
        %v281 = vld [vmem:[%s192 + $0x1f0] sm:$0xff]
        %v282 = vld [vmem:[%s192 + $0x1f8] sm:$0xff]
        %v283 = vld [vmem:[%s192 + $0x200] sm:$0xff]
        %v284 = vld [vmem:[%s192 + $0x208] sm:$0xff]
        %v285 = vld [vmem:[%s192 + $0x210] sm:$0xff]
        %v286 = vld [vmem:[%s192 + $0x218] sm:$0xff]
        %v287 = vld [vmem:[%s192 + $0x220] sm:$0xff]
        %v288 = vld [vmem:[%s192 + $0x228] sm:$0xff]
        %v289 = vld [vmem:[%s192 + $0x230] sm:$0xff]
        %v290 = vld [vmem:[%s192 + $0x238] sm:$0xff]
        %v291 = vld [vmem:[%s192 + $0x240] sm:$0xff]
        %v292 = vld [vmem:[%s192 + $0x248] sm:$0xff]
        %v293 = vld [vmem:[%s192 + $0x250] sm:$0xff]
        %v294 = vld [vmem:[%s192 + $0x258] sm:$0xff]
        %v295 = vld [vmem:[%s192 + $0x260] sm:$0xff]
        %v296 = vld [vmem:[%s192 + $0x268] sm:$0xff]
        %v297 = vld [vmem:[%s192 + $0x270] sm:$0xff]
        %v298 = vld [vmem:[%s192 + $0x278] sm:$0xff]
        %v299 = vld [vmem:[%s192 + $0x280] sm:$0xff]
        %v300 = vld [vmem:[%s192 + $0x288] sm:$0xff]
        %v301 = vld [vmem:[%s192 + $0x290] sm:$0xff]
        %v302 = vld [vmem:[%s192 + $0x298] sm:$0xff]
        %v303 = vld [vmem:[%s192 + $0x2a0] sm:$0xff]
        %v304 = vld [vmem:[%s192 + $0x2a8] sm:$0xff]
        %v305 = vld [vmem:[%s192 + $0x2b0] sm:$0xff]
        %v306 = vld [vmem:[%s192 + $0x2b8] sm:$0xff]
        %v307 = vld [vmem:[%s192 + $0x2c0] sm:$0xff]
        %v308 = vld [vmem:[%s192 + $0x2c8] sm:$0xff]
        %v309 = vld [vmem:[%s192 + $0x2d0] sm:$0xff]
        %v310 = vld [vmem:[%s192 + $0x2d8] sm:$0xff]
        %v311 = vld [vmem:[%s192 + $0x2e0] sm:$0xff]
        %v312 = vld [vmem:[%s192 + $0x2e8] sm:$0xff]
        %v313 = vld [vmem:[%s192 + $0x2f0] sm:$0xff]
        %v314 = vld [vmem:[%s192 + $0x2f8] sm:$0xff]
        %v315 = vld [vmem:[%s192 + $0x300] sm:$0xff]
        %v316 = vld [vmem:[%s192 + $0x308] sm:$0xff]
        %v317 = vld [vmem:[%s192 + $0x310] sm:$0xff]
        %v318 = vld [vmem:[%s192 + $0x318] sm:$0xff]
        %v319 = vld [vmem:[%s192 + $0x320] sm:$0xff]
        %v320 = vld [vmem:[%s192 + $0x328] sm:$0xff]
        %v321 = vld [vmem:[%s192 + $0x330] sm:$0xff]
        %v322 = vld [vmem:[%s192 + $0x338] sm:$0xff]
        %v323 = vld [vmem:[%s192 + $0x340] sm:$0xff]
        %v324 = vld [vmem:[%s192 + $0x348] sm:$0xff]
        %v325 = vld [vmem:[%s192 + $0x350] sm:$0xff]
        %v326 = vld [vmem:[%s192 + $0x358] sm:$0xff]
        %v327 = vld [vmem:[%s192 + $0x360] sm:$0xff]
        %v328 = vld [vmem:[%s192 + $0x368] sm:$0xff]
        %v329 = vld [vmem:[%s192 + $0x370] sm:$0xff]
        %v330 = vld [vmem:[%s192 + $0x378] sm:$0xff]
        %v331 = vld [vmem:[%s1] sm:$0xff]
        %v332 = vld [vmem:[%s1 + $0x8] sm:$0xff]
        %v333 = vld [vmem:[%s1 + $0x10] sm:$0xff]
        %v334 = vld [vmem:[%s1 + $0x18] sm:$0xff]
        %v335 = vld [vmem:[%s1 + $0x20] sm:$0xff]
        %v336 = vld [vmem:[%s1 + $0x28] sm:$0xff]
        %v337 = vld [vmem:[%s1 + $0x30] sm:$0xff]
        %v338 = vld [vmem:[%s1 + $0x38] sm:$0xff]
        %v339 = vld [vmem:[%s1 + $0x40] sm:$0xff]
        %v340 = vld [vmem:[%s1 + $0x48] sm:$0xff]
        %v341 = vld [vmem:[%s1 + $0x50] sm:$0xff]
        %v342 = vld [vmem:[%s1 + $0x58] sm:$0xff]
        %v343 = vld [vmem:[%s1 + $0x60] sm:$0xff]
        %v344 = vld [vmem:[%s1 + $0x68] sm:$0xff]
        %v345 = vld [vmem:[%s1 + $0x70] sm:$0xff]
        %v346 = vld [vmem:[%s1 + $0x78] sm:$0xff]
        %v347 = vld [vmem:[%s1 + $0x80] sm:$0xff]
        %v348 = vld [vmem:[%s1 + $0x88] sm:$0xff]
        %v349 = vld [vmem:[%s1 + $0x90] sm:$0xff]
        %v350 = vld [vmem:[%s1 + $0x98] sm:$0xff]
        %v351 = vld [vmem:[%s1 + $0xa0] sm:$0xff]
        %v352 = vld [vmem:[%s1 + $0xa8] sm:$0xff]
        %v353 = vld [vmem:[%s1 + $0xb0] sm:$0xff]
        %v354 = vld [vmem:[%s1 + $0xb8] sm:$0xff]
        %v355 = vld [vmem:[%s1 + $0xc0] sm:$0xff]
        %v356 = vld [vmem:[%s1 + $0xc8] sm:$0xff]
        %v357 = vld [vmem:[%s1 + $0xd0] sm:$0xff]
        %v358 = vld [vmem:[%s1 + $0xd8] sm:$0xff]
        %v359 = vld [vmem:[%s1 + $0xe0] sm:$0xff]
        %v360 = vld [vmem:[%s1 + $0xe8] sm:$0xff]
        %v361 = vld [vmem:[%s1 + $0xf0] sm:$0xff]
        %v362 = vld [vmem:[%s1 + $0xf8] sm:$0xff]
        %v363 = vld [vmem:[%s1 + $0x100] sm:$0xff]
        %v364 = vld [vmem:[%s1 + $0x108] sm:$0xff]
        %v365 = vld [vmem:[%s1 + $0x110] sm:$0xff]
        %v366 = vld [vmem:[%s1 + $0x118] sm:$0xff]
        %v367 = vld [vmem:[%s1 + $0x120] sm:$0xff]
        %v368 = vld [vmem:[%s1 + $0x128] sm:$0xff]
        %v369 = vld [vmem:[%s1 + $0x130] sm:$0xff]
        %v370 = vld [vmem:[%s1 + $0x138] sm:$0xff]
        %v371 = vld [vmem:[%s1 + $0x140] sm:$0xff]
        %v372 = vld [vmem:[%s1 + $0x148] sm:$0xff]
        %v373 = vld [vmem:[%s1 + $0x150] sm:$0xff]
        %v374 = vld [vmem:[%s1 + $0x158] sm:$0xff]
        %v375 = vld [vmem:[%s1 + $0x160] sm:$0xff]
        %v376 = vld [vmem:[%s1 + $0x168] sm:$0xff]
        %v377 = vld [vmem:[%s1 + $0x170] sm:$0xff]
        %v378 = vld [vmem:[%s1 + $0x178] sm:$0xff]
        %v379 = vld [vmem:[%s1 + $0x180] sm:$0xff]
        %v380 = vld [vmem:[%s1 + $0x188] sm:$0xff]
        %v381 = vld [vmem:[%s1 + $0x190] sm:$0xff]
        %v382 = vld [vmem:[%s1 + $0x198] sm:$0xff]
        %v383 = vld [vmem:[%s1 + $0x1a0] sm:$0xff]
        %v384 = vld [vmem:[%s1 + $0x1a8] sm:$0xff]
        %v385 = vld [vmem:[%s1 + $0x1b0] sm:$0xff]
        %v386 = vld [vmem:[%s1 + $0x1b8] sm:$0xff]
        %v387 = vld [vmem:[%s1 + $0x1c0] sm:$0xff]
        %v388 = vld [vmem:[%s1 + $0x1c8] sm:$0xff]
        %v389 = vld [vmem:[%s1 + $0x1d0] sm:$0xff]
        %v390 = vld [vmem:[%s1 + $0x1d8] sm:$0xff]
        %v391 = vld [vmem:[%s1 + $0x1e0] sm:$0xff]
        %v392 = vld [vmem:[%s1 + $0x1e8] sm:$0xff]
        %v393 = vld [vmem:[%s1 + $0x1f0] sm:$0xff]
        %v394 = vld [vmem:[%s1 + $0x1f8] sm:$0xff]
        %v395 = vld [vmem:[%s1 + $0x200] sm:$0xff]
        %v396 = vld [vmem:[%s1 + $0x208] sm:$0xff]
        %v397 = vld [vmem:[%s1 + $0x210] sm:$0xff]
        %v398 = vld [vmem:[%s1 + $0x218] sm:$0xff]
        %v399 = vld [vmem:[%s1 + $0x220] sm:$0xff]
        %v400 = vld [vmem:[%s1 + $0x228] sm:$0xff]
        %v401 = vld [vmem:[%s1 + $0x230] sm:$0xff]
        %v402 = vld [vmem:[%s1 + $0x238] sm:$0xff]
        %v403 = vld [vmem:[%s1 + $0x240] sm:$0xff]
        %v404 = vld [vmem:[%s1 + $0x248] sm:$0xff]
        %v405 = vld [vmem:[%s1 + $0x250] sm:$0xff]
        %v406 = vld [vmem:[%s1 + $0x258] sm:$0xff]
        %v407 = vld [vmem:[%s1 + $0x260] sm:$0xff]
        %v408 = vld [vmem:[%s1 + $0x268] sm:$0xff]
        %v409 = vld [vmem:[%s1 + $0x270] sm:$0xff]
        %v410 = vld [vmem:[%s1 + $0x278] sm:$0xff]
        %v411 = vld [vmem:[%s1 + $0x280] sm:$0xff]
        %v412 = vld [vmem:[%s1 + $0x288] sm:$0xff]
        %v413 = vld [vmem:[%s1 + $0x290] sm:$0xff]
        %v414 = vld [vmem:[%s1 + $0x298] sm:$0xff]
        %v415 = vld [vmem:[%s1 + $0x2a0] sm:$0xff]
        %v416 = vld [vmem:[%s1 + $0x2a8] sm:$0xff]
        %v417 = vld [vmem:[%s1 + $0x2b0] sm:$0xff]
        %v418 = vld [vmem:[%s1 + $0x2b8] sm:$0xff]
        %v419 = vld [vmem:[%s1 + $0x2c0] sm:$0xff]
        %v420 = vld [vmem:[%s1 + $0x2c8] sm:$0xff]
        %v421 = vld [vmem:[%s1 + $0x2d0] sm:$0xff]
        %v422 = vld [vmem:[%s1 + $0x2d8] sm:$0xff]
        %v423 = vld [vmem:[%s1 + $0x2e0] sm:$0xff]
        %v424 = vld [vmem:[%s1 + $0x2e8] sm:$0xff]
        %v425 = vld [vmem:[%s1 + $0x2f0] sm:$0xff]
        %v426 = vld [vmem:[%s1 + $0x2f8] sm:$0xff]
        %v427 = vld [vmem:[%s1 + $0x300] sm:$0xff]
        %v428 = vld [vmem:[%s1 + $0x308] sm:$0xff]
        %v429 = vld [vmem:[%s1 + $0x310] sm:$0xff]
        %v430 = vld [vmem:[%s1 + $0x318] sm:$0xff]
        %v431 = vld [vmem:[%s1 + $0x320] sm:$0xff]
        %v432 = vld [vmem:[%s1 + $0x328] sm:$0xff]
        %v433 = vld [vmem:[%s1 + $0x330] sm:$0xff]
        %v434 = vld [vmem:[%s1 + $0x338] sm:$0xff]
        %v435 = vld [vmem:[%s1 + $0x340] sm:$0xff]
        %v436 = vld [vmem:[%s1 + $0x348] sm:$0xff]
        %v437 = vld [vmem:[%s1 + $0x350] sm:$0xff]
        %v438 = vld [vmem:[%s1 + $0x358] sm:$0xff]
        %v439 = vld [vmem:[%s1 + $0x360] sm:$0xff]
        %v440 = vld [vmem:[%s1 + $0x368] sm:$0xff]
        %v441 = vld [vmem:[%s1 + $0x370] sm:$0xff]
        %v442 = vld [vmem:[%s1 + $0x378] sm:$0xff]
        %v443 = vld [vmem:[%s3] sm:$0x1]
        %v445 = vlaneseq
        %v446 = vshrl.u32 %v445, 7
        %v447 = vsub.s32 0, %v446
        %v448 = vrot.slane %v443, %v447
        %450 = vmatprep.subr.mxu0 0.0
        %451 = vmatpush1.msra.mxu0 %v331
        %452 = vmatprep.subr.mxu0 0.0
        %453 = vmatpush1.msra.mxu0 %v332
        %454 = vmatprep.subr.mxu0 0.0
        %455 = vmatpush1.msra.mxu0 %v333
        %456 = vmatprep.subr.mxu0 0.0
        %457 = vmatpush1.msra.mxu0 %v334
        %458 = vmatprep.subr.mxu0 0.0
        %459 = vmatpush1.msra.mxu0 %v335
        %460 = vmatprep.subr.mxu0 0.0
        %461 = vmatpush1.msra.mxu0 %v336
        %462 = vmatprep.subr.mxu0 0.0
        %463 = vmatpush1.msra.mxu0 %v337
        %464 = vmatprep.subr.mxu0 0.0
        %465 = vmatpush1.msra.mxu0 %v338
        %466 = vmatprep.subr.mxu0 0.0
        %467 = vmatpush1.msra.mxu0 %v339
        %468 = vmatprep.subr.mxu0 0.0
        %469 = vmatpush1.msra.mxu0 %v340
        %470 = vmatprep.subr.mxu0 0.0
        %471 = vmatpush1.msra.mxu0 %v341
        %472 = vmatprep.subr.mxu0 0.0
        %473 = vmatpush1.msra.mxu0 %v342
        %474 = vmatprep.subr.mxu0 0.0
        %475 = vmatpush1.msra.mxu0 %v343
        %476 = vmatprep.subr.mxu0 0.0
        %477 = vmatpush1.msra.mxu0 %v344
        %478 = vmatprep.subr.mxu0 0.0
        %479 = vmatpush1.msra.mxu0 %v345
        %480 = vmatprep.subr.mxu0 0.0
        %481 = vmatpush1.msra.mxu0 %v346
        %482 = vmatprep.subr.mxu0 0.0
        %483 = vmatpush1.msra.mxu0 %v347
        %484 = vmatprep.subr.mxu0 0.0
        %485 = vmatpush1.msra.mxu0 %v348
        %486 = vmatprep.subr.mxu0 0.0
        %487 = vmatpush1.msra.mxu0 %v349
        %488 = vmatprep.subr.mxu0 0.0
        %489 = vmatpush1.msra.mxu0 %v350
        %490 = vmatprep.subr.mxu0 0.0
        %491 = vmatpush1.msra.mxu0 %v351
        %492 = vmatprep.subr.mxu0 0.0
        %493 = vmatpush1.msra.mxu0 %v352
        %494 = vmatprep.subr.mxu0 0.0
        %495 = vmatpush1.msra.mxu0 %v353
        %496 = vmatprep.subr.mxu0 0.0
        %497 = vmatpush1.msra.mxu0 %v354
        %498 = vmatprep.subr.mxu0 0.0
        %499 = vmatpush1.msra.mxu0 %v355
        %500 = vmatprep.subr.mxu0 0.0
        %501 = vmatpush1.msra.mxu0 %v356
        %502 = vmatprep.subr.mxu0 0.0
        %503 = vmatpush1.msra.mxu0 %v357
        %504 = vmatprep.subr.mxu0 0.0
        %505 = vmatpush1.msra.mxu0 %v358
        %506 = vmatprep.subr.mxu0 0.0
        %507 = vmatpush1.msra.mxu0 %v359
        %508 = vmatprep.subr.mxu0 0.0
        %509 = vmatpush1.msra.mxu0 %v360
        %510 = vmatprep.subr.mxu0 0.0
        %511 = vmatpush1.msra.mxu0 %v361
        %512 = vmatprep.subr.mxu0 0.0
        %513 = vmatpush1.msra.mxu0 %v362
        %514 = vmatprep.mubr.f32.mxu0 %v220
        %515 = vmatmul.mubr.f32.gmra.mrb[0].mxu0 %v219
        %v516 = vpop.f32.mrb[0].mxu0
        %v517 = vadd.f32 %v448, %v516
        %v518 = vpop.f32.mrb[0].mxu0
        %519 = vmatprep.mubr.f32.mxu0 %v227
        %520 = vmatmul.mubr.f32.gmra.mrb[0].mxu0 %v226
        %v521 = vpop.f32.mrb[0].mxu0
        %v522 = vadd.f32 %v448, %v521
        %v523 = vpop.f32.mrb[0].mxu0
        %524 = vmatprep.mubr.f32.mxu0 %v234
        %525 = vmatmul.mubr.f32.gmra.mrb[0].mxu0 %v233
        %v526 = vpop.f32.mrb[0].mxu0
        %v527 = vadd.f32 %v448, %v526
        %v528 = vpop.f32.mrb[0].mxu0
        %529 = vmatprep.mubr.f32.mxu0 %v241
        %530 = vmatmul.mubr.f32.gmra.mrb[0].mxu0 %v240
        %v531 = vpop.f32.mrb[0].mxu0
        %v532 = vadd.f32 %v448, %v531
        %v533 = vpop.f32.mrb[0].mxu0
        %534 = vmatprep.mubr.f32.mxu0 %v248
        %535 = vmatmul.mubr.f32.gmra.mrb[0].mxu0 %v247
        %v536 = vpop.f32.mrb[0].mxu0
        %v537 = vadd.f32 %v448, %v536
        %v538 = vpop.f32.mrb[0].mxu0
        %539 = vmatprep.mubr.f32.mxu0 %v255
        %540 = vmatmul.mubr.f32.gmra.mrb[0].mxu0 %v254
        %v541 = vpop.f32.mrb[0].mxu0
        %v542 = vadd.f32 %v448, %v541
        %v543 = vpop.f32.mrb[0].mxu0
        %544 = vmatprep.mubr.f32.mxu0 %v262
        %545 = vmatmul.mubr.f32.gmra.mrb[0].mxu0 %v261
        %v546 = vpop.f32.mrb[0].mxu0
        %v547 = vadd.f32 %v448, %v546
        %v548 = vpop.f32.mrb[0].mxu0
        %549 = vmatprep.mubr.f32.mxu0 %v269
        %550 = vmatmul.mubr.f32.gmra.mrb[0].mxu0 %v268
        %v551 = vpop.f32.mrb[0].mxu0
        %v552 = vadd.f32 %v448, %v551
        %v553 = vpop.f32.mrb[0].mxu0
        %554 = vmatprep.mubr.f32.mxu0 %v276
        %555 = vmatmul.mubr.f32.gmra.mrb[0].mxu0 %v275
        %v556 = vpop.f32.mrb[0].mxu0
        %v557 = vadd.f32 %v448, %v556
        %v558 = vpop.f32.mrb[0].mxu0
        %559 = vmatprep.mubr.f32.mxu0 %v283
        %560 = vmatmul.mubr.f32.gmra.mrb[0].mxu0 %v282
        %v561 = vpop.f32.mrb[0].mxu0
        %v562 = vadd.f32 %v448, %v561
        %v563 = vpop.f32.mrb[0].mxu0
        %564 = vmatprep.mubr.f32.mxu0 %v290
        %565 = vmatmul.mubr.f32.gmra.mrb[0].mxu0 %v289
        %v566 = vpop.f32.mrb[0].mxu0
        %v567 = vadd.f32 %v448, %v566
        %v568 = vpop.f32.mrb[0].mxu0
        %569 = vmatprep.mubr.f32.mxu0 %v297
        %570 = vmatmul.mubr.f32.gmra.mrb[0].mxu0 %v296
        %v571 = vpop.f32.mrb[0].mxu0
        %v572 = vadd.f32 %v448, %v571
        %v573 = vpop.f32.mrb[0].mxu0
        %574 = vmatprep.mubr.f32.mxu0 %v304
        %575 = vmatmul.mubr.f32.gmra.mrb[0].mxu0 %v303
        %v576 = vpop.f32.mrb[0].mxu0
        %v577 = vadd.f32 %v448, %v576
        %v578 = vpop.f32.mrb[0].mxu0
        %579 = vmatprep.mubr.f32.mxu0 %v311
        %580 = vmatmul.mubr.f32.gmra.mrb[0].mxu0 %v310
        %v581 = vpop.f32.mrb[0].mxu0
        %v582 = vadd.f32 %v448, %v581
        %v583 = vpop.f32.mrb[0].mxu0
        %584 = vmatprep.mubr.f32.mxu0 %v318
        %585 = vmatmul.mubr.f32.gmra.mrb[0].mxu0 %v317
        %v586 = vpop.f32.mrb[0].mxu0
        %v587 = vadd.f32 %v448, %v586
        %v588 = vpop.f32.mrb[0].mxu0
        %589 = vmatprep.mubr.f32.mxu0 %v325
        %590 = vmatmul.mubr.f32.gmra.mrb[0].mxu0 %v324
        %v591 = vpop.f32.mrb[0].mxu0
        %v592 = vadd.f32 %v448, %v591
        %v593 = vpop.f32.mrb[0].mxu0
        %594 = vdwg.mxu0
        %595 = vmatprep.subr.mxu0 0.0
        %596 = vmatpush1.msra.mxu0 %v363
        %597 = vmatprep.subr.mxu0 0.0
        %598 = vmatpush1.msra.mxu0 %v364
        %599 = vmatprep.subr.mxu0 0.0
        %600 = vmatpush1.msra.mxu0 %v365
        %601 = vmatprep.subr.mxu0 0.0
        %602 = vmatpush1.msra.mxu0 %v366
        %603 = vmatprep.subr.mxu0 0.0
        %604 = vmatpush1.msra.mxu0 %v367
        %605 = vmatprep.subr.mxu0 0.0
        %606 = vmatpush1.msra.mxu0 %v368
        %607 = vmatprep.subr.mxu0 0.0
        %608 = vmatpush1.msra.mxu0 %v369
        %609 = vmatprep.subr.mxu0 0.0
        %610 = vmatpush1.msra.mxu0 %v370
        %611 = vmatprep.subr.mxu0 0.0
        %612 = vmatpush1.msra.mxu0 %v371
        %613 = vmatprep.subr.mxu0 0.0
        %614 = vmatpush1.msra.mxu0 %v372
        %615 = vmatprep.subr.mxu0 0.0
        %616 = vmatpush1.msra.mxu0 %v373
        %617 = vmatprep.subr.mxu0 0.0
        %618 = vmatpush1.msra.mxu0 %v374
        %619 = vmatprep.subr.mxu0 0.0
        %620 = vmatpush1.msra.mxu0 %v375
        %621 = vmatprep.subr.mxu0 0.0
        %622 = vmatpush1.msra.mxu0 %v376
        %623 = vmatprep.subr.mxu0 0.0
        %624 = vmatpush1.msra.mxu0 %v377
        %625 = vmatprep.subr.mxu0 0.0
        %626 = vmatpush1.msra.mxu0 %v378
        %627 = vmatprep.subr.mxu0 0.0
        %628 = vmatpush1.msra.mxu0 %v379
        %629 = vmatprep.subr.mxu0 0.0
        %630 = vmatpush1.msra.mxu0 %v380
        %631 = vmatprep.subr.mxu0 0.0
        %632 = vmatpush1.msra.mxu0 %v381
        %633 = vmatprep.subr.mxu0 0.0
        %634 = vmatpush1.msra.mxu0 %v382
        %635 = vmatprep.subr.mxu0 0.0
        %636 = vmatpush1.msra.mxu0 %v383
        %637 = vmatprep.subr.mxu0 0.0
        %638 = vmatpush1.msra.mxu0 %v384
        %639 = vmatprep.subr.mxu0 0.0
        %640 = vmatpush1.msra.mxu0 %v385
        %641 = vmatprep.subr.mxu0 0.0
        %642 = vmatpush1.msra.mxu0 %v386
        %643 = vmatprep.subr.mxu0 0.0
        %644 = vmatpush1.msra.mxu0 %v387
        %645 = vmatprep.subr.mxu0 0.0
        %646 = vmatpush1.msra.mxu0 %v388
        %647 = vmatprep.subr.mxu0 0.0
        %648 = vmatpush1.msra.mxu0 %v389
        %649 = vmatprep.subr.mxu0 0.0
        %650 = vmatpush1.msra.mxu0 %v390
        %651 = vmatprep.subr.mxu0 0.0
        %652 = vmatpush1.msra.mxu0 %v391
        %653 = vmatprep.subr.mxu0 0.0
        %654 = vmatpush1.msra.mxu0 %v392
        %655 = vmatprep.subr.mxu0 0.0
        %656 = vmatpush1.msra.mxu0 %v393
        %657 = vmatprep.subr.mxu0 0.0
        %658 = vmatpush1.msra.mxu0 %v394
        %659 = vmatprep.mubr.f32.mxu0 %v222
        %660 = vmatmul.mubr.f32.gmra.mrb[0].mxu0 %v221
        %v661 = vpop.f32.mrb[0].mxu0
        %v662 = vadd.f32 %v517, %v661
        %v663 = vpop.f32.mrb[0].mxu0
        %664 = vmatprep.mubr.f32.mxu0 %v229
        %665 = vmatmul.mubr.f32.gmra.mrb[0].mxu0 %v228
        %v666 = vpop.f32.mrb[0].mxu0
        %v667 = vadd.f32 %v522, %v666
        %v668 = vpop.f32.mrb[0].mxu0
        %669 = vmatprep.mubr.f32.mxu0 %v236
        %670 = vmatmul.mubr.f32.gmra.mrb[0].mxu0 %v235
        %v671 = vpop.f32.mrb[0].mxu0
        %v672 = vadd.f32 %v527, %v671
        %v673 = vpop.f32.mrb[0].mxu0
        %674 = vmatprep.mubr.f32.mxu0 %v243
        %675 = vmatmul.mubr.f32.gmra.mrb[0].mxu0 %v242
        %v676 = vpop.f32.mrb[0].mxu0
        %v677 = vadd.f32 %v532, %v676
        %v678 = vpop.f32.mrb[0].mxu0
        %679 = vmatprep.mubr.f32.mxu0 %v250
        %680 = vmatmul.mubr.f32.gmra.mrb[0].mxu0 %v249
        %v681 = vpop.f32.mrb[0].mxu0
        %v682 = vadd.f32 %v537, %v681
        %v683 = vpop.f32.mrb[0].mxu0
        %684 = vmatprep.mubr.f32.mxu0 %v257
        %685 = vmatmul.mubr.f32.gmra.mrb[0].mxu0 %v256
        %v686 = vpop.f32.mrb[0].mxu0
        %v687 = vadd.f32 %v542, %v686
        %v688 = vpop.f32.mrb[0].mxu0
        %689 = vmatprep.mubr.f32.mxu0 %v264
        %690 = vmatmul.mubr.f32.gmra.mrb[0].mxu0 %v263
        %v691 = vpop.f32.mrb[0].mxu0
        %v692 = vadd.f32 %v547, %v691
        %v693 = vpop.f32.mrb[0].mxu0
        %694 = vmatprep.mubr.f32.mxu0 %v271
        %695 = vmatmul.mubr.f32.gmra.mrb[0].mxu0 %v270
        %v696 = vpop.f32.mrb[0].mxu0
        %v697 = vadd.f32 %v552, %v696
        %v698 = vpop.f32.mrb[0].mxu0
        %699 = vmatprep.mubr.f32.mxu0 %v278
        %700 = vmatmul.mubr.f32.gmra.mrb[0].mxu0 %v277
        %v701 = vpop.f32.mrb[0].mxu0
        %v702 = vadd.f32 %v557, %v701
        %v703 = vpop.f32.mrb[0].mxu0
        %704 = vmatprep.mubr.f32.mxu0 %v285
        %705 = vmatmul.mubr.f32.gmra.mrb[0].mxu0 %v284
        %v706 = vpop.f32.mrb[0].mxu0
        %v707 = vadd.f32 %v562, %v706
        %v708 = vpop.f32.mrb[0].mxu0
        %709 = vmatprep.mubr.f32.mxu0 %v292
        %710 = vmatmul.mubr.f32.gmra.mrb[0].mxu0 %v291
        %v711 = vpop.f32.mrb[0].mxu0
        %v712 = vadd.f32 %v567, %v711
        %v713 = vpop.f32.mrb[0].mxu0
        %714 = vmatprep.mubr.f32.mxu0 %v299
        %715 = vmatmul.mubr.f32.gmra.mrb[0].mxu0 %v298
        %v716 = vpop.f32.mrb[0].mxu0
        %v717 = vadd.f32 %v572, %v716
        %v718 = vpop.f32.mrb[0].mxu0
        %719 = vmatprep.mubr.f32.mxu0 %v306
        %720 = vmatmul.mubr.f32.gmra.mrb[0].mxu0 %v305
        %v721 = vpop.f32.mrb[0].mxu0
        %v722 = vadd.f32 %v577, %v721
        %v723 = vpop.f32.mrb[0].mxu0
        %724 = vmatprep.mubr.f32.mxu0 %v313
        %725 = vmatmul.mubr.f32.gmra.mrb[0].mxu0 %v312
        %v726 = vpop.f32.mrb[0].mxu0
        %v727 = vadd.f32 %v582, %v726
        %v728 = vpop.f32.mrb[0].mxu0
        %729 = vmatprep.mubr.f32.mxu0 %v320
        %730 = vmatmul.mubr.f32.gmra.mrb[0].mxu0 %v319
        %v731 = vpop.f32.mrb[0].mxu0
        %v732 = vadd.f32 %v587, %v731
        %v733 = vpop.f32.mrb[0].mxu0
        %734 = vmatprep.mubr.f32.mxu0 %v327
        %735 = vmatmul.mubr.f32.gmra.mrb[0].mxu0 %v326
        %v736 = vpop.f32.mrb[0].mxu0
        %v737 = vadd.f32 %v592, %v736
        %v738 = vpop.f32.mrb[0].mxu0
        %739 = vdwg.mxu0
        %740 = vmatprep.subr.mxu0 0.0
        %741 = vmatpush1.msra.mxu0 %v395
        %742 = vmatprep.subr.mxu0 0.0
        %743 = vmatpush1.msra.mxu0 %v396
        %744 = vmatprep.subr.mxu0 0.0
        %745 = vmatpush1.msra.mxu0 %v397
        %746 = vmatprep.subr.mxu0 0.0
        %747 = vmatpush1.msra.mxu0 %v398
        %748 = vmatprep.subr.mxu0 0.0
        %749 = vmatpush1.msra.mxu0 %v399
        %750 = vmatprep.subr.mxu0 0.0
        %751 = vmatpush1.msra.mxu0 %v400
        %752 = vmatprep.subr.mxu0 0.0
        %753 = vmatpush1.msra.mxu0 %v401
        %754 = vmatprep.subr.mxu0 0.0
        %755 = vmatpush1.msra.mxu0 %v402
        %756 = vmatprep.subr.mxu0 0.0
        %757 = vmatpush1.msra.mxu0 %v403
        %758 = vmatprep.subr.mxu0 0.0
        %759 = vmatpush1.msra.mxu0 %v404
        %760 = vmatprep.subr.mxu0 0.0
        %761 = vmatpush1.msra.mxu0 %v405
        %762 = vmatprep.subr.mxu0 0.0
        %763 = vmatpush1.msra.mxu0 %v406
        %764 = vmatprep.subr.mxu0 0.0
        %765 = vmatpush1.msra.mxu0 %v407
        %766 = vmatprep.subr.mxu0 0.0
        %767 = vmatpush1.msra.mxu0 %v408
        %768 = vmatprep.subr.mxu0 0.0
        %769 = vmatpush1.msra.mxu0 %v409
        %770 = vmatprep.subr.mxu0 0.0
        %771 = vmatpush1.msra.mxu0 %v410
        %772 = vmatprep.subr.mxu0 0.0
        %773 = vmatpush1.msra.mxu0 %v411
        %774 = vmatprep.subr.mxu0 0.0
        %775 = vmatpush1.msra.mxu0 %v412
        %776 = vmatprep.subr.mxu0 0.0
        %777 = vmatpush1.msra.mxu0 %v413
        %778 = vmatprep.subr.mxu0 0.0
        %779 = vmatpush1.msra.mxu0 %v414
        %780 = vmatprep.subr.mxu0 0.0
        %781 = vmatpush1.msra.mxu0 %v415
        %782 = vmatprep.subr.mxu0 0.0
        %783 = vmatpush1.msra.mxu0 %v416
        %784 = vmatprep.subr.mxu0 0.0
        %785 = vmatpush1.msra.mxu0 %v417
        %786 = vmatprep.subr.mxu0 0.0
        %787 = vmatpush1.msra.mxu0 %v418
        %788 = vmatprep.subr.mxu0 0.0
        %789 = vmatpush1.msra.mxu0 %v419
        %790 = vmatprep.subr.mxu0 0.0
        %791 = vmatpush1.msra.mxu0 %v420
        %792 = vmatprep.subr.mxu0 0.0
        %793 = vmatpush1.msra.mxu0 %v421
        %794 = vmatprep.subr.mxu0 0.0
        %795 = vmatpush1.msra.mxu0 %v422
        %796 = vmatprep.subr.mxu0 0.0
        %797 = vmatpush1.msra.mxu0 %v423
        %798 = vmatprep.subr.mxu0 0.0
        %799 = vmatpush1.msra.mxu0 %v424
        %800 = vmatprep.subr.mxu0 0.0
        %801 = vmatpush1.msra.mxu0 %v425
        %802 = vmatprep.subr.mxu0 0.0
        %803 = vmatpush1.msra.mxu0 %v426
        %804 = vmatprep.mubr.f32.mxu0 %v224
        %805 = vmatmul.mubr.f32.gmra.mrb[0].mxu0 %v223
        %v806 = vpop.f32.mrb[0].mxu0
        %v807 = vadd.f32 %v662, %v806
        %v808 = vpop.f32.mrb[0].mxu0
        %809 = vmatprep.mubr.f32.mxu0 %v231
        %810 = vmatmul.mubr.f32.gmra.mrb[0].mxu0 %v230
        %v811 = vpop.f32.mrb[0].mxu0
        %v812 = vadd.f32 %v667, %v811
        %v813 = vpop.f32.mrb[0].mxu0
        %814 = vmatprep.mubr.f32.mxu0 %v238
        %815 = vmatmul.mubr.f32.gmra.mrb[0].mxu0 %v237
        %v816 = vpop.f32.mrb[0].mxu0
        %v817 = vadd.f32 %v672, %v816
        %v818 = vpop.f32.mrb[0].mxu0
        %819 = vmatprep.mubr.f32.mxu0 %v245
        %820 = vmatmul.mubr.f32.gmra.mrb[0].mxu0 %v244
        %v821 = vpop.f32.mrb[0].mxu0
        %v822 = vadd.f32 %v677, %v821
        %v823 = vpop.f32.mrb[0].mxu0
        %824 = vmatprep.mubr.f32.mxu0 %v252
        %825 = vmatmul.mubr.f32.gmra.mrb[0].mxu0 %v251
        %v826 = vpop.f32.mrb[0].mxu0
        %v827 = vadd.f32 %v682, %v826
        %v828 = vpop.f32.mrb[0].mxu0
        %829 = vmatprep.mubr.f32.mxu0 %v259
        %830 = vmatmul.mubr.f32.gmra.mrb[0].mxu0 %v258
        %v831 = vpop.f32.mrb[0].mxu0
        %v832 = vadd.f32 %v687, %v831
        %v833 = vpop.f32.mrb[0].mxu0
        %834 = vmatprep.mubr.f32.mxu0 %v266
        %835 = vmatmul.mubr.f32.gmra.mrb[0].mxu0 %v265
        %v836 = vpop.f32.mrb[0].mxu0
        %v837 = vadd.f32 %v692, %v836
        %v838 = vpop.f32.mrb[0].mxu0
        %839 = vmatprep.mubr.f32.mxu0 %v273
        %840 = vmatmul.mubr.f32.gmra.mrb[0].mxu0 %v272
        %v841 = vpop.f32.mrb[0].mxu0
        %v842 = vadd.f32 %v697, %v841
        %v843 = vpop.f32.mrb[0].mxu0
        %844 = vmatprep.mubr.f32.mxu0 %v280
        %845 = vmatmul.mubr.f32.gmra.mrb[0].mxu0 %v279
        %v846 = vpop.f32.mrb[0].mxu0
        %v847 = vadd.f32 %v702, %v846
        %v848 = vpop.f32.mrb[0].mxu0
        %849 = vmatprep.mubr.f32.mxu0 %v287
        %850 = vmatmul.mubr.f32.gmra.mrb[0].mxu0 %v286
        %v851 = vpop.f32.mrb[0].mxu0
        %v852 = vadd.f32 %v707, %v851
        %v853 = vpop.f32.mrb[0].mxu0
        %854 = vmatprep.mubr.f32.mxu0 %v294
        %855 = vmatmul.mubr.f32.gmra.mrb[0].mxu0 %v293
        %v856 = vpop.f32.mrb[0].mxu0
        %v857 = vadd.f32 %v712, %v856
        %v858 = vpop.f32.mrb[0].mxu0
        %859 = vmatprep.mubr.f32.mxu0 %v301
        %860 = vmatmul.mubr.f32.gmra.mrb[0].mxu0 %v300
        %v861 = vpop.f32.mrb[0].mxu0
        %v862 = vadd.f32 %v717, %v861
        %v863 = vpop.f32.mrb[0].mxu0
        %864 = vmatprep.mubr.f32.mxu0 %v308
        %865 = vmatmul.mubr.f32.gmra.mrb[0].mxu0 %v307
        %v866 = vpop.f32.mrb[0].mxu0
        %v867 = vadd.f32 %v722, %v866
        %v868 = vpop.f32.mrb[0].mxu0
        %869 = vmatprep.mubr.f32.mxu0 %v315
        %870 = vmatmul.mubr.f32.gmra.mrb[0].mxu0 %v314
        %v871 = vpop.f32.mrb[0].mxu0
        %v872 = vadd.f32 %v727, %v871
        %v873 = vpop.f32.mrb[0].mxu0
        %874 = vmatprep.mubr.f32.mxu0 %v322
        %875 = vmatmul.mubr.f32.gmra.mrb[0].mxu0 %v321
        %v876 = vpop.f32.mrb[0].mxu0
        %v877 = vadd.f32 %v732, %v876
        %v878 = vpop.f32.mrb[0].mxu0
        %879 = vmatprep.mubr.f32.mxu0 %v329
        %880 = vmatmul.mubr.f32.gmra.mrb[0].mxu0 %v328
        %v881 = vpop.f32.mrb[0].mxu0
        %v882 = vadd.f32 %v737, %v881
        %v883 = vpop.f32.mrb[0].mxu0
        %884 = vdwg.mxu0
        %885 = vmatprep.subr.mxu0 0.0
        %886 = vmatpush1.msra.mxu0 %v427
        %887 = vmatprep.subr.mxu0 0.0
        %888 = vmatpush1.msra.mxu0 %v428
        %889 = vmatprep.subr.mxu0 0.0
        %890 = vmatpush1.msra.mxu0 %v429
        %891 = vmatprep.subr.mxu0 0.0
        %892 = vmatpush1.msra.mxu0 %v430
        %893 = vmatprep.subr.mxu0 0.0
        %894 = vmatpush1.msra.mxu0 %v431
        %895 = vmatprep.subr.mxu0 0.0
        %896 = vmatpush1.msra.mxu0 %v432
        %897 = vmatprep.subr.mxu0 0.0
        %898 = vmatpush1.msra.mxu0 %v433
        %899 = vmatprep.subr.mxu0 0.0
        %900 = vmatpush1.msra.mxu0 %v434
        %901 = vmatprep.subr.mxu0 0.0
        %902 = vmatpush1.msra.mxu0 %v435
        %903 = vmatprep.subr.mxu0 0.0
        %904 = vmatpush1.msra.mxu0 %v436
        %905 = vmatprep.subr.mxu0 0.0
        %906 = vmatpush1.msra.mxu0 %v437
        %907 = vmatprep.subr.mxu0 0.0
        %908 = vmatpush1.msra.mxu0 %v438
        %909 = vmatprep.subr.mxu0 0.0
        %910 = vmatpush1.msra.mxu0 %v439
        %911 = vmatprep.subr.mxu0 0.0
        %912 = vmatpush1.msra.mxu0 %v440
        %913 = vmatprep.subr.mxu0 0.0
        %914 = vmatpush1.msra.mxu0 %v441
        %915 = vmatprep.subr.mxu0 0.0
        %916 = vmatpush1.msra.mxu0 %v442
        %917 = vmatprep.subr.mxu0 0.0
        %918 = vmatpush1.msra.mxu0 0.0
        %919 = vmatprep.subr.mxu0 0.0
        %920 = vmatpush1.msra.mxu0 0.0
        %921 = vmatprep.subr.mxu0 0.0
        %922 = vmatpush1.msra.mxu0 0.0
        %923 = vmatprep.subr.mxu0 0.0
        %924 = vmatpush1.msra.mxu0 0.0
        %925 = vmatprep.subr.mxu0 0.0
        %926 = vmatpush1.msra.mxu0 0.0
        %927 = vmatprep.subr.mxu0 0.0
        %928 = vmatpush1.msra.mxu0 0.0
        %929 = vmatprep.subr.mxu0 0.0
        %930 = vmatpush1.msra.mxu0 0.0
        %931 = vmatprep.subr.mxu0 0.0
        %932 = vmatpush1.msra.mxu0 0.0
        %933 = vmatprep.subr.mxu0 0.0
        %934 = vmatpush1.msra.mxu0 0.0
        %935 = vmatprep.subr.mxu0 0.0
        %936 = vmatpush1.msra.mxu0 0.0
        %937 = vmatprep.subr.mxu0 0.0
        %938 = vmatpush1.msra.mxu0 0.0
        %939 = vmatprep.subr.mxu0 0.0
        %940 = vmatpush1.msra.mxu0 0.0
        %941 = vmatprep.subr.mxu0 0.0
        %942 = vmatpush1.msra.mxu0 0.0
        %943 = vmatprep.subr.mxu0 0.0
        %944 = vmatpush1.msra.mxu0 0.0
        %945 = vmatprep.subr.mxu0 0.0
        %946 = vmatpush1.msra.mxu0 0.0
        %947 = vmatprep.subr.mxu0 0.0
        %948 = vmatpush1.msra.mxu0 0.0
        %949 = vmatprep.mubr.f32.mxu0 0.0
        %950 = vmatmul.mubr.f32.gmra.mrb[0].mxu0 %v225
        %v951 = vpop.f32.mrb[0].mxu0
        %v952 = vadd.f32 %v807, %v951
        %v953 = vpop.f32.mrb[0].mxu0
        %954 = vmatprep.mubr.f32.mxu0 0.0
        %955 = vmatmul.mubr.f32.gmra.mrb[0].mxu0 %v232
        %v956 = vpop.f32.mrb[0].mxu0
        %v957 = vadd.f32 %v812, %v956
        %v958 = vpop.f32.mrb[0].mxu0
        %959 = vmatprep.mubr.f32.mxu0 0.0
        %960 = vmatmul.mubr.f32.gmra.mrb[0].mxu0 %v239
        %v961 = vpop.f32.mrb[0].mxu0
        %v962 = vadd.f32 %v817, %v961
        %v963 = vpop.f32.mrb[0].mxu0
        %964 = vmatprep.mubr.f32.mxu0 0.0
        %965 = vmatmul.mubr.f32.gmra.mrb[0].mxu0 %v246
        %v966 = vpop.f32.mrb[0].mxu0
        %v967 = vadd.f32 %v822, %v966
        %v968 = vpop.f32.mrb[0].mxu0
        %969 = vmatprep.mubr.f32.mxu0 0.0
        %970 = vmatmul.mubr.f32.gmra.mrb[0].mxu0 %v253
        %v971 = vpop.f32.mrb[0].mxu0
        %v972 = vadd.f32 %v827, %v971
        %v973 = vpop.f32.mrb[0].mxu0
        %974 = vmatprep.mubr.f32.mxu0 0.0
        %975 = vmatmul.mubr.f32.gmra.mrb[0].mxu0 %v260
        %v976 = vpop.f32.mrb[0].mxu0
        %v977 = vadd.f32 %v832, %v976
        %v978 = vpop.f32.mrb[0].mxu0
        %979 = vmatprep.mubr.f32.mxu0 0.0
        %980 = vmatmul.mubr.f32.gmra.mrb[0].mxu0 %v267
        %v981 = vpop.f32.mrb[0].mxu0
        %v982 = vadd.f32 %v837, %v981
        %v983 = vpop.f32.mrb[0].mxu0
        %984 = vmatprep.mubr.f32.mxu0 0.0
        %985 = vmatmul.mubr.f32.gmra.mrb[0].mxu0 %v274
        %v986 = vpop.f32.mrb[0].mxu0
        %v987 = vadd.f32 %v842, %v986
        %v988 = vpop.f32.mrb[0].mxu0
        %989 = vmatprep.mubr.f32.mxu0 0.0
        %990 = vmatmul.mubr.f32.gmra.mrb[0].mxu0 %v281
        %v991 = vpop.f32.mrb[0].mxu0
        %v992 = vadd.f32 %v847, %v991
        %v993 = vpop.f32.mrb[0].mxu0
        %994 = vmatprep.mubr.f32.mxu0 0.0
        %995 = vmatmul.mubr.f32.gmra.mrb[0].mxu0 %v288
        %v996 = vpop.f32.mrb[0].mxu0
        %v997 = vadd.f32 %v852, %v996
        %v998 = vpop.f32.mrb[0].mxu0
        %999 = vmatprep.mubr.f32.mxu0 0.0
        %1000 = vmatmul.mubr.f32.gmra.mrb[0].mxu0 %v295
        %v1001 = vpop.f32.mrb[0].mxu0
        %v1002 = vadd.f32 %v857, %v1001
        %v1003 = vpop.f32.mrb[0].mxu0
        %1004 = vmatprep.mubr.f32.mxu0 0.0
        %1005 = vmatmul.mubr.f32.gmra.mrb[0].mxu0 %v302
        %v1006 = vpop.f32.mrb[0].mxu0
        %v1007 = vadd.f32 %v862, %v1006
        %v1008 = vpop.f32.mrb[0].mxu0
        %1009 = vmatprep.mubr.f32.mxu0 0.0
        %1010 = vmatmul.mubr.f32.gmra.mrb[0].mxu0 %v309
        %v1011 = vpop.f32.mrb[0].mxu0
        %v1012 = vadd.f32 %v867, %v1011
        %v1013 = vpop.f32.mrb[0].mxu0
        %1014 = vmatprep.mubr.f32.mxu0 0.0
        %1015 = vmatmul.mubr.f32.gmra.mrb[0].mxu0 %v316
        %v1016 = vpop.f32.mrb[0].mxu0
        %v1017 = vadd.f32 %v872, %v1016
        %v1018 = vpop.f32.mrb[0].mxu0
        %1019 = vmatprep.mubr.f32.mxu0 0.0
        %1020 = vmatmul.mubr.f32.gmra.mrb[0].mxu0 %v323
        %v1021 = vpop.f32.mrb[0].mxu0
        %v1022 = vadd.f32 %v877, %v1021
        %v1023 = vpop.f32.mrb[0].mxu0
        %1024 = vmatprep.mubr.f32.mxu0 0.0
        %1025 = vmatmul.mubr.f32.gmra.mrb[0].mxu0 %v330
        %v1026 = vpop.f32.mrb[0].mxu0
        %v1027 = vadd.f32 %v882, %v1026
        %v1028 = vpop.f32.mrb[0].mxu0
        %1029 = vdwg.mxu0
        %v1030 = vmax.f32 %v952, 0.0
        %v1031 = vmax.f32 %v957, 0.0
        %v1032 = vmax.f32 %v962, 0.0
        %v1033 = vmax.f32 %v967, 0.0
        %v1034 = vmax.f32 %v972, 0.0
        %v1035 = vmax.f32 %v977, 0.0
        %v1036 = vmax.f32 %v982, 0.0
        %v1037 = vmax.f32 %v987, 0.0
        %v1038 = vmax.f32 %v992, 0.0
        %v1039 = vmax.f32 %v997, 0.0
        %v1040 = vmax.f32 %v1002, 0.0
        %v1041 = vmax.f32 %v1007, 0.0
        %v1042 = vmax.f32 %v1012, 0.0
        %v1043 = vmax.f32 %v1017, 0.0
        %v1044 = vmax.f32 %v1022, 0.0
        %v1045 = vmax.f32 %v1027, 0.0
        %v1046 = vld [vmem:[%s1 + $0x380] sm:$0xff]
        %v1047 = vld [vmem:[%s1 + $0x388] sm:$0xff]
        %v1048 = vld [vmem:[%s1 + $0x390] sm:$0xff]
        %v1049 = vld [vmem:[%s1 + $0x398] sm:$0xff]
        %v1050 = vld [vmem:[%s3 + $0x1] sm:$0x1]
        %v1052 = vlaneseq
        %v1053 = vshrl.u32 %v1052, 7
        %v1054 = vsub.s32 0, %v1053
        %v1055 = vrot.slane %v1050, %v1054
        %vm1057 = vcmask 261120
        %v1059 = vsel %vm1057, %v1030, 0
        %v1062 = vsel %vm1057, %v1031, 0
        %v1065 = vsel %vm1057, %v1032, 0
        %v1068 = vsel %vm1057, %v1033, 0
        %v1071 = vsel %vm1057, %v1034, 0
        %v1074 = vsel %vm1057, %v1035, 0
        %v1077 = vsel %vm1057, %v1036, 0
        %v1080 = vsel %vm1057, %v1037, 0
        %v1083 = vsel %vm1057, %v1038, 0
        %v1086 = vsel %vm1057, %v1039, 0
        %v1089 = vsel %vm1057, %v1040, 0
        %v1092 = vsel %vm1057, %v1041, 0
        %v1095 = vsel %vm1057, %v1042, 0
        %v1098 = vsel %vm1057, %v1043, 0
        %v1101 = vsel %vm1057, %v1044, 0
        %v1104 = vsel %vm1057, %v1045, 0
        %1106 = vmatprep.subr.mxu0 0.0
        %1107 = vmatpush1.msra.mxu0 %v1046
        %1108 = vmatprep.subr.mxu0 0.0
        %1109 = vmatpush1.msra.mxu0 %v1047
        %1110 = vmatprep.subr.mxu0 0.0
        %1111 = vmatpush1.msra.mxu0 %v1048
        %1112 = vmatprep.subr.mxu0 0.0
        %1113 = vmatpush1.msra.mxu0 %v1049
        %1114 = vmatprep.subr.mxu0 0.0
        %1115 = vmatpush1.msra.mxu0 0.0
        %1116 = vmatprep.subr.mxu0 0.0
        %1117 = vmatpush1.msra.mxu0 0.0
        %1118 = vmatprep.subr.mxu0 0.0
        %1119 = vmatpush1.msra.mxu0 0.0
        %1120 = vmatprep.subr.mxu0 0.0
        %1121 = vmatpush1.msra.mxu0 0.0
        %1122 = vmatprep.subr.mxu0 0.0
        %1123 = vmatpush1.msra.mxu0 0.0
        %1124 = vmatprep.subr.mxu0 0.0
        %1125 = vmatpush1.msra.mxu0 0.0
        %1126 = vmatprep.subr.mxu0 0.0
        %1127 = vmatpush1.msra.mxu0 0.0
        %1128 = vmatprep.subr.mxu0 0.0
        %1129 = vmatpush1.msra.mxu0 0.0
        %1130 = vmatprep.subr.mxu0 0.0
        %1131 = vmatpush1.msra.mxu0 0.0
        %1132 = vmatprep.subr.mxu0 0.0
        %1133 = vmatpush1.msra.mxu0 0.0
        %1134 = vmatprep.subr.mxu0 0.0
        %1135 = vmatpush1.msra.mxu0 0.0
        %1136 = vmatprep.subr.mxu0 0.0
        %1137 = vmatpush1.msra.mxu0 0.0
        %1138 = vmatprep.subr.mxu0 0.0
        %1139 = vmatpush1.msra.mxu0 0.0
        %1140 = vmatprep.subr.mxu0 0.0
        %1141 = vmatpush1.msra.mxu0 0.0
        %1142 = vmatprep.subr.mxu0 0.0
        %1143 = vmatpush1.msra.mxu0 0.0
        %1144 = vmatprep.subr.mxu0 0.0
        %1145 = vmatpush1.msra.mxu0 0.0
        %1146 = vmatprep.subr.mxu0 0.0
        %1147 = vmatpush1.msra.mxu0 0.0
        %1148 = vmatprep.subr.mxu0 0.0
        %1149 = vmatpush1.msra.mxu0 0.0
        %1150 = vmatprep.subr.mxu0 0.0
        %1151 = vmatpush1.msra.mxu0 0.0
        %1152 = vmatprep.subr.mxu0 0.0
        %1153 = vmatpush1.msra.mxu0 0.0
        %1154 = vmatprep.subr.mxu0 0.0
        %1155 = vmatpush1.msra.mxu0 0.0
        %1156 = vmatprep.subr.mxu0 0.0
        %1157 = vmatpush1.msra.mxu0 0.0
        %1158 = vmatprep.subr.mxu0 0.0
        %1159 = vmatpush1.msra.mxu0 0.0
        %1160 = vmatprep.subr.mxu0 0.0
        %1161 = vmatpush1.msra.mxu0 0.0
        %1162 = vmatprep.subr.mxu0 0.0
        %1163 = vmatpush1.msra.mxu0 0.0
        %1164 = vmatprep.subr.mxu0 0.0
        %1165 = vmatpush1.msra.mxu0 0.0
        %1166 = vmatprep.subr.mxu0 0.0
        %1167 = vmatpush1.msra.mxu0 0.0
        %1168 = vmatprep.subr.mxu0 0.0
        %1169 = vmatpush1.msra.mxu0 0.0
        %1170 = vmatprep.mubr.f32.mxu0 0.0
        %1171 = vmatmul.mubr.f32.gmra.mrb[0].mxu0 %v1059
        %v1172 = vpop.f32.mrb[0].mxu0
        %v1173 = vadd.f32 %v1055, %v1172
        %v1174 = vpop.f32.mrb[0].mxu0
        %1175 = vmatprep.mubr.f32.mxu0 0.0
        %1176 = vmatmul.mubr.f32.gmra.mrb[0].mxu0 %v1062
        %v1177 = vpop.f32.mrb[0].mxu0
        %v1178 = vadd.f32 %v1055, %v1177
        %v1179 = vpop.f32.mrb[0].mxu0
        %1180 = vmatprep.mubr.f32.mxu0 0.0
        %1181 = vmatmul.mubr.f32.gmra.mrb[0].mxu0 %v1065
        %v1182 = vpop.f32.mrb[0].mxu0
        %v1183 = vadd.f32 %v1055, %v1182
        %v1184 = vpop.f32.mrb[0].mxu0
        %1185 = vmatprep.mubr.f32.mxu0 0.0
        %1186 = vmatmul.mubr.f32.gmra.mrb[0].mxu0 %v1068
        %v1187 = vpop.f32.mrb[0].mxu0
        %v1188 = vadd.f32 %v1055, %v1187
        %v1189 = vpop.f32.mrb[0].mxu0
        %1190 = vmatprep.mubr.f32.mxu0 0.0
        %1191 = vmatmul.mubr.f32.gmra.mrb[0].mxu0 %v1071
        %v1192 = vpop.f32.mrb[0].mxu0
        %v1193 = vadd.f32 %v1055, %v1192
        %v1194 = vpop.f32.mrb[0].mxu0
        %1195 = vmatprep.mubr.f32.mxu0 0.0
        %1196 = vmatmul.mubr.f32.gmra.mrb[0].mxu0 %v1074
        %v1197 = vpop.f32.mrb[0].mxu0
        %v1198 = vadd.f32 %v1055, %v1197
        %v1199 = vpop.f32.mrb[0].mxu0
        %1200 = vmatprep.mubr.f32.mxu0 0.0
        %1201 = vmatmul.mubr.f32.gmra.mrb[0].mxu0 %v1077
        %v1202 = vpop.f32.mrb[0].mxu0
        %v1203 = vadd.f32 %v1055, %v1202
        %v1204 = vpop.f32.mrb[0].mxu0
        %1205 = vmatprep.mubr.f32.mxu0 0.0
        %1206 = vmatmul.mubr.f32.gmra.mrb[0].mxu0 %v1080
        %v1207 = vpop.f32.mrb[0].mxu0
        %v1208 = vadd.f32 %v1055, %v1207
        %v1209 = vpop.f32.mrb[0].mxu0
        %1210 = vmatprep.mubr.f32.mxu0 0.0
        %1211 = vmatmul.mubr.f32.gmra.mrb[0].mxu0 %v1083
        %v1212 = vpop.f32.mrb[0].mxu0
        %v1213 = vadd.f32 %v1055, %v1212
        %v1214 = vpop.f32.mrb[0].mxu0
        %1215 = vmatprep.mubr.f32.mxu0 0.0
        %1216 = vmatmul.mubr.f32.gmra.mrb[0].mxu0 %v1086
        %v1217 = vpop.f32.mrb[0].mxu0
        %v1218 = vadd.f32 %v1055, %v1217
        %v1219 = vpop.f32.mrb[0].mxu0
        %1220 = vmatprep.mubr.f32.mxu0 0.0
        %1221 = vmatmul.mubr.f32.gmra.mrb[0].mxu0 %v1089
        %v1222 = vpop.f32.mrb[0].mxu0
        %v1223 = vadd.f32 %v1055, %v1222
        %v1224 = vpop.f32.mrb[0].mxu0
        %1225 = vmatprep.mubr.f32.mxu0 0.0
        %1226 = vmatmul.mubr.f32.gmra.mrb[0].mxu0 %v1092
        %v1227 = vpop.f32.mrb[0].mxu0
        %v1228 = vadd.f32 %v1055, %v1227
        %v1229 = vpop.f32.mrb[0].mxu0
        %1230 = vmatprep.mubr.f32.mxu0 0.0
        %1231 = vmatmul.mubr.f32.gmra.mrb[0].mxu0 %v1095
        %v1232 = vpop.f32.mrb[0].mxu0
        %v1233 = vadd.f32 %v1055, %v1232
        %v1234 = vpop.f32.mrb[0].mxu0
        %1235 = vmatprep.mubr.f32.mxu0 0.0
        %1236 = vmatmul.mubr.f32.gmra.mrb[0].mxu0 %v1098
        %v1237 = vpop.f32.mrb[0].mxu0
        %v1238 = vadd.f32 %v1055, %v1237
        %v1239 = vpop.f32.mrb[0].mxu0
        %1240 = vmatprep.mubr.f32.mxu0 0.0
        %1241 = vmatmul.mubr.f32.gmra.mrb[0].mxu0 %v1101
        %v1242 = vpop.f32.mrb[0].mxu0
        %v1243 = vadd.f32 %v1055, %v1242
        %v1244 = vpop.f32.mrb[0].mxu0
        %1245 = vmatprep.mubr.f32.mxu0 0.0
        %1246 = vmatmul.mubr.f32.gmra.mrb[0].mxu0 %v1104
        %v1247 = vpop.f32.mrb[0].mxu0
        %v1248 = vadd.f32 %v1055, %v1247
        %v1249 = vpop.f32.mrb[0].mxu0
        %1250 = vdwg.mxu0
        %v1251 = vmax.f32 %v1173, 0.0
        %v1252 = vmax.f32 %v1178, 0.0
        %v1253 = vmax.f32 %v1183, 0.0
        %v1254 = vmax.f32 %v1188, 0.0
        %v1255 = vmax.f32 %v1193, 0.0
        %v1256 = vmax.f32 %v1198, 0.0
        %v1257 = vmax.f32 %v1203, 0.0
        %v1258 = vmax.f32 %v1208, 0.0
        %v1259 = vmax.f32 %v1213, 0.0
        %v1260 = vmax.f32 %v1218, 0.0
        %v1261 = vmax.f32 %v1223, 0.0
        %v1262 = vmax.f32 %v1228, 0.0
        %v1263 = vmax.f32 %v1233, 0.0
        %v1264 = vmax.f32 %v1238, 0.0
        %v1265 = vmax.f32 %v1243, 0.0
        %v1266 = vmax.f32 %v1248, 0.0
        %v1267 = vld [vmem:[%s1 + $0x3a0] sm:$0xff]
        %v1268 = vld [vmem:[%s1 + $0x3a8] sm:$0xff]
        %v1269 = vld [vmem:[%s1 + $0x3b0] sm:$0xff]
        %v1270 = vld [vmem:[%s1 + $0x3b8] sm:$0xff]
        %v1271 = vld [vmem:[%s3 + $0x2] sm:$0x1]
        %v1273 = vlaneseq
        %v1274 = vshrl.u32 %v1273, 7
        %v1275 = vsub.s32 0, %v1274
        %v1276 = vrot.slane %v1271, %v1275
        %v1279 = vsel %vm1057, %v1251, 0
        %v1282 = vsel %vm1057, %v1252, 0
        %v1285 = vsel %vm1057, %v1253, 0
        %v1288 = vsel %vm1057, %v1254, 0
        %v1291 = vsel %vm1057, %v1255, 0
        %v1294 = vsel %vm1057, %v1256, 0
        %v1297 = vsel %vm1057, %v1257, 0
        %v1300 = vsel %vm1057, %v1258, 0
        %v1303 = vsel %vm1057, %v1259, 0
        %v1306 = vsel %vm1057, %v1260, 0
        %v1309 = vsel %vm1057, %v1261, 0
        %v1312 = vsel %vm1057, %v1262, 0
        %v1315 = vsel %vm1057, %v1263, 0
        %v1318 = vsel %vm1057, %v1264, 0
        %v1321 = vsel %vm1057, %v1265, 0
        %v1324 = vsel %vm1057, %v1266, 0
        %1326 = vmatprep.subr.mxu0 0.0
        %1327 = vmatpush1.msra.mxu0 %v1267
        %1328 = vmatprep.subr.mxu0 0.0
        %1329 = vmatpush1.msra.mxu0 %v1268
        %1330 = vmatprep.subr.mxu0 0.0
        %1331 = vmatpush1.msra.mxu0 %v1269
        %1332 = vmatprep.subr.mxu0 0.0
        %1333 = vmatpush1.msra.mxu0 %v1270
        %1334 = vmatprep.subr.mxu0 0.0
        %1335 = vmatpush1.msra.mxu0 0.0
        %1336 = vmatprep.subr.mxu0 0.0
        %1337 = vmatpush1.msra.mxu0 0.0
        %1338 = vmatprep.subr.mxu0 0.0
        %1339 = vmatpush1.msra.mxu0 0.0
        %1340 = vmatprep.subr.mxu0 0.0
        %1341 = vmatpush1.msra.mxu0 0.0
        %1342 = vmatprep.subr.mxu0 0.0
        %1343 = vmatpush1.msra.mxu0 0.0
        %1344 = vmatprep.subr.mxu0 0.0
        %1345 = vmatpush1.msra.mxu0 0.0
        %1346 = vmatprep.subr.mxu0 0.0
        %1347 = vmatpush1.msra.mxu0 0.0
        %1348 = vmatprep.subr.mxu0 0.0
        %1349 = vmatpush1.msra.mxu0 0.0
        %1350 = vmatprep.subr.mxu0 0.0
        %1351 = vmatpush1.msra.mxu0 0.0
        %1352 = vmatprep.subr.mxu0 0.0
        %1353 = vmatpush1.msra.mxu0 0.0
        %1354 = vmatprep.subr.mxu0 0.0
        %1355 = vmatpush1.msra.mxu0 0.0
        %1356 = vmatprep.subr.mxu0 0.0
        %1357 = vmatpush1.msra.mxu0 0.0
        %1358 = vmatprep.subr.mxu0 0.0
        %1359 = vmatpush1.msra.mxu0 0.0
        %1360 = vmatprep.subr.mxu0 0.0
        %1361 = vmatpush1.msra.mxu0 0.0
        %1362 = vmatprep.subr.mxu0 0.0
        %1363 = vmatpush1.msra.mxu0 0.0
        %1364 = vmatprep.subr.mxu0 0.0
        %1365 = vmatpush1.msra.mxu0 0.0
        %1366 = vmatprep.subr.mxu0 0.0
        %1367 = vmatpush1.msra.mxu0 0.0
        %1368 = vmatprep.subr.mxu0 0.0
        %1369 = vmatpush1.msra.mxu0 0.0
        %1370 = vmatprep.subr.mxu0 0.0
        %1371 = vmatpush1.msra.mxu0 0.0
        %1372 = vmatprep.subr.mxu0 0.0
        %1373 = vmatpush1.msra.mxu0 0.0
        %1374 = vmatprep.subr.mxu0 0.0
        %1375 = vmatpush1.msra.mxu0 0.0
        %1376 = vmatprep.subr.mxu0 0.0
        %1377 = vmatpush1.msra.mxu0 0.0
        %1378 = vmatprep.subr.mxu0 0.0
        %1379 = vmatpush1.msra.mxu0 0.0
        %1380 = vmatprep.subr.mxu0 0.0
        %1381 = vmatpush1.msra.mxu0 0.0
        %1382 = vmatprep.subr.mxu0 0.0
        %1383 = vmatpush1.msra.mxu0 0.0
        %1384 = vmatprep.subr.mxu0 0.0
        %1385 = vmatpush1.msra.mxu0 0.0
        %1386 = vmatprep.subr.mxu0 0.0
        %1387 = vmatpush1.msra.mxu0 0.0
        %1388 = vmatprep.subr.mxu0 0.0
        %1389 = vmatpush1.msra.mxu0 0.0
        %1390 = vmatprep.mubr.f32.mxu0 0.0
        %1391 = vmatmul.mubr.f32.gmra.mrb[0].mxu0 %v1279
        %v1392 = vpop.f32.mrb[0].mxu0
        %v1393 = vadd.f32 %v1276, %v1392
        %v1394 = vpop.f32.mrb[0].mxu0
        %1395 = vmatprep.mubr.f32.mxu0 0.0
        %1396 = vmatmul.mubr.f32.gmra.mrb[0].mxu0 %v1282
        %v1397 = vpop.f32.mrb[0].mxu0
        %v1398 = vadd.f32 %v1276, %v1397
        %v1399 = vpop.f32.mrb[0].mxu0
        %1400 = vmatprep.mubr.f32.mxu0 0.0
        %1401 = vmatmul.mubr.f32.gmra.mrb[0].mxu0 %v1285
        %v1402 = vpop.f32.mrb[0].mxu0
        %v1403 = vadd.f32 %v1276, %v1402
        %v1404 = vpop.f32.mrb[0].mxu0
        %1405 = vmatprep.mubr.f32.mxu0 0.0
        %1406 = vmatmul.mubr.f32.gmra.mrb[0].mxu0 %v1288
        %v1407 = vpop.f32.mrb[0].mxu0
        %v1408 = vadd.f32 %v1276, %v1407
        %v1409 = vpop.f32.mrb[0].mxu0
        %1410 = vmatprep.mubr.f32.mxu0 0.0
        %1411 = vmatmul.mubr.f32.gmra.mrb[0].mxu0 %v1291
        %v1412 = vpop.f32.mrb[0].mxu0
        %v1413 = vadd.f32 %v1276, %v1412
        %v1414 = vpop.f32.mrb[0].mxu0
        %1415 = vmatprep.mubr.f32.mxu0 0.0
        %1416 = vmatmul.mubr.f32.gmra.mrb[0].mxu0 %v1294
        %v1417 = vpop.f32.mrb[0].mxu0
        %v1418 = vadd.f32 %v1276, %v1417
        %v1419 = vpop.f32.mrb[0].mxu0
        %1420 = vmatprep.mubr.f32.mxu0 0.0
        %1421 = vmatmul.mubr.f32.gmra.mrb[0].mxu0 %v1297
        %v1422 = vpop.f32.mrb[0].mxu0
        %v1423 = vadd.f32 %v1276, %v1422
        %v1424 = vpop.f32.mrb[0].mxu0
        %1425 = vmatprep.mubr.f32.mxu0 0.0
        %1426 = vmatmul.mubr.f32.gmra.mrb[0].mxu0 %v1300
        %v1427 = vpop.f32.mrb[0].mxu0
        %v1428 = vadd.f32 %v1276, %v1427
        %v1429 = vpop.f32.mrb[0].mxu0
        %1430 = vmatprep.mubr.f32.mxu0 0.0
        %1431 = vmatmul.mubr.f32.gmra.mrb[0].mxu0 %v1303
        %v1432 = vpop.f32.mrb[0].mxu0
        %v1433 = vadd.f32 %v1276, %v1432
        %v1434 = vpop.f32.mrb[0].mxu0
        %1435 = vmatprep.mubr.f32.mxu0 0.0
        %1436 = vmatmul.mubr.f32.gmra.mrb[0].mxu0 %v1306
        %v1437 = vpop.f32.mrb[0].mxu0
        %v1438 = vadd.f32 %v1276, %v1437
        %v1439 = vpop.f32.mrb[0].mxu0
        %1440 = vmatprep.mubr.f32.mxu0 0.0
        %1441 = vmatmul.mubr.f32.gmra.mrb[0].mxu0 %v1309
        %v1442 = vpop.f32.mrb[0].mxu0
        %v1443 = vadd.f32 %v1276, %v1442
        %v1444 = vpop.f32.mrb[0].mxu0
        %1445 = vmatprep.mubr.f32.mxu0 0.0
        %1446 = vmatmul.mubr.f32.gmra.mrb[0].mxu0 %v1312
        %v1447 = vpop.f32.mrb[0].mxu0
        %v1448 = vadd.f32 %v1276, %v1447
        %v1449 = vpop.f32.mrb[0].mxu0
        %1450 = vmatprep.mubr.f32.mxu0 0.0
        %1451 = vmatmul.mubr.f32.gmra.mrb[0].mxu0 %v1315
        %v1452 = vpop.f32.mrb[0].mxu0
        %v1453 = vadd.f32 %v1276, %v1452
        %v1454 = vpop.f32.mrb[0].mxu0
        %1455 = vmatprep.mubr.f32.mxu0 0.0
        %1456 = vmatmul.mubr.f32.gmra.mrb[0].mxu0 %v1318
        %v1457 = vpop.f32.mrb[0].mxu0
        %v1458 = vadd.f32 %v1276, %v1457
        %v1459 = vpop.f32.mrb[0].mxu0
        %1460 = vmatprep.mubr.f32.mxu0 0.0
        %1461 = vmatmul.mubr.f32.gmra.mrb[0].mxu0 %v1321
        %v1462 = vpop.f32.mrb[0].mxu0
        %v1463 = vadd.f32 %v1276, %v1462
        %v1464 = vpop.f32.mrb[0].mxu0
        %1465 = vmatprep.mubr.f32.mxu0 0.0
        %1466 = vmatmul.mubr.f32.gmra.mrb[0].mxu0 %v1324
        %v1467 = vpop.f32.mrb[0].mxu0
        %v1468 = vadd.f32 %v1276, %v1467
        %v1469 = vpop.f32.mrb[0].mxu0
        %1470 = vdwg.mxu0
        %v1471 = vld [vmem:[%s1 + $0x3c0] sm:$0xff]
        %v1472 = vld [vmem:[%s3 + $0x3] sm:$0x1]
        %v1474 = vlaneseq
        %v1475 = vshrl.u32 %v1474, 7
        %v1476 = vsub.s32 0, %v1475
        %v1477 = vrot.slane %v1472, %v1476
        %vm1479 = vcmask 64512
        %v1481 = vsel %vm1479, %v1393, 0
        %v1484 = vsel %vm1479, %v1398, 0
        %v1487 = vsel %vm1479, %v1403, 0
        %v1490 = vsel %vm1479, %v1408, 0
        %v1493 = vsel %vm1479, %v1413, 0
        %v1496 = vsel %vm1479, %v1418, 0
        %v1499 = vsel %vm1479, %v1423, 0
        %v1502 = vsel %vm1479, %v1428, 0
        %v1505 = vsel %vm1479, %v1433, 0
        %v1508 = vsel %vm1479, %v1438, 0
        %v1511 = vsel %vm1479, %v1443, 0
        %v1514 = vsel %vm1479, %v1448, 0
        %v1517 = vsel %vm1479, %v1453, 0
        %v1520 = vsel %vm1479, %v1458, 0
        %v1523 = vsel %vm1479, %v1463, 0
        %v1526 = vsel %vm1479, %v1468, 0
        %1528 = vmatprep.subr.mxu0 0.0
        %1529 = vmatpush1.msra.mxu0 %v1471
        %1530 = vmatprep.subr.mxu0 0.0
        %1531 = vmatpush1.msra.mxu0 0.0
        %1532 = vmatprep.subr.mxu0 0.0
        %1533 = vmatpush1.msra.mxu0 0.0
        %1534 = vmatprep.subr.mxu0 0.0
        %1535 = vmatpush1.msra.mxu0 0.0
        %1536 = vmatprep.subr.mxu0 0.0
        %1537 = vmatpush1.msra.mxu0 0.0
        %1538 = vmatprep.subr.mxu0 0.0
        %1539 = vmatpush1.msra.mxu0 0.0
        %1540 = vmatprep.subr.mxu0 0.0
        %1541 = vmatpush1.msra.mxu0 0.0
        %1542 = vmatprep.subr.mxu0 0.0
        %1543 = vmatpush1.msra.mxu0 0.0
        %1544 = vmatprep.subr.mxu0 0.0
        %1545 = vmatpush1.msra.mxu0 0.0
        %1546 = vmatprep.subr.mxu0 0.0
        %1547 = vmatpush1.msra.mxu0 0.0
        %1548 = vmatprep.subr.mxu0 0.0
        %1549 = vmatpush1.msra.mxu0 0.0
        %1550 = vmatprep.subr.mxu0 0.0
        %1551 = vmatpush1.msra.mxu0 0.0
        %1552 = vmatprep.subr.mxu0 0.0
        %1553 = vmatpush1.msra.mxu0 0.0
        %1554 = vmatprep.subr.mxu0 0.0
        %1555 = vmatpush1.msra.mxu0 0.0
        %1556 = vmatprep.subr.mxu0 0.0
        %1557 = vmatpush1.msra.mxu0 0.0
        %1558 = vmatprep.subr.mxu0 0.0
        %1559 = vmatpush1.msra.mxu0 0.0
        %1560 = vmatprep.subr.mxu0 0.0
        %1561 = vmatpush1.msra.mxu0 0.0
        %1562 = vmatprep.subr.mxu0 0.0
        %1563 = vmatpush1.msra.mxu0 0.0
        %1564 = vmatprep.subr.mxu0 0.0
        %1565 = vmatpush1.msra.mxu0 0.0
        %1566 = vmatprep.subr.mxu0 0.0
        %1567 = vmatpush1.msra.mxu0 0.0
        %1568 = vmatprep.subr.mxu0 0.0
        %1569 = vmatpush1.msra.mxu0 0.0
        %1570 = vmatprep.subr.mxu0 0.0
        %1571 = vmatpush1.msra.mxu0 0.0
        %1572 = vmatprep.subr.mxu0 0.0
        %1573 = vmatpush1.msra.mxu0 0.0
        %1574 = vmatprep.subr.mxu0 0.0
        %1575 = vmatpush1.msra.mxu0 0.0
        %1576 = vmatprep.subr.mxu0 0.0
        %1577 = vmatpush1.msra.mxu0 0.0
        %1578 = vmatprep.subr.mxu0 0.0
        %1579 = vmatpush1.msra.mxu0 0.0
        %1580 = vmatprep.subr.mxu0 0.0
        %1581 = vmatpush1.msra.mxu0 0.0
        %1582 = vmatprep.subr.mxu0 0.0
        %1583 = vmatpush1.msra.mxu0 0.0
        %1584 = vmatprep.subr.mxu0 0.0
        %1585 = vmatpush1.msra.mxu0 0.0
        %1586 = vmatprep.subr.mxu0 0.0
        %1587 = vmatpush1.msra.mxu0 0.0
        %1588 = vmatprep.subr.mxu0 0.0
        %1589 = vmatpush1.msra.mxu0 0.0
        %1590 = vmatprep.subr.mxu0 0.0
        %1591 = vmatpush1.msra.mxu0 0.0
        %1592 = vmatprep.mubr.f32.mxu0 0.0
        %1593 = vmatmul.mubr.f32.gmra.mrb[0].mxu0 %v1481
        %v1594 = vpop.f32.mrb[0].mxu0
        %v1595 = vadd.f32 %v1477, %v1594
        %v1596 = vpop.f32.mrb[0].mxu0
        %1597 = vmatprep.mubr.f32.mxu0 0.0
        %1598 = vmatmul.mubr.f32.gmra.mrb[0].mxu0 %v1484
        %v1599 = vpop.f32.mrb[0].mxu0
        %v1600 = vadd.f32 %v1477, %v1599
        %v1601 = vpop.f32.mrb[0].mxu0
        %1602 = vmatprep.mubr.f32.mxu0 0.0
        %1603 = vmatmul.mubr.f32.gmra.mrb[0].mxu0 %v1487
        %v1604 = vpop.f32.mrb[0].mxu0
        %v1605 = vadd.f32 %v1477, %v1604
        %v1606 = vpop.f32.mrb[0].mxu0
        %1607 = vmatprep.mubr.f32.mxu0 0.0
        %1608 = vmatmul.mubr.f32.gmra.mrb[0].mxu0 %v1490
        %v1609 = vpop.f32.mrb[0].mxu0
        %v1610 = vadd.f32 %v1477, %v1609
        %v1611 = vpop.f32.mrb[0].mxu0
        %1612 = vmatprep.mubr.f32.mxu0 0.0
        %1613 = vmatmul.mubr.f32.gmra.mrb[0].mxu0 %v1493
        %v1614 = vpop.f32.mrb[0].mxu0
        %v1615 = vadd.f32 %v1477, %v1614
        %v1616 = vpop.f32.mrb[0].mxu0
        %1617 = vmatprep.mubr.f32.mxu0 0.0
        %1618 = vmatmul.mubr.f32.gmra.mrb[0].mxu0 %v1496
        %v1619 = vpop.f32.mrb[0].mxu0
        %v1620 = vadd.f32 %v1477, %v1619
        %v1621 = vpop.f32.mrb[0].mxu0
        %1622 = vmatprep.mubr.f32.mxu0 0.0
        %1623 = vmatmul.mubr.f32.gmra.mrb[0].mxu0 %v1499
        %v1624 = vpop.f32.mrb[0].mxu0
        %v1625 = vadd.f32 %v1477, %v1624
        %v1626 = vpop.f32.mrb[0].mxu0
        %1627 = vmatprep.mubr.f32.mxu0 0.0
        %1628 = vmatmul.mubr.f32.gmra.mrb[0].mxu0 %v1502
        %v1629 = vpop.f32.mrb[0].mxu0
        %v1630 = vadd.f32 %v1477, %v1629
        %v1631 = vpop.f32.mrb[0].mxu0
        %1632 = vmatprep.mubr.f32.mxu0 0.0
        %1633 = vmatmul.mubr.f32.gmra.mrb[0].mxu0 %v1505
        %v1634 = vpop.f32.mrb[0].mxu0
        %v1635 = vadd.f32 %v1477, %v1634
        %v1636 = vpop.f32.mrb[0].mxu0
        %1637 = vmatprep.mubr.f32.mxu0 0.0
        %1638 = vmatmul.mubr.f32.gmra.mrb[0].mxu0 %v1508
        %v1639 = vpop.f32.mrb[0].mxu0
        %v1640 = vadd.f32 %v1477, %v1639
        %v1641 = vpop.f32.mrb[0].mxu0
        %1642 = vmatprep.mubr.f32.mxu0 0.0
        %1643 = vmatmul.mubr.f32.gmra.mrb[0].mxu0 %v1511
        %v1644 = vpop.f32.mrb[0].mxu0
        %v1645 = vadd.f32 %v1477, %v1644
        %v1646 = vpop.f32.mrb[0].mxu0
        %1647 = vmatprep.mubr.f32.mxu0 0.0
        %1648 = vmatmul.mubr.f32.gmra.mrb[0].mxu0 %v1514
        %v1649 = vpop.f32.mrb[0].mxu0
        %v1650 = vadd.f32 %v1477, %v1649
        %v1651 = vpop.f32.mrb[0].mxu0
        %1652 = vmatprep.mubr.f32.mxu0 0.0
        %1653 = vmatmul.mubr.f32.gmra.mrb[0].mxu0 %v1517
        %v1654 = vpop.f32.mrb[0].mxu0
        %v1655 = vadd.f32 %v1477, %v1654
        %v1656 = vpop.f32.mrb[0].mxu0
        %1657 = vmatprep.mubr.f32.mxu0 0.0
        %1658 = vmatmul.mubr.f32.gmra.mrb[0].mxu0 %v1520
        %v1659 = vpop.f32.mrb[0].mxu0
        %v1660 = vadd.f32 %v1477, %v1659
        %v1661 = vpop.f32.mrb[0].mxu0
        %1662 = vmatprep.mubr.f32.mxu0 0.0
        %1663 = vmatmul.mubr.f32.gmra.mrb[0].mxu0 %v1523
        %v1664 = vpop.f32.mrb[0].mxu0
        %v1665 = vadd.f32 %v1477, %v1664
        %v1666 = vpop.f32.mrb[0].mxu0
        %1667 = vmatprep.mubr.f32.mxu0 0.0
        %1668 = vmatmul.mubr.f32.gmra.mrb[0].mxu0 %v1526
        %v1669 = vpop.f32.mrb[0].mxu0
        %v1670 = vadd.f32 %v1477, %v1669
        %v1671 = vpop.f32.mrb[0].mxu0
        %1672 = vdwg.mxu0
        %v1673 = vld [vmem:[%s3 + $0x4] sm:$0x1]
        %v1674 = vmul.f32 %v1595, 0.5
        %v1675 = vmul.f32 %v1600, 0.5
        %v1676 = vmul.f32 %v1605, 0.5
        %v1677 = vmul.f32 %v1610, 0.5
        %v1678 = vmul.f32 %v1615, 0.5
        %v1679 = vmul.f32 %v1620, 0.5
        %v1680 = vmul.f32 %v1625, 0.5
        %v1681 = vmul.f32 %v1630, 0.5
        %v1682 = vmul.f32 %v1635, 0.5
        %v1683 = vmul.f32 %v1640, 0.5
        %v1684 = vmul.f32 %v1645, 0.5
        %v1685 = vmul.f32 %v1650, 0.5
        %v1686 = vmul.f32 %v1655, 0.5
        %v1687 = vmul.f32 %v1660, 0.5
        %v1688 = vmul.f32 %v1665, 0.5
        %v1689 = vmul.f32 %v1670, 0.5
        %v1690 = vmul.f32 %v1674, 1.442695
        %v1691 = vpow.pop %v1690
        %v1692 = vmul.f32 %v1675, 1.442695
        %v1693 = vpow.pop %v1692
        %v1694 = vmul.f32 %v1676, 1.442695
        %v1695 = vpow.pop %v1694
        %v1696 = vmul.f32 %v1677, 1.442695
        %v1697 = vpow.pop %v1696
        %v1698 = vmul.f32 %v1678, 1.442695
        %v1699 = vpow.pop %v1698
        %v1700 = vmul.f32 %v1679, 1.442695
        %v1701 = vpow.pop %v1700
        %v1702 = vmul.f32 %v1680, 1.442695
        %v1703 = vpow.pop %v1702
        %v1704 = vmul.f32 %v1681, 1.442695
        %v1705 = vpow.pop %v1704
        %v1706 = vmul.f32 %v1682, 1.442695
        %v1707 = vpow.pop %v1706
        %v1708 = vmul.f32 %v1683, 1.442695
        %v1709 = vpow.pop %v1708
        %v1710 = vmul.f32 %v1684, 1.442695
        %v1711 = vpow.pop %v1710
        %v1712 = vmul.f32 %v1685, 1.442695
        %v1713 = vpow.pop %v1712
        %v1714 = vmul.f32 %v1686, 1.442695
        %v1715 = vpow.pop %v1714
        %v1716 = vmul.f32 %v1687, 1.442695
        %v1717 = vpow.pop %v1716
        %v1718 = vmul.f32 %v1688, 1.442695
        %v1719 = vpow.pop %v1718
        %v1720 = vmul.f32 %v1689, 1.442695
        %v1721 = vpow.pop %v1720
        %v1723 = vlaneseq
        %v1724 = vshrl.u32 %v1723, 7
        %v1725 = vsub.s32 0, %v1724
        %v1726 = vrot.slane %v1673, %v1725
        %1744 = vrot.lane.b32.xlu0 %v1691, 120
        %v1745 = vpop.permute.xlu0 %1744
        %1746 = vrot.lane.b32.xlu0 %v1693, 120
        %v1747 = vpop.permute.xlu0 %1746
        %1748 = vrot.lane.b32.xlu0 %v1695, 120
        %v1749 = vpop.permute.xlu0 %1748
        %1750 = vrot.lane.b32.xlu0 %v1697, 120
        %v1751 = vpop.permute.xlu0 %1750
        %1752 = vrot.lane.b32.xlu0 %v1699, 120
        %v1753 = vpop.permute.xlu0 %1752
        %1754 = vrot.lane.b32.xlu0 %v1701, 120
        %v1755 = vpop.permute.xlu0 %1754
        %1756 = vrot.lane.b32.xlu0 %v1703, 120
        %v1757 = vpop.permute.xlu0 %1756
        %1758 = vrot.lane.b32.xlu0 %v1705, 120
        %v1759 = vpop.permute.xlu0 %1758
        %1760 = vrot.lane.b32.xlu0 %v1707, 120
        %v1761 = vpop.permute.xlu0 %1760
        %1762 = vrot.lane.b32.xlu0 %v1709, 120
        %v1763 = vpop.permute.xlu0 %1762
        %1764 = vrot.lane.b32.xlu0 %v1711, 120
        %v1765 = vpop.permute.xlu0 %1764
        %1766 = vrot.lane.b32.xlu0 %v1713, 120
        %v1767 = vpop.permute.xlu0 %1766
        %1768 = vrot.lane.b32.xlu0 %v1715, 120
        %v1769 = vpop.permute.xlu0 %1768
        %1770 = vrot.lane.b32.xlu0 %v1717, 120
        %v1771 = vpop.permute.xlu0 %1770
        %1772 = vrot.lane.b32.xlu0 %v1719, 120
        %v1773 = vpop.permute.xlu0 %1772
        %1774 = vrot.lane.b32.xlu0 %v1721, 120
        %v1775 = vpop.permute.xlu0 %1774
        %v1792 = vmul.f32 %v1726, %v1745
        %v1793 = vmul.f32 %v1726, %v1747
        %v1794 = vmul.f32 %v1726, %v1749
        %v1795 = vmul.f32 %v1726, %v1751
        %v1796 = vmul.f32 %v1726, %v1753
        %v1797 = vmul.f32 %v1726, %v1755
        %v1798 = vmul.f32 %v1726, %v1757
        %v1799 = vmul.f32 %v1726, %v1759
        %v1800 = vmul.f32 %v1726, %v1761
        %v1801 = vmul.f32 %v1726, %v1763
        %v1802 = vmul.f32 %v1726, %v1765
        %v1803 = vmul.f32 %v1726, %v1767
        %v1804 = vmul.f32 %v1726, %v1769
        %v1805 = vmul.f32 %v1726, %v1771
        %v1806 = vmul.f32 %v1726, %v1773
        %v1807 = vmul.f32 %v1726, %v1775
        %v1808 = vadd.f32 %v1792, %v1595
        %v1809 = vadd.f32 %v1793, %v1600
        %v1810 = vadd.f32 %v1794, %v1605
        %v1811 = vadd.f32 %v1795, %v1610
        %v1812 = vadd.f32 %v1796, %v1615
        %v1813 = vadd.f32 %v1797, %v1620
        %v1814 = vadd.f32 %v1798, %v1625
        %v1815 = vadd.f32 %v1799, %v1630
        %v1816 = vadd.f32 %v1800, %v1635
        %v1817 = vadd.f32 %v1801, %v1640
        %v1818 = vadd.f32 %v1802, %v1645
        %v1819 = vadd.f32 %v1803, %v1650
        %v1820 = vadd.f32 %v1804, %v1655
        %v1821 = vadd.f32 %v1805, %v1660
        %v1822 = vadd.f32 %v1806, %v1665
        %v1823 = vadd.f32 %v1807, %v1670
        %v1824 = vld [vmem:[%s1 + $0x3c8] sm:$0xff]
        %v1825 = vld [vmem:[%s3 + $0x5] sm:$0x1]
        %v1827 = vlaneseq
        %v1828 = vshrl.u32 %v1827, 7
        %v1829 = vsub.s32 0, %v1828
        %v1830 = vrot.slane %v1825, %v1829
        %v1833 = vsel %vm1479, %v1808, 0
        %v1836 = vsel %vm1479, %v1809, 0
        %v1839 = vsel %vm1479, %v1810, 0
        %v1842 = vsel %vm1479, %v1811, 0
        %v1845 = vsel %vm1479, %v1812, 0
        %v1848 = vsel %vm1479, %v1813, 0
        %v1851 = vsel %vm1479, %v1814, 0
        %v1854 = vsel %vm1479, %v1815, 0
        %v1857 = vsel %vm1479, %v1816, 0
        %v1860 = vsel %vm1479, %v1817, 0
        %v1863 = vsel %vm1479, %v1818, 0
        %v1866 = vsel %vm1479, %v1819, 0
        %v1869 = vsel %vm1479, %v1820, 0
        %v1872 = vsel %vm1479, %v1821, 0
        %v1875 = vsel %vm1479, %v1822, 0
        %v1878 = vsel %vm1479, %v1823, 0
        %1880 = vmatprep.subr.mxu0 0.0
        %1881 = vmatpush1.msra.mxu0 %v1824
        %1882 = vmatprep.subr.mxu0 0.0
        %1883 = vmatpush1.msra.mxu0 0.0
        %1884 = vmatprep.subr.mxu0 0.0
        %1885 = vmatpush1.msra.mxu0 0.0
        %1886 = vmatprep.subr.mxu0 0.0
        %1887 = vmatpush1.msra.mxu0 0.0
        %1888 = vmatprep.subr.mxu0 0.0
        %1889 = vmatpush1.msra.mxu0 0.0
        %1890 = vmatprep.subr.mxu0 0.0
        %1891 = vmatpush1.msra.mxu0 0.0
        %1892 = vmatprep.subr.mxu0 0.0
        %1893 = vmatpush1.msra.mxu0 0.0
        %1894 = vmatprep.subr.mxu0 0.0
        %1895 = vmatpush1.msra.mxu0 0.0
        %1896 = vmatprep.subr.mxu0 0.0
        %1897 = vmatpush1.msra.mxu0 0.0
        %1898 = vmatprep.subr.mxu0 0.0
        %1899 = vmatpush1.msra.mxu0 0.0
        %1900 = vmatprep.subr.mxu0 0.0
        %1901 = vmatpush1.msra.mxu0 0.0
        %1902 = vmatprep.subr.mxu0 0.0
        %1903 = vmatpush1.msra.mxu0 0.0
        %1904 = vmatprep.subr.mxu0 0.0
        %1905 = vmatpush1.msra.mxu0 0.0
        %1906 = vmatprep.subr.mxu0 0.0
        %1907 = vmatpush1.msra.mxu0 0.0
        %1908 = vmatprep.subr.mxu0 0.0
        %1909 = vmatpush1.msra.mxu0 0.0
        %1910 = vmatprep.subr.mxu0 0.0
        %1911 = vmatpush1.msra.mxu0 0.0
        %1912 = vmatprep.subr.mxu0 0.0
        %1913 = vmatpush1.msra.mxu0 0.0
        %1914 = vmatprep.subr.mxu0 0.0
        %1915 = vmatpush1.msra.mxu0 0.0
        %1916 = vmatprep.subr.mxu0 0.0
        %1917 = vmatpush1.msra.mxu0 0.0
        %1918 = vmatprep.subr.mxu0 0.0
        %1919 = vmatpush1.msra.mxu0 0.0
        %1920 = vmatprep.subr.mxu0 0.0
        %1921 = vmatpush1.msra.mxu0 0.0
        %1922 = vmatprep.subr.mxu0 0.0
        %1923 = vmatpush1.msra.mxu0 0.0
        %1924 = vmatprep.subr.mxu0 0.0
        %1925 = vmatpush1.msra.mxu0 0.0
        %1926 = vmatprep.subr.mxu0 0.0
        %1927 = vmatpush1.msra.mxu0 0.0
        %1928 = vmatprep.subr.mxu0 0.0
        %1929 = vmatpush1.msra.mxu0 0.0
        %1930 = vmatprep.subr.mxu0 0.0
        %1931 = vmatpush1.msra.mxu0 0.0
        %1932 = vmatprep.subr.mxu0 0.0
        %1933 = vmatpush1.msra.mxu0 0.0
        %1934 = vmatprep.subr.mxu0 0.0
        %1935 = vmatpush1.msra.mxu0 0.0
        %1936 = vmatprep.subr.mxu0 0.0
        %1937 = vmatpush1.msra.mxu0 0.0
        %1938 = vmatprep.subr.mxu0 0.0
        %1939 = vmatpush1.msra.mxu0 0.0
        %1940 = vmatprep.subr.mxu0 0.0
        %1941 = vmatpush1.msra.mxu0 0.0
        %1942 = vmatprep.subr.mxu0 0.0
        %1943 = vmatpush1.msra.mxu0 0.0
        %1944 = vmatprep.mubr.f32.mxu0 0.0
        %1945 = vmatmul.mubr.f32.gmra.mrb[0].mxu0 %v1833
        %v1946 = vpop.f32.mrb[0].mxu0
        %v1947 = vadd.f32 %v1830, %v1946
        %v1948 = vpop.f32.mrb[0].mxu0
        %1949 = vmatprep.mubr.f32.mxu0 0.0
        %1950 = vmatmul.mubr.f32.gmra.mrb[0].mxu0 %v1836
        %v1951 = vpop.f32.mrb[0].mxu0
        %v1952 = vadd.f32 %v1830, %v1951
        %v1953 = vpop.f32.mrb[0].mxu0
        %1954 = vmatprep.mubr.f32.mxu0 0.0
        %1955 = vmatmul.mubr.f32.gmra.mrb[0].mxu0 %v1839
        %v1956 = vpop.f32.mrb[0].mxu0
        %v1957 = vadd.f32 %v1830, %v1956
        %v1958 = vpop.f32.mrb[0].mxu0
        %1959 = vmatprep.mubr.f32.mxu0 0.0
        %1960 = vmatmul.mubr.f32.gmra.mrb[0].mxu0 %v1842
        %v1961 = vpop.f32.mrb[0].mxu0
        %v1962 = vadd.f32 %v1830, %v1961
        %v1963 = vpop.f32.mrb[0].mxu0
        %1964 = vmatprep.mubr.f32.mxu0 0.0
        %1965 = vmatmul.mubr.f32.gmra.mrb[0].mxu0 %v1845
        %v1966 = vpop.f32.mrb[0].mxu0
        %v1967 = vadd.f32 %v1830, %v1966
        %v1968 = vpop.f32.mrb[0].mxu0
        %1969 = vmatprep.mubr.f32.mxu0 0.0
        %1970 = vmatmul.mubr.f32.gmra.mrb[0].mxu0 %v1848
        %v1971 = vpop.f32.mrb[0].mxu0
        %v1972 = vadd.f32 %v1830, %v1971
        %v1973 = vpop.f32.mrb[0].mxu0
        %1974 = vmatprep.mubr.f32.mxu0 0.0
        %1975 = vmatmul.mubr.f32.gmra.mrb[0].mxu0 %v1851
        %v1976 = vpop.f32.mrb[0].mxu0
        %v1977 = vadd.f32 %v1830, %v1976
        %v1978 = vpop.f32.mrb[0].mxu0
        %1979 = vmatprep.mubr.f32.mxu0 0.0
        %1980 = vmatmul.mubr.f32.gmra.mrb[0].mxu0 %v1854
        %v1981 = vpop.f32.mrb[0].mxu0
        %v1982 = vadd.f32 %v1830, %v1981
        %v1983 = vpop.f32.mrb[0].mxu0
        %1984 = vmatprep.mubr.f32.mxu0 0.0
        %1985 = vmatmul.mubr.f32.gmra.mrb[0].mxu0 %v1857
        %v1986 = vpop.f32.mrb[0].mxu0
        %v1987 = vadd.f32 %v1830, %v1986
        %v1988 = vpop.f32.mrb[0].mxu0
        %1989 = vmatprep.mubr.f32.mxu0 0.0
        %1990 = vmatmul.mubr.f32.gmra.mrb[0].mxu0 %v1860
        %v1991 = vpop.f32.mrb[0].mxu0
        %v1992 = vadd.f32 %v1830, %v1991
        %v1993 = vpop.f32.mrb[0].mxu0
        %1994 = vmatprep.mubr.f32.mxu0 0.0
        %1995 = vmatmul.mubr.f32.gmra.mrb[0].mxu0 %v1863
        %v1996 = vpop.f32.mrb[0].mxu0
        %v1997 = vadd.f32 %v1830, %v1996
        %v1998 = vpop.f32.mrb[0].mxu0
        %1999 = vmatprep.mubr.f32.mxu0 0.0
        %2000 = vmatmul.mubr.f32.gmra.mrb[0].mxu0 %v1866
        %v2001 = vpop.f32.mrb[0].mxu0
        %v2002 = vadd.f32 %v1830, %v2001
        %v2003 = vpop.f32.mrb[0].mxu0
        %2004 = vmatprep.mubr.f32.mxu0 0.0
        %2005 = vmatmul.mubr.f32.gmra.mrb[0].mxu0 %v1869
        %v2006 = vpop.f32.mrb[0].mxu0
        %v2007 = vadd.f32 %v1830, %v2006
        %v2008 = vpop.f32.mrb[0].mxu0
        %2009 = vmatprep.mubr.f32.mxu0 0.0
        %2010 = vmatmul.mubr.f32.gmra.mrb[0].mxu0 %v1872
        %v2011 = vpop.f32.mrb[0].mxu0
        %v2012 = vadd.f32 %v1830, %v2011
        %v2013 = vpop.f32.mrb[0].mxu0
        %2014 = vmatprep.mubr.f32.mxu0 0.0
        %2015 = vmatmul.mubr.f32.gmra.mrb[0].mxu0 %v1875
        %v2016 = vpop.f32.mrb[0].mxu0
        %v2017 = vadd.f32 %v1830, %v2016
        %v2018 = vpop.f32.mrb[0].mxu0
        %2019 = vmatprep.mubr.f32.mxu0 0.0
        %2020 = vmatmul.mubr.f32.gmra.mrb[0].mxu0 %v1878
        %v2021 = vpop.f32.mrb[0].mxu0
        %v2022 = vadd.f32 %v1830, %v2021
        %v2023 = vpop.f32.mrb[0].mxu0
        %2024 = vdwg.mxu0
        %v2025 = vmax.f32 %v1947, 0.0
        %v2026 = vmax.f32 %v1952, 0.0
        %v2027 = vmax.f32 %v1957, 0.0
        %v2028 = vmax.f32 %v1962, 0.0
        %v2029 = vmax.f32 %v1967, 0.0
        %v2030 = vmax.f32 %v1972, 0.0
        %v2031 = vmax.f32 %v1977, 0.0
        %v2032 = vmax.f32 %v1982, 0.0
        %v2033 = vmax.f32 %v1987, 0.0
        %v2034 = vmax.f32 %v1992, 0.0
        %v2035 = vmax.f32 %v1997, 0.0
        %v2036 = vmax.f32 %v2002, 0.0
        %v2037 = vmax.f32 %v2007, 0.0
        %v2038 = vmax.f32 %v2012, 0.0
        %v2039 = vmax.f32 %v2017, 0.0
        %v2040 = vmax.f32 %v2022, 0.0
        %v2041 = vld [vmem:[%s1 + $0x3d0] sm:$0xff]
        %v2042 = vld [vmem:[%s1 + $0x3d8] sm:$0xff]
        %v2043 = vld [vmem:[%s1 + $0x3e0] sm:$0xff]
        %v2044 = vld [vmem:[%s1 + $0x3e8] sm:$0xff]
        %v2045 = vld [vmem:[%s3 + $0x6] sm:$0x1]
        %v2047 = vlaneseq
        %v2048 = vshrl.u32 %v2047, 7
        %v2049 = vsub.s32 0, %v2048
        %v2050 = vrot.slane %v2045, %v2049
        %v2053 = vsel %vm1057, %v2025, 0
        %v2056 = vsel %vm1057, %v2026, 0
        %v2059 = vsel %vm1057, %v2027, 0
        %v2062 = vsel %vm1057, %v2028, 0
        %v2065 = vsel %vm1057, %v2029, 0
        %v2068 = vsel %vm1057, %v2030, 0
        %v2071 = vsel %vm1057, %v2031, 0
        %v2074 = vsel %vm1057, %v2032, 0
        %v2077 = vsel %vm1057, %v2033, 0
        %v2080 = vsel %vm1057, %v2034, 0
        %v2083 = vsel %vm1057, %v2035, 0
        %v2086 = vsel %vm1057, %v2036, 0
        %v2089 = vsel %vm1057, %v2037, 0
        %v2092 = vsel %vm1057, %v2038, 0
        %v2095 = vsel %vm1057, %v2039, 0
        %v2098 = vsel %vm1057, %v2040, 0
        %2100 = vmatprep.subr.mxu0 0.0
        %2101 = vmatpush1.msra.mxu0 %v2041
        %2102 = vmatprep.subr.mxu0 0.0
        %2103 = vmatpush1.msra.mxu0 %v2042
        %2104 = vmatprep.subr.mxu0 0.0
        %2105 = vmatpush1.msra.mxu0 %v2043
        %2106 = vmatprep.subr.mxu0 0.0
        %2107 = vmatpush1.msra.mxu0 %v2044
        %2108 = vmatprep.subr.mxu0 0.0
        %2109 = vmatpush1.msra.mxu0 0.0
        %2110 = vmatprep.subr.mxu0 0.0
        %2111 = vmatpush1.msra.mxu0 0.0
        %2112 = vmatprep.subr.mxu0 0.0
        %2113 = vmatpush1.msra.mxu0 0.0
        %2114 = vmatprep.subr.mxu0 0.0
        %2115 = vmatpush1.msra.mxu0 0.0
        %2116 = vmatprep.subr.mxu0 0.0
        %2117 = vmatpush1.msra.mxu0 0.0
        %2118 = vmatprep.subr.mxu0 0.0
        %2119 = vmatpush1.msra.mxu0 0.0
        %2120 = vmatprep.subr.mxu0 0.0
        %2121 = vmatpush1.msra.mxu0 0.0
        %2122 = vmatprep.subr.mxu0 0.0
        %2123 = vmatpush1.msra.mxu0 0.0
        %2124 = vmatprep.subr.mxu0 0.0
        %2125 = vmatpush1.msra.mxu0 0.0
        %2126 = vmatprep.subr.mxu0 0.0
        %2127 = vmatpush1.msra.mxu0 0.0
        %2128 = vmatprep.subr.mxu0 0.0
        %2129 = vmatpush1.msra.mxu0 0.0
        %2130 = vmatprep.subr.mxu0 0.0
        %2131 = vmatpush1.msra.mxu0 0.0
        %2132 = vmatprep.subr.mxu0 0.0
        %2133 = vmatpush1.msra.mxu0 0.0
        %2134 = vmatprep.subr.mxu0 0.0
        %2135 = vmatpush1.msra.mxu0 0.0
        %2136 = vmatprep.subr.mxu0 0.0
        %2137 = vmatpush1.msra.mxu0 0.0
        %2138 = vmatprep.subr.mxu0 0.0
        %2139 = vmatpush1.msra.mxu0 0.0
        %2140 = vmatprep.subr.mxu0 0.0
        %2141 = vmatpush1.msra.mxu0 0.0
        %2142 = vmatprep.subr.mxu0 0.0
        %2143 = vmatpush1.msra.mxu0 0.0
        %2144 = vmatprep.subr.mxu0 0.0
        %2145 = vmatpush1.msra.mxu0 0.0
        %2146 = vmatprep.subr.mxu0 0.0
        %2147 = vmatpush1.msra.mxu0 0.0
        %2148 = vmatprep.subr.mxu0 0.0
        %2149 = vmatpush1.msra.mxu0 0.0
        %2150 = vmatprep.subr.mxu0 0.0
        %2151 = vmatpush1.msra.mxu0 0.0
        %2152 = vmatprep.subr.mxu0 0.0
        %2153 = vmatpush1.msra.mxu0 0.0
        %2154 = vmatprep.subr.mxu0 0.0
        %2155 = vmatpush1.msra.mxu0 0.0
        %2156 = vmatprep.subr.mxu0 0.0
        %2157 = vmatpush1.msra.mxu0 0.0
        %2158 = vmatprep.subr.mxu0 0.0
        %2159 = vmatpush1.msra.mxu0 0.0
        %2160 = vmatprep.subr.mxu0 0.0
        %2161 = vmatpush1.msra.mxu0 0.0
        %2162 = vmatprep.subr.mxu0 0.0
        %2163 = vmatpush1.msra.mxu0 0.0
        %2164 = vmatprep.mubr.f32.mxu0 0.0
        %2165 = vmatmul.mubr.f32.gmra.mrb[0].mxu0 %v2053
        %v2166 = vpop.f32.mrb[0].mxu0
        %v2167 = vadd.f32 %v2050, %v2166
        %v2168 = vpop.f32.mrb[0].mxu0
        %2169 = vmatprep.mubr.f32.mxu0 0.0
        %2170 = vmatmul.mubr.f32.gmra.mrb[0].mxu0 %v2056
        %v2171 = vpop.f32.mrb[0].mxu0
        %v2172 = vadd.f32 %v2050, %v2171
        %v2173 = vpop.f32.mrb[0].mxu0
        %2174 = vmatprep.mubr.f32.mxu0 0.0
        %2175 = vmatmul.mubr.f32.gmra.mrb[0].mxu0 %v2059
        %v2176 = vpop.f32.mrb[0].mxu0
        %v2177 = vadd.f32 %v2050, %v2176
        %v2178 = vpop.f32.mrb[0].mxu0
        %2179 = vmatprep.mubr.f32.mxu0 0.0
        %2180 = vmatmul.mubr.f32.gmra.mrb[0].mxu0 %v2062
        %v2181 = vpop.f32.mrb[0].mxu0
        %v2182 = vadd.f32 %v2050, %v2181
        %v2183 = vpop.f32.mrb[0].mxu0
        %2184 = vmatprep.mubr.f32.mxu0 0.0
        %2185 = vmatmul.mubr.f32.gmra.mrb[0].mxu0 %v2065
        %v2186 = vpop.f32.mrb[0].mxu0
        %v2187 = vadd.f32 %v2050, %v2186
        %v2188 = vpop.f32.mrb[0].mxu0
        %2189 = vmatprep.mubr.f32.mxu0 0.0
        %2190 = vmatmul.mubr.f32.gmra.mrb[0].mxu0 %v2068
        %v2191 = vpop.f32.mrb[0].mxu0
        %v2192 = vadd.f32 %v2050, %v2191
        %v2193 = vpop.f32.mrb[0].mxu0
        %2194 = vmatprep.mubr.f32.mxu0 0.0
        %2195 = vmatmul.mubr.f32.gmra.mrb[0].mxu0 %v2071
        %v2196 = vpop.f32.mrb[0].mxu0
        %v2197 = vadd.f32 %v2050, %v2196
        %v2198 = vpop.f32.mrb[0].mxu0
        %2199 = vmatprep.mubr.f32.mxu0 0.0
        %2200 = vmatmul.mubr.f32.gmra.mrb[0].mxu0 %v2074
        %v2201 = vpop.f32.mrb[0].mxu0
        %v2202 = vadd.f32 %v2050, %v2201
        %v2203 = vpop.f32.mrb[0].mxu0
        %2204 = vmatprep.mubr.f32.mxu0 0.0
        %2205 = vmatmul.mubr.f32.gmra.mrb[0].mxu0 %v2077
        %v2206 = vpop.f32.mrb[0].mxu0
        %v2207 = vadd.f32 %v2050, %v2206
        %v2208 = vpop.f32.mrb[0].mxu0
        %2209 = vmatprep.mubr.f32.mxu0 0.0
        %2210 = vmatmul.mubr.f32.gmra.mrb[0].mxu0 %v2080
        %v2211 = vpop.f32.mrb[0].mxu0
        %v2212 = vadd.f32 %v2050, %v2211
        %v2213 = vpop.f32.mrb[0].mxu0
        %2214 = vmatprep.mubr.f32.mxu0 0.0
        %2215 = vmatmul.mubr.f32.gmra.mrb[0].mxu0 %v2083
        %v2216 = vpop.f32.mrb[0].mxu0
        %v2217 = vadd.f32 %v2050, %v2216
        %v2218 = vpop.f32.mrb[0].mxu0
        %2219 = vmatprep.mubr.f32.mxu0 0.0
        %2220 = vmatmul.mubr.f32.gmra.mrb[0].mxu0 %v2086
        %v2221 = vpop.f32.mrb[0].mxu0
        %v2222 = vadd.f32 %v2050, %v2221
        %v2223 = vpop.f32.mrb[0].mxu0
        %2224 = vmatprep.mubr.f32.mxu0 0.0
        %2225 = vmatmul.mubr.f32.gmra.mrb[0].mxu0 %v2089
        %v2226 = vpop.f32.mrb[0].mxu0
        %v2227 = vadd.f32 %v2050, %v2226
        %v2228 = vpop.f32.mrb[0].mxu0
        %2229 = vmatprep.mubr.f32.mxu0 0.0
        %2230 = vmatmul.mubr.f32.gmra.mrb[0].mxu0 %v2092
        %v2231 = vpop.f32.mrb[0].mxu0
        %v2232 = vadd.f32 %v2050, %v2231
        %v2233 = vpop.f32.mrb[0].mxu0
        %2234 = vmatprep.mubr.f32.mxu0 0.0
        %2235 = vmatmul.mubr.f32.gmra.mrb[0].mxu0 %v2095
        %v2236 = vpop.f32.mrb[0].mxu0
        %v2237 = vadd.f32 %v2050, %v2236
        %v2238 = vpop.f32.mrb[0].mxu0
        %2239 = vmatprep.mubr.f32.mxu0 0.0
        %2240 = vmatmul.mubr.f32.gmra.mrb[0].mxu0 %v2098
        %v2241 = vpop.f32.mrb[0].mxu0
        %v2242 = vadd.f32 %v2050, %v2241
        %v2243 = vpop.f32.mrb[0].mxu0
        %2244 = vdwg.mxu0
        %v2245 = vmax.f32 %v2167, 0.0
        %v2246 = vmax.f32 %v2172, 0.0
        %v2247 = vmax.f32 %v2177, 0.0
        %v2248 = vmax.f32 %v2182, 0.0
        %v2249 = vmax.f32 %v2187, 0.0
        %v2250 = vmax.f32 %v2192, 0.0
        %v2251 = vmax.f32 %v2197, 0.0
        %v2252 = vmax.f32 %v2202, 0.0
        %v2253 = vmax.f32 %v2207, 0.0
        %v2254 = vmax.f32 %v2212, 0.0
        %v2255 = vmax.f32 %v2217, 0.0
        %v2256 = vmax.f32 %v2222, 0.0
        %v2257 = vmax.f32 %v2227, 0.0
        %v2258 = vmax.f32 %v2232, 0.0
        %v2259 = vmax.f32 %v2237, 0.0
        %v2260 = vmax.f32 %v2242, 0.0
        %v2261 = vld [vmem:[%s2] sm:$0xff]
        %v2262 = vld [vmem:[%s2 + $0x8] sm:$0xff]
        %v2263 = vld [vmem:[%s2 + $0x10] sm:$0xff]
        %v2264 = vld [vmem:[%s2 + $0x18] sm:$0xff]
        %v2265 = vld [vmem:[%s2 + $0x20] sm:$0xff]
        %v2266 = vld [vmem:[%s2 + $0x28] sm:$0xff]
        %v2267 = vld [vmem:[%s2 + $0x30] sm:$0xff]
        %v2268 = vld [vmem:[%s2 + $0x38] sm:$0xff]
        %v2269 = vld [vmem:[%s2 + $0x40] sm:$0xff]
        %v2270 = vld [vmem:[%s2 + $0x48] sm:$0xff]
        %v2271 = vld [vmem:[%s2 + $0x50] sm:$0xff]
        %v2272 = vld [vmem:[%s2 + $0x58] sm:$0xff]
        %v2273 = vld [vmem:[%s2 + $0x60] sm:$0xff]
        %v2274 = vld [vmem:[%s2 + $0x68] sm:$0xff]
        %v2275 = vld [vmem:[%s2 + $0x70] sm:$0xff]
        %v2276 = vld [vmem:[%s2 + $0x78] sm:$0xff]
        %v2277 = vld [vmem:[%s2 + $0x80] sm:$0xff]
        %v2278 = vld [vmem:[%s2 + $0x88] sm:$0xff]
        %v2279 = vld [vmem:[%s2 + $0x90] sm:$0xff]
        %v2280 = vld [vmem:[%s2 + $0x98] sm:$0xff]
        %v2281 = vld [vmem:[%s2 + $0xa0] sm:$0xff]
        %v2282 = vld [vmem:[%s2 + $0xa8] sm:$0xff]
        %v2283 = vld [vmem:[%s2 + $0xb0] sm:$0xff]
        %v2284 = vld [vmem:[%s2 + $0xb8] sm:$0xff]
        %v2285 = vld [vmem:[%s2 + $0xc0] sm:$0xff]
        %v2286 = vld [vmem:[%s2 + $0xc8] sm:$0xff]
        %v2287 = vld [vmem:[%s2 + $0xd0] sm:$0xff]
        %v2288 = vld [vmem:[%s2 + $0xd8] sm:$0xff]
        %v2289 = vld [vmem:[%s3 + $0x7] sm:$0xff]
        %v2291 = vlaneseq
        %v2292 = vshrl.u32 %v2291, 7
        %v2293 = vsub.s32 0, %v2292
        %v2294 = vrot.slane %v2289, %v2293
        %v2295 = vlaneseq
        %v2296 = vshrl.u32 %v2295, 7
        %v2297 = vsub.s32 1, %v2296
        %v2298 = vrot.slane %v2289, %v2297
        %v2299 = vlaneseq
        %v2300 = vshrl.u32 %v2299, 7
        %v2301 = vsub.s32 2, %v2300
        %v2302 = vrot.slane %v2289, %v2301
        %v2303 = vlaneseq
        %v2304 = vshrl.u32 %v2303, 7
        %v2305 = vsub.s32 3, %v2304
        %v2306 = vrot.slane %v2289, %v2305
        %v2307 = vlaneseq
        %v2308 = vshrl.u32 %v2307, 7
        %v2309 = vsub.s32 4, %v2308
        %v2310 = vrot.slane %v2289, %v2309
        %v2311 = vlaneseq
        %v2312 = vshrl.u32 %v2311, 7
        %v2313 = vsub.s32 5, %v2312
        %v2314 = vrot.slane %v2289, %v2313
        %v2315 = vlaneseq
        %v2316 = vshrl.u32 %v2315, 7
        %v2317 = vsub.s32 6, %v2316
        %v2318 = vrot.slane %v2289, %v2317
        %v2327 = vsel %vm1057, %v2245, 0
        %v2330 = vsel %vm1057, %v2246, 0
        %v2333 = vsel %vm1057, %v2247, 0
        %v2336 = vsel %vm1057, %v2248, 0
        %v2339 = vsel %vm1057, %v2249, 0
        %v2342 = vsel %vm1057, %v2250, 0
        %v2345 = vsel %vm1057, %v2251, 0
        %v2348 = vsel %vm1057, %v2252, 0
        %v2351 = vsel %vm1057, %v2253, 0
        %v2354 = vsel %vm1057, %v2254, 0
        %v2357 = vsel %vm1057, %v2255, 0
        %v2360 = vsel %vm1057, %v2256, 0
        %v2363 = vsel %vm1057, %v2257, 0
        %v2366 = vsel %vm1057, %v2258, 0
        %v2369 = vsel %vm1057, %v2259, 0
        %v2372 = vsel %vm1057, %v2260, 0
        %2374 = vmatprep.subr.mxu0 %v2262
        %2375 = vmatpush1.msra.mxu0 %v2261
        %2376 = vmatprep.subr.mxu0 %v2269
        %2377 = vmatpush1.msra.mxu0 %v2268
        %2378 = vmatprep.subr.mxu0 %v2276
        %2379 = vmatpush1.msra.mxu0 %v2275
        %2380 = vmatprep.subr.mxu0 %v2283
        %2381 = vmatpush1.msra.mxu0 %v2282
        %2382 = vmatprep.subr.mxu0 0.0
        %2383 = vmatpush1.msra.mxu0 0.0
        %2384 = vmatprep.subr.mxu0 0.0
        %2385 = vmatpush1.msra.mxu0 0.0
        %2386 = vmatprep.subr.mxu0 0.0
        %2387 = vmatpush1.msra.mxu0 0.0
        %2388 = vmatprep.subr.mxu0 0.0
        %2389 = vmatpush1.msra.mxu0 0.0
        %2390 = vmatprep.subr.mxu0 0.0
        %2391 = vmatpush1.msra.mxu0 0.0
        %2392 = vmatprep.subr.mxu0 0.0
        %2393 = vmatpush1.msra.mxu0 0.0
        %2394 = vmatprep.subr.mxu0 0.0
        %2395 = vmatpush1.msra.mxu0 0.0
        %2396 = vmatprep.subr.mxu0 0.0
        %2397 = vmatpush1.msra.mxu0 0.0
        %2398 = vmatprep.subr.mxu0 0.0
        %2399 = vmatpush1.msra.mxu0 0.0
        %2400 = vmatprep.subr.mxu0 0.0
        %2401 = vmatpush1.msra.mxu0 0.0
        %2402 = vmatprep.subr.mxu0 0.0
        %2403 = vmatpush1.msra.mxu0 0.0
        %2404 = vmatprep.subr.mxu0 0.0
        %2405 = vmatpush1.msra.mxu0 0.0
        %2406 = vmatprep.subr.mxu0 0.0
        %2407 = vmatpush1.msra.mxu0 0.0
        %2408 = vmatprep.subr.mxu0 0.0
        %2409 = vmatpush1.msra.mxu0 0.0
        %2410 = vmatprep.subr.mxu0 0.0
        %2411 = vmatpush1.msra.mxu0 0.0
        %2412 = vmatprep.subr.mxu0 0.0
        %2413 = vmatpush1.msra.mxu0 0.0
        %2414 = vmatprep.subr.mxu0 0.0
        %2415 = vmatpush1.msra.mxu0 0.0
        %2416 = vmatprep.subr.mxu0 0.0
        %2417 = vmatpush1.msra.mxu0 0.0
        %2418 = vmatprep.subr.mxu0 0.0
        %2419 = vmatpush1.msra.mxu0 0.0
        %2420 = vmatprep.subr.mxu0 0.0
        %2421 = vmatpush1.msra.mxu0 0.0
        %2422 = vmatprep.subr.mxu0 0.0
        %2423 = vmatpush1.msra.mxu0 0.0
        %2424 = vmatprep.subr.mxu0 0.0
        %2425 = vmatpush1.msra.mxu0 0.0
        %2426 = vmatprep.subr.mxu0 0.0
        %2427 = vmatpush1.msra.mxu0 0.0
        %2428 = vmatprep.subr.mxu0 0.0
        %2429 = vmatpush1.msra.mxu0 0.0
        %2430 = vmatprep.subr.mxu0 0.0
        %2431 = vmatpush1.msra.mxu0 0.0
        %2432 = vmatprep.subr.mxu0 0.0
        %2433 = vmatpush1.msra.mxu0 0.0
        %2434 = vmatprep.subr.mxu0 0.0
        %2435 = vmatpush1.msra.mxu0 0.0
        %2436 = vmatprep.subr.mxu0 0.0
        %2437 = vmatpush1.msra.mxu0 0.0
        %2438 = vmatprep.mubr.f32.mxu0 0.0
        %2439 = vmatmul.mubr.f32.gmra.mrb[0].mxu0 %v2327
        %v2440 = vpop.f32.mrb[0].mxu0
        %v2441 = vadd.f32 %v2294, %v2440
        %v2442 = vpop.f32.mrb[0].mxu0
        %v2443 = vadd.f32 %v2298, %v2442
        %2444 = vmatprep.mubr.f32.mxu0 0.0
        %2445 = vmatmul.mubr.f32.gmra.mrb[0].mxu0 %v2330
        %v2446 = vpop.f32.mrb[0].mxu0
        %v2447 = vadd.f32 %v2294, %v2446
        %v2448 = vpop.f32.mrb[0].mxu0
        %v2449 = vadd.f32 %v2298, %v2448
        %2450 = vmatprep.mubr.f32.mxu0 0.0
        %2451 = vmatmul.mubr.f32.gmra.mrb[0].mxu0 %v2333
        %v2452 = vpop.f32.mrb[0].mxu0
        %v2453 = vadd.f32 %v2294, %v2452
        %v2454 = vpop.f32.mrb[0].mxu0
        %v2455 = vadd.f32 %v2298, %v2454
        %2456 = vmatprep.mubr.f32.mxu0 0.0
        %2457 = vmatmul.mubr.f32.gmra.mrb[0].mxu0 %v2336
        %v2458 = vpop.f32.mrb[0].mxu0
        %v2459 = vadd.f32 %v2294, %v2458
        %v2460 = vpop.f32.mrb[0].mxu0
        %v2461 = vadd.f32 %v2298, %v2460
        %2462 = vmatprep.mubr.f32.mxu0 0.0
        %2463 = vmatmul.mubr.f32.gmra.mrb[0].mxu0 %v2339
        %v2464 = vpop.f32.mrb[0].mxu0
        %v2465 = vadd.f32 %v2294, %v2464
        %v2466 = vpop.f32.mrb[0].mxu0
        %v2467 = vadd.f32 %v2298, %v2466
        %2468 = vmatprep.mubr.f32.mxu0 0.0
        %2469 = vmatmul.mubr.f32.gmra.mrb[0].mxu0 %v2342
        %v2470 = vpop.f32.mrb[0].mxu0
        %v2471 = vadd.f32 %v2294, %v2470
        %v2472 = vpop.f32.mrb[0].mxu0
        %v2473 = vadd.f32 %v2298, %v2472
        %2474 = vmatprep.mubr.f32.mxu0 0.0
        %2475 = vmatmul.mubr.f32.gmra.mrb[0].mxu0 %v2345
        %v2476 = vpop.f32.mrb[0].mxu0
        %v2477 = vadd.f32 %v2294, %v2476
        %v2478 = vpop.f32.mrb[0].mxu0
        %v2479 = vadd.f32 %v2298, %v2478
        %2480 = vmatprep.mubr.f32.mxu0 0.0
        %2481 = vmatmul.mubr.f32.gmra.mrb[0].mxu0 %v2348
        %v2482 = vpop.f32.mrb[0].mxu0
        %v2483 = vadd.f32 %v2294, %v2482
        %v2484 = vpop.f32.mrb[0].mxu0
        %v2485 = vadd.f32 %v2298, %v2484
        %2486 = vmatprep.mubr.f32.mxu0 0.0
        %2487 = vmatmul.mubr.f32.gmra.mrb[0].mxu0 %v2351
        %v2488 = vpop.f32.mrb[0].mxu0
        %v2489 = vadd.f32 %v2294, %v2488
        %v2490 = vpop.f32.mrb[0].mxu0
        %v2491 = vadd.f32 %v2298, %v2490
        %2492 = vmatprep.mubr.f32.mxu0 0.0
        %2493 = vmatmul.mubr.f32.gmra.mrb[0].mxu0 %v2354
        %v2494 = vpop.f32.mrb[0].mxu0
        %v2495 = vadd.f32 %v2294, %v2494
        %v2496 = vpop.f32.mrb[0].mxu0
        %v2497 = vadd.f32 %v2298, %v2496
        %2498 = vmatprep.mubr.f32.mxu0 0.0
        %2499 = vmatmul.mubr.f32.gmra.mrb[0].mxu0 %v2357
        %v2500 = vpop.f32.mrb[0].mxu0
        %v2501 = vadd.f32 %v2294, %v2500
        %v2502 = vpop.f32.mrb[0].mxu0
        %v2503 = vadd.f32 %v2298, %v2502
        %2504 = vmatprep.mubr.f32.mxu0 0.0
        %2505 = vmatmul.mubr.f32.gmra.mrb[0].mxu0 %v2360
        %v2506 = vpop.f32.mrb[0].mxu0
        %v2507 = vadd.f32 %v2294, %v2506
        %v2508 = vpop.f32.mrb[0].mxu0
        %v2509 = vadd.f32 %v2298, %v2508
        %2510 = vmatprep.mubr.f32.mxu0 0.0
        %2511 = vmatmul.mubr.f32.gmra.mrb[0].mxu0 %v2363
        %v2512 = vpop.f32.mrb[0].mxu0
        %v2513 = vadd.f32 %v2294, %v2512
        %v2514 = vpop.f32.mrb[0].mxu0
        %v2515 = vadd.f32 %v2298, %v2514
        %2516 = vmatprep.mubr.f32.mxu0 0.0
        %2517 = vmatmul.mubr.f32.gmra.mrb[0].mxu0 %v2366
        %v2518 = vpop.f32.mrb[0].mxu0
        %v2519 = vadd.f32 %v2294, %v2518
        %v2520 = vpop.f32.mrb[0].mxu0
        %v2521 = vadd.f32 %v2298, %v2520
        %2522 = vmatprep.mubr.f32.mxu0 0.0
        %2523 = vmatmul.mubr.f32.gmra.mrb[0].mxu0 %v2369
        %v2524 = vpop.f32.mrb[0].mxu0
        %v2525 = vadd.f32 %v2294, %v2524
        %v2526 = vpop.f32.mrb[0].mxu0
        %v2527 = vadd.f32 %v2298, %v2526
        %2528 = vmatprep.mubr.f32.mxu0 0.0
        %2529 = vmatmul.mubr.f32.gmra.mrb[0].mxu0 %v2372
        %v2530 = vpop.f32.mrb[0].mxu0
        %v2531 = vadd.f32 %v2294, %v2530
        %v2532 = vpop.f32.mrb[0].mxu0
        %v2533 = vadd.f32 %v2298, %v2532
        %2534 = vdwg.mxu0
        %2535 = vmatprep.subr.mxu0 %v2264
        %2536 = vmatpush1.msra.mxu0 %v2263
        %2537 = vmatprep.subr.mxu0 %v2271
        %2538 = vmatpush1.msra.mxu0 %v2270
        %2539 = vmatprep.subr.mxu0 %v2278
        %2540 = vmatpush1.msra.mxu0 %v2277
        %2541 = vmatprep.subr.mxu0 %v2285
        %2542 = vmatpush1.msra.mxu0 %v2284
        %2543 = vmatprep.subr.mxu0 0.0
        %2544 = vmatpush1.msra.mxu0 0.0
        %2545 = vmatprep.subr.mxu0 0.0
        %2546 = vmatpush1.msra.mxu0 0.0
        %2547 = vmatprep.subr.mxu0 0.0
        %2548 = vmatpush1.msra.mxu0 0.0
        %2549 = vmatprep.subr.mxu0 0.0
        %2550 = vmatpush1.msra.mxu0 0.0
        %2551 = vmatprep.subr.mxu0 0.0
        %2552 = vmatpush1.msra.mxu0 0.0
        %2553 = vmatprep.subr.mxu0 0.0
        %2554 = vmatpush1.msra.mxu0 0.0
        %2555 = vmatprep.subr.mxu0 0.0
        %2556 = vmatpush1.msra.mxu0 0.0
        %2557 = vmatprep.subr.mxu0 0.0
        %2558 = vmatpush1.msra.mxu0 0.0
        %2559 = vmatprep.subr.mxu0 0.0
        %2560 = vmatpush1.msra.mxu0 0.0
        %2561 = vmatprep.subr.mxu0 0.0
        %2562 = vmatpush1.msra.mxu0 0.0
        %2563 = vmatprep.subr.mxu0 0.0
        %2564 = vmatpush1.msra.mxu0 0.0
        %2565 = vmatprep.subr.mxu0 0.0
        %2566 = vmatpush1.msra.mxu0 0.0
        %2567 = vmatprep.subr.mxu0 0.0
        %2568 = vmatpush1.msra.mxu0 0.0
        %2569 = vmatprep.subr.mxu0 0.0
        %2570 = vmatpush1.msra.mxu0 0.0
        %2571 = vmatprep.subr.mxu0 0.0
        %2572 = vmatpush1.msra.mxu0 0.0
        %2573 = vmatprep.subr.mxu0 0.0
        %2574 = vmatpush1.msra.mxu0 0.0
        %2575 = vmatprep.subr.mxu0 0.0
        %2576 = vmatpush1.msra.mxu0 0.0
        %2577 = vmatprep.subr.mxu0 0.0
        %2578 = vmatpush1.msra.mxu0 0.0
        %2579 = vmatprep.subr.mxu0 0.0
        %2580 = vmatpush1.msra.mxu0 0.0
        %2581 = vmatprep.subr.mxu0 0.0
        %2582 = vmatpush1.msra.mxu0 0.0
        %2583 = vmatprep.subr.mxu0 0.0
        %2584 = vmatpush1.msra.mxu0 0.0
        %2585 = vmatprep.subr.mxu0 0.0
        %2586 = vmatpush1.msra.mxu0 0.0
        %2587 = vmatprep.subr.mxu0 0.0
        %2588 = vmatpush1.msra.mxu0 0.0
        %2589 = vmatprep.subr.mxu0 0.0
        %2590 = vmatpush1.msra.mxu0 0.0
        %2591 = vmatprep.subr.mxu0 0.0
        %2592 = vmatpush1.msra.mxu0 0.0
        %2593 = vmatprep.subr.mxu0 0.0
        %2594 = vmatpush1.msra.mxu0 0.0
        %2595 = vmatprep.subr.mxu0 0.0
        %2596 = vmatpush1.msra.mxu0 0.0
        %2597 = vmatprep.subr.mxu0 0.0
        %2598 = vmatpush1.msra.mxu0 0.0
        %2599 = vmatprep.mubr.f32.mxu0 0.0
        %2600 = vmatmul.mubr.f32.gmra.mrb[0].mxu0 %v2327
        %v2601 = vpop.f32.mrb[0].mxu0
        %v2602 = vadd.f32 %v2302, %v2601
        %v2603 = vpop.f32.mrb[0].mxu0
        %v2604 = vadd.f32 %v2306, %v2603
        %2605 = vmatprep.mubr.f32.mxu0 0.0
        %2606 = vmatmul.mubr.f32.gmra.mrb[0].mxu0 %v2330
        %v2607 = vpop.f32.mrb[0].mxu0
        %v2608 = vadd.f32 %v2302, %v2607
        %v2609 = vpop.f32.mrb[0].mxu0
        %v2610 = vadd.f32 %v2306, %v2609
        %2611 = vmatprep.mubr.f32.mxu0 0.0
        %2612 = vmatmul.mubr.f32.gmra.mrb[0].mxu0 %v2333
        %v2613 = vpop.f32.mrb[0].mxu0
        %v2614 = vadd.f32 %v2302, %v2613
        %v2615 = vpop.f32.mrb[0].mxu0
        %v2616 = vadd.f32 %v2306, %v2615
        %2617 = vmatprep.mubr.f32.mxu0 0.0
        %2618 = vmatmul.mubr.f32.gmra.mrb[0].mxu0 %v2336
        %v2619 = vpop.f32.mrb[0].mxu0
        %v2620 = vadd.f32 %v2302, %v2619
        %v2621 = vpop.f32.mrb[0].mxu0
        %v2622 = vadd.f32 %v2306, %v2621
        %2623 = vmatprep.mubr.f32.mxu0 0.0
        %2624 = vmatmul.mubr.f32.gmra.mrb[0].mxu0 %v2339
        %v2625 = vpop.f32.mrb[0].mxu0
        %v2626 = vadd.f32 %v2302, %v2625
        %v2627 = vpop.f32.mrb[0].mxu0
        %v2628 = vadd.f32 %v2306, %v2627
        %2629 = vmatprep.mubr.f32.mxu0 0.0
        %2630 = vmatmul.mubr.f32.gmra.mrb[0].mxu0 %v2342
        %v2631 = vpop.f32.mrb[0].mxu0
        %v2632 = vadd.f32 %v2302, %v2631
        %v2633 = vpop.f32.mrb[0].mxu0
        %v2634 = vadd.f32 %v2306, %v2633
        %2635 = vmatprep.mubr.f32.mxu0 0.0
        %2636 = vmatmul.mubr.f32.gmra.mrb[0].mxu0 %v2345
        %v2637 = vpop.f32.mrb[0].mxu0
        %v2638 = vadd.f32 %v2302, %v2637
        %v2639 = vpop.f32.mrb[0].mxu0
        %v2640 = vadd.f32 %v2306, %v2639
        %2641 = vmatprep.mubr.f32.mxu0 0.0
        %2642 = vmatmul.mubr.f32.gmra.mrb[0].mxu0 %v2348
        %v2643 = vpop.f32.mrb[0].mxu0
        %v2644 = vadd.f32 %v2302, %v2643
        %v2645 = vpop.f32.mrb[0].mxu0
        %v2646 = vadd.f32 %v2306, %v2645
        %2647 = vmatprep.mubr.f32.mxu0 0.0
        %2648 = vmatmul.mubr.f32.gmra.mrb[0].mxu0 %v2351
        %v2649 = vpop.f32.mrb[0].mxu0
        %v2650 = vadd.f32 %v2302, %v2649
        %v2651 = vpop.f32.mrb[0].mxu0
        %v2652 = vadd.f32 %v2306, %v2651
        %2653 = vmatprep.mubr.f32.mxu0 0.0
        %2654 = vmatmul.mubr.f32.gmra.mrb[0].mxu0 %v2354
        %v2655 = vpop.f32.mrb[0].mxu0
        %v2656 = vadd.f32 %v2302, %v2655
        %v2657 = vpop.f32.mrb[0].mxu0
        %v2658 = vadd.f32 %v2306, %v2657
        %2659 = vmatprep.mubr.f32.mxu0 0.0
        %2660 = vmatmul.mubr.f32.gmra.mrb[0].mxu0 %v2357
        %v2661 = vpop.f32.mrb[0].mxu0
        %v2662 = vadd.f32 %v2302, %v2661
        %v2663 = vpop.f32.mrb[0].mxu0
        %v2664 = vadd.f32 %v2306, %v2663
        %2665 = vmatprep.mubr.f32.mxu0 0.0
        %2666 = vmatmul.mubr.f32.gmra.mrb[0].mxu0 %v2360
        %v2667 = vpop.f32.mrb[0].mxu0
        %v2668 = vadd.f32 %v2302, %v2667
        %v2669 = vpop.f32.mrb[0].mxu0
        %v2670 = vadd.f32 %v2306, %v2669
        %2671 = vmatprep.mubr.f32.mxu0 0.0
        %2672 = vmatmul.mubr.f32.gmra.mrb[0].mxu0 %v2363
        %v2673 = vpop.f32.mrb[0].mxu0
        %v2674 = vadd.f32 %v2302, %v2673
        %v2675 = vpop.f32.mrb[0].mxu0
        %v2676 = vadd.f32 %v2306, %v2675
        %2677 = vmatprep.mubr.f32.mxu0 0.0
        %2678 = vmatmul.mubr.f32.gmra.mrb[0].mxu0 %v2366
        %v2679 = vpop.f32.mrb[0].mxu0
        %v2680 = vadd.f32 %v2302, %v2679
        %v2681 = vpop.f32.mrb[0].mxu0
        %v2682 = vadd.f32 %v2306, %v2681
        %2683 = vmatprep.mubr.f32.mxu0 0.0
        %2684 = vmatmul.mubr.f32.gmra.mrb[0].mxu0 %v2369
        %v2685 = vpop.f32.mrb[0].mxu0
        %v2686 = vadd.f32 %v2302, %v2685
        %v2687 = vpop.f32.mrb[0].mxu0
        %v2688 = vadd.f32 %v2306, %v2687
        %2689 = vmatprep.mubr.f32.mxu0 0.0
        %2690 = vmatmul.mubr.f32.gmra.mrb[0].mxu0 %v2372
        %v2691 = vpop.f32.mrb[0].mxu0
        %v2692 = vadd.f32 %v2302, %v2691
        %v2693 = vpop.f32.mrb[0].mxu0
        %v2694 = vadd.f32 %v2306, %v2693
        %2695 = vdwg.mxu0
        %2696 = vmatprep.subr.mxu0 %v2266
        %2697 = vmatpush1.msra.mxu0 %v2265
        %2698 = vmatprep.subr.mxu0 %v2273
        %2699 = vmatpush1.msra.mxu0 %v2272
        %2700 = vmatprep.subr.mxu0 %v2280
        %2701 = vmatpush1.msra.mxu0 %v2279
        %2702 = vmatprep.subr.mxu0 %v2287
        %2703 = vmatpush1.msra.mxu0 %v2286
        %2704 = vmatprep.subr.mxu0 0.0
        %2705 = vmatpush1.msra.mxu0 0.0
        %2706 = vmatprep.subr.mxu0 0.0
        %2707 = vmatpush1.msra.mxu0 0.0
        %2708 = vmatprep.subr.mxu0 0.0
        %2709 = vmatpush1.msra.mxu0 0.0
        %2710 = vmatprep.subr.mxu0 0.0
        %2711 = vmatpush1.msra.mxu0 0.0
        %2712 = vmatprep.subr.mxu0 0.0
        %2713 = vmatpush1.msra.mxu0 0.0
        %2714 = vmatprep.subr.mxu0 0.0
        %2715 = vmatpush1.msra.mxu0 0.0
        %2716 = vmatprep.subr.mxu0 0.0
        %2717 = vmatpush1.msra.mxu0 0.0
        %2718 = vmatprep.subr.mxu0 0.0
        %2719 = vmatpush1.msra.mxu0 0.0
        %2720 = vmatprep.subr.mxu0 0.0
        %2721 = vmatpush1.msra.mxu0 0.0
        %2722 = vmatprep.subr.mxu0 0.0
        %2723 = vmatpush1.msra.mxu0 0.0
        %2724 = vmatprep.subr.mxu0 0.0
        %2725 = vmatpush1.msra.mxu0 0.0
        %2726 = vmatprep.subr.mxu0 0.0
        %2727 = vmatpush1.msra.mxu0 0.0
        %2728 = vmatprep.subr.mxu0 0.0
        %2729 = vmatpush1.msra.mxu0 0.0
        %2730 = vmatprep.subr.mxu0 0.0
        %2731 = vmatpush1.msra.mxu0 0.0
        %2732 = vmatprep.subr.mxu0 0.0
        %2733 = vmatpush1.msra.mxu0 0.0
        %2734 = vmatprep.subr.mxu0 0.0
        %2735 = vmatpush1.msra.mxu0 0.0
        %2736 = vmatprep.subr.mxu0 0.0
        %2737 = vmatpush1.msra.mxu0 0.0
        %2738 = vmatprep.subr.mxu0 0.0
        %2739 = vmatpush1.msra.mxu0 0.0
        %2740 = vmatprep.subr.mxu0 0.0
        %2741 = vmatpush1.msra.mxu0 0.0
        %2742 = vmatprep.subr.mxu0 0.0
        %2743 = vmatpush1.msra.mxu0 0.0
        %2744 = vmatprep.subr.mxu0 0.0
        %2745 = vmatpush1.msra.mxu0 0.0
        %2746 = vmatprep.subr.mxu0 0.0
        %2747 = vmatpush1.msra.mxu0 0.0
        %2748 = vmatprep.subr.mxu0 0.0
        %2749 = vmatpush1.msra.mxu0 0.0
        %2750 = vmatprep.subr.mxu0 0.0
        %2751 = vmatpush1.msra.mxu0 0.0
        %2752 = vmatprep.subr.mxu0 0.0
        %2753 = vmatpush1.msra.mxu0 0.0
        %2754 = vmatprep.subr.mxu0 0.0
        %2755 = vmatpush1.msra.mxu0 0.0
        %2756 = vmatprep.subr.mxu0 0.0
        %2757 = vmatpush1.msra.mxu0 0.0
        %2758 = vmatprep.subr.mxu0 0.0
        %2759 = vmatpush1.msra.mxu0 0.0
        %2760 = vmatprep.mubr.f32.mxu0 0.0
        %2761 = vmatmul.mubr.f32.gmra.mrb[0].mxu0 %v2327
        %v2762 = vpop.f32.mrb[0].mxu0
        %v2763 = vadd.f32 %v2310, %v2762
        %v2764 = vpop.f32.mrb[0].mxu0
        %v2765 = vadd.f32 %v2314, %v2764
        %2766 = vmatprep.mubr.f32.mxu0 0.0
        %2767 = vmatmul.mubr.f32.gmra.mrb[0].mxu0 %v2330
        %v2768 = vpop.f32.mrb[0].mxu0
        %v2769 = vadd.f32 %v2310, %v2768
        %v2770 = vpop.f32.mrb[0].mxu0
        %v2771 = vadd.f32 %v2314, %v2770
        %2772 = vmatprep.mubr.f32.mxu0 0.0
        %2773 = vmatmul.mubr.f32.gmra.mrb[0].mxu0 %v2333
        %v2774 = vpop.f32.mrb[0].mxu0
        %v2775 = vadd.f32 %v2310, %v2774
        %v2776 = vpop.f32.mrb[0].mxu0
        %v2777 = vadd.f32 %v2314, %v2776
        %2778 = vmatprep.mubr.f32.mxu0 0.0
        %2779 = vmatmul.mubr.f32.gmra.mrb[0].mxu0 %v2336
        %v2780 = vpop.f32.mrb[0].mxu0
        %v2781 = vadd.f32 %v2310, %v2780
        %v2782 = vpop.f32.mrb[0].mxu0
        %v2783 = vadd.f32 %v2314, %v2782
        %2784 = vmatprep.mubr.f32.mxu0 0.0
        %2785 = vmatmul.mubr.f32.gmra.mrb[0].mxu0 %v2339
        %v2786 = vpop.f32.mrb[0].mxu0
        %v2787 = vadd.f32 %v2310, %v2786
        %v2788 = vpop.f32.mrb[0].mxu0
        %v2789 = vadd.f32 %v2314, %v2788
        %2790 = vmatprep.mubr.f32.mxu0 0.0
        %2791 = vmatmul.mubr.f32.gmra.mrb[0].mxu0 %v2342
        %v2792 = vpop.f32.mrb[0].mxu0
        %v2793 = vadd.f32 %v2310, %v2792
        %v2794 = vpop.f32.mrb[0].mxu0
        %v2795 = vadd.f32 %v2314, %v2794
        %2796 = vmatprep.mubr.f32.mxu0 0.0
        %2797 = vmatmul.mubr.f32.gmra.mrb[0].mxu0 %v2345
        %v2798 = vpop.f32.mrb[0].mxu0
        %v2799 = vadd.f32 %v2310, %v2798
        %v2800 = vpop.f32.mrb[0].mxu0
        %v2801 = vadd.f32 %v2314, %v2800
        %2802 = vmatprep.mubr.f32.mxu0 0.0
        %2803 = vmatmul.mubr.f32.gmra.mrb[0].mxu0 %v2348
        %v2804 = vpop.f32.mrb[0].mxu0
        %v2805 = vadd.f32 %v2310, %v2804
        %v2806 = vpop.f32.mrb[0].mxu0
        %v2807 = vadd.f32 %v2314, %v2806
        %2808 = vmatprep.mubr.f32.mxu0 0.0
        %2809 = vmatmul.mubr.f32.gmra.mrb[0].mxu0 %v2351
        %v2810 = vpop.f32.mrb[0].mxu0
        %v2811 = vadd.f32 %v2310, %v2810
        %v2812 = vpop.f32.mrb[0].mxu0
        %v2813 = vadd.f32 %v2314, %v2812
        %2814 = vmatprep.mubr.f32.mxu0 0.0
        %2815 = vmatmul.mubr.f32.gmra.mrb[0].mxu0 %v2354
        %v2816 = vpop.f32.mrb[0].mxu0
        %v2817 = vadd.f32 %v2310, %v2816
        %v2818 = vpop.f32.mrb[0].mxu0
        %v2819 = vadd.f32 %v2314, %v2818
        %2820 = vmatprep.mubr.f32.mxu0 0.0
        %2821 = vmatmul.mubr.f32.gmra.mrb[0].mxu0 %v2357
        %v2822 = vpop.f32.mrb[0].mxu0
        %v2823 = vadd.f32 %v2310, %v2822
        %v2824 = vpop.f32.mrb[0].mxu0
        %v2825 = vadd.f32 %v2314, %v2824
        %2826 = vmatprep.mubr.f32.mxu0 0.0
        %2827 = vmatmul.mubr.f32.gmra.mrb[0].mxu0 %v2360
        %v2828 = vpop.f32.mrb[0].mxu0
        %v2829 = vadd.f32 %v2310, %v2828
        %v2830 = vpop.f32.mrb[0].mxu0
        %v2831 = vadd.f32 %v2314, %v2830
        %2832 = vmatprep.mubr.f32.mxu0 0.0
        %2833 = vmatmul.mubr.f32.gmra.mrb[0].mxu0 %v2363
        %v2834 = vpop.f32.mrb[0].mxu0
        %v2835 = vadd.f32 %v2310, %v2834
        %v2836 = vpop.f32.mrb[0].mxu0
        %v2837 = vadd.f32 %v2314, %v2836
        %2838 = vmatprep.mubr.f32.mxu0 0.0
        %2839 = vmatmul.mubr.f32.gmra.mrb[0].mxu0 %v2366
        %v2840 = vpop.f32.mrb[0].mxu0
        %v2841 = vadd.f32 %v2310, %v2840
        %v2842 = vpop.f32.mrb[0].mxu0
        %v2843 = vadd.f32 %v2314, %v2842
        %2844 = vmatprep.mubr.f32.mxu0 0.0
        %2845 = vmatmul.mubr.f32.gmra.mrb[0].mxu0 %v2369
        %v2846 = vpop.f32.mrb[0].mxu0
        %v2847 = vadd.f32 %v2310, %v2846
        %v2848 = vpop.f32.mrb[0].mxu0
        %v2849 = vadd.f32 %v2314, %v2848
        %2850 = vmatprep.mubr.f32.mxu0 0.0
        %2851 = vmatmul.mubr.f32.gmra.mrb[0].mxu0 %v2372
        %v2852 = vpop.f32.mrb[0].mxu0
        %v2853 = vadd.f32 %v2310, %v2852
        %v2854 = vpop.f32.mrb[0].mxu0
        %v2855 = vadd.f32 %v2314, %v2854
        %2856 = vdwg.mxu0
        %2857 = vmatprep.subr.mxu0 0.0
        %2858 = vmatpush1.msra.mxu0 %v2267
        %2859 = vmatprep.subr.mxu0 0.0
        %2860 = vmatpush1.msra.mxu0 %v2274
        %2861 = vmatprep.subr.mxu0 0.0
        %2862 = vmatpush1.msra.mxu0 %v2281
        %2863 = vmatprep.subr.mxu0 0.0
        %2864 = vmatpush1.msra.mxu0 %v2288
        %2865 = vmatprep.subr.mxu0 0.0
        %2866 = vmatpush1.msra.mxu0 0.0
        %2867 = vmatprep.subr.mxu0 0.0
        %2868 = vmatpush1.msra.mxu0 0.0
        %2869 = vmatprep.subr.mxu0 0.0
        %2870 = vmatpush1.msra.mxu0 0.0
        %2871 = vmatprep.subr.mxu0 0.0
        %2872 = vmatpush1.msra.mxu0 0.0
        %2873 = vmatprep.subr.mxu0 0.0
        %2874 = vmatpush1.msra.mxu0 0.0
        %2875 = vmatprep.subr.mxu0 0.0
        %2876 = vmatpush1.msra.mxu0 0.0
        %2877 = vmatprep.subr.mxu0 0.0
        %2878 = vmatpush1.msra.mxu0 0.0
        %2879 = vmatprep.subr.mxu0 0.0
        %2880 = vmatpush1.msra.mxu0 0.0
        %2881 = vmatprep.subr.mxu0 0.0
        %2882 = vmatpush1.msra.mxu0 0.0
        %2883 = vmatprep.subr.mxu0 0.0
        %2884 = vmatpush1.msra.mxu0 0.0
        %2885 = vmatprep.subr.mxu0 0.0
        %2886 = vmatpush1.msra.mxu0 0.0
        %2887 = vmatprep.subr.mxu0 0.0
        %2888 = vmatpush1.msra.mxu0 0.0
        %2889 = vmatprep.subr.mxu0 0.0
        %2890 = vmatpush1.msra.mxu0 0.0
        %2891 = vmatprep.subr.mxu0 0.0
        %2892 = vmatpush1.msra.mxu0 0.0
        %2893 = vmatprep.subr.mxu0 0.0
        %2894 = vmatpush1.msra.mxu0 0.0
        %2895 = vmatprep.subr.mxu0 0.0
        %2896 = vmatpush1.msra.mxu0 0.0
        %2897 = vmatprep.subr.mxu0 0.0
        %2898 = vmatpush1.msra.mxu0 0.0
        %2899 = vmatprep.subr.mxu0 0.0
        %2900 = vmatpush1.msra.mxu0 0.0
        %2901 = vmatprep.subr.mxu0 0.0
        %2902 = vmatpush1.msra.mxu0 0.0
        %2903 = vmatprep.subr.mxu0 0.0
        %2904 = vmatpush1.msra.mxu0 0.0
        %2905 = vmatprep.subr.mxu0 0.0
        %2906 = vmatpush1.msra.mxu0 0.0
        %2907 = vmatprep.subr.mxu0 0.0
        %2908 = vmatpush1.msra.mxu0 0.0
        %2909 = vmatprep.subr.mxu0 0.0
        %2910 = vmatpush1.msra.mxu0 0.0
        %2911 = vmatprep.subr.mxu0 0.0
        %2912 = vmatpush1.msra.mxu0 0.0
        %2913 = vmatprep.subr.mxu0 0.0
        %2914 = vmatpush1.msra.mxu0 0.0
        %2915 = vmatprep.subr.mxu0 0.0
        %2916 = vmatpush1.msra.mxu0 0.0
        %2917 = vmatprep.subr.mxu0 0.0
        %2918 = vmatpush1.msra.mxu0 0.0
        %2919 = vmatprep.subr.mxu0 0.0
        %2920 = vmatpush1.msra.mxu0 0.0
        %2921 = vmatprep.mubr.f32.mxu0 0.0
        %2922 = vmatmul.mubr.f32.gmra.mrb[0].mxu0 %v2327
        %v2923 = vpop.f32.mrb[0].mxu0
        %v2924 = vadd.f32 %v2318, %v2923
        %v2925 = vpop.f32.mrb[0].mxu0
        %2926 = vmatprep.mubr.f32.mxu0 0.0
        %2927 = vmatmul.mubr.f32.gmra.mrb[0].mxu0 %v2330
        %v2928 = vpop.f32.mrb[0].mxu0
        %v2929 = vadd.f32 %v2318, %v2928
        %v2930 = vpop.f32.mrb[0].mxu0
        %2931 = vmatprep.mubr.f32.mxu0 0.0
        %2932 = vmatmul.mubr.f32.gmra.mrb[0].mxu0 %v2333
        %v2933 = vpop.f32.mrb[0].mxu0
        %v2934 = vadd.f32 %v2318, %v2933
        %v2935 = vpop.f32.mrb[0].mxu0
        %2936 = vmatprep.mubr.f32.mxu0 0.0
        %2937 = vmatmul.mubr.f32.gmra.mrb[0].mxu0 %v2336
        %v2938 = vpop.f32.mrb[0].mxu0
        %v2939 = vadd.f32 %v2318, %v2938
        %v2940 = vpop.f32.mrb[0].mxu0
        %2941 = vmatprep.mubr.f32.mxu0 0.0
        %2942 = vmatmul.mubr.f32.gmra.mrb[0].mxu0 %v2339
        %v2943 = vpop.f32.mrb[0].mxu0
        %v2944 = vadd.f32 %v2318, %v2943
        %v2945 = vpop.f32.mrb[0].mxu0
        %2946 = vmatprep.mubr.f32.mxu0 0.0
        %2947 = vmatmul.mubr.f32.gmra.mrb[0].mxu0 %v2342
        %v2948 = vpop.f32.mrb[0].mxu0
        %v2949 = vadd.f32 %v2318, %v2948
        %v2950 = vpop.f32.mrb[0].mxu0
        %2951 = vmatprep.mubr.f32.mxu0 0.0
        %2952 = vmatmul.mubr.f32.gmra.mrb[0].mxu0 %v2345
        %v2953 = vpop.f32.mrb[0].mxu0
        %v2954 = vadd.f32 %v2318, %v2953
        %v2955 = vpop.f32.mrb[0].mxu0
        %2956 = vmatprep.mubr.f32.mxu0 0.0
        %2957 = vmatmul.mubr.f32.gmra.mrb[0].mxu0 %v2348
        %v2958 = vpop.f32.mrb[0].mxu0
        %v2959 = vadd.f32 %v2318, %v2958
        %v2960 = vpop.f32.mrb[0].mxu0
        %2961 = vmatprep.mubr.f32.mxu0 0.0
        %2962 = vmatmul.mubr.f32.gmra.mrb[0].mxu0 %v2351
        %v2963 = vpop.f32.mrb[0].mxu0
        %v2964 = vadd.f32 %v2318, %v2963
        %v2965 = vpop.f32.mrb[0].mxu0
        %2966 = vmatprep.mubr.f32.mxu0 0.0
        %2967 = vmatmul.mubr.f32.gmra.mrb[0].mxu0 %v2354
        %v2968 = vpop.f32.mrb[0].mxu0
        %v2969 = vadd.f32 %v2318, %v2968
        %v2970 = vpop.f32.mrb[0].mxu0
        %2971 = vmatprep.mubr.f32.mxu0 0.0
        %2972 = vmatmul.mubr.f32.gmra.mrb[0].mxu0 %v2357
        %v2973 = vpop.f32.mrb[0].mxu0
        %v2974 = vadd.f32 %v2318, %v2973
        %v2975 = vpop.f32.mrb[0].mxu0
        %2976 = vmatprep.mubr.f32.mxu0 0.0
        %2977 = vmatmul.mubr.f32.gmra.mrb[0].mxu0 %v2360
        %v2978 = vpop.f32.mrb[0].mxu0
        %v2979 = vadd.f32 %v2318, %v2978
        %v2980 = vpop.f32.mrb[0].mxu0
        %2981 = vmatprep.mubr.f32.mxu0 0.0
        %2982 = vmatmul.mubr.f32.gmra.mrb[0].mxu0 %v2363
        %v2983 = vpop.f32.mrb[0].mxu0
        %v2984 = vadd.f32 %v2318, %v2983
        %v2985 = vpop.f32.mrb[0].mxu0
        %2986 = vmatprep.mubr.f32.mxu0 0.0
        %2987 = vmatmul.mubr.f32.gmra.mrb[0].mxu0 %v2366
        %v2988 = vpop.f32.mrb[0].mxu0
        %v2989 = vadd.f32 %v2318, %v2988
        %v2990 = vpop.f32.mrb[0].mxu0
        %2991 = vmatprep.mubr.f32.mxu0 0.0
        %2992 = vmatmul.mubr.f32.gmra.mrb[0].mxu0 %v2369
        %v2993 = vpop.f32.mrb[0].mxu0
        %v2994 = vadd.f32 %v2318, %v2993
        %v2995 = vpop.f32.mrb[0].mxu0
        %2996 = vmatprep.mubr.f32.mxu0 0.0
        %2997 = vmatmul.mubr.f32.gmra.mrb[0].mxu0 %v2372
        %v2998 = vpop.f32.mrb[0].mxu0
        %v2999 = vadd.f32 %v2318, %v2998
        %v3000 = vpop.f32.mrb[0].mxu0
        %3001 = vdwg.mxu0
        %v3002 = vmul.f32 %v2441, 0.5
        %v3003 = vmul.f32 %v2443, 0.5
        %v3004 = vmul.f32 %v2602, 0.5
        %v3005 = vmul.f32 %v2604, 0.5
        %v3006 = vmul.f32 %v2763, 0.5
        %v3007 = vmul.f32 %v2765, 0.5
        %v3008 = vmul.f32 %v2924, 0.5
        %v3009 = vmul.f32 %v2447, 0.5
        %v3010 = vmul.f32 %v2449, 0.5
        %v3011 = vmul.f32 %v2608, 0.5
        %v3012 = vmul.f32 %v2610, 0.5
        %v3013 = vmul.f32 %v2769, 0.5
        %v3014 = vmul.f32 %v2771, 0.5
        %v3015 = vmul.f32 %v2929, 0.5
        %v3016 = vmul.f32 %v2453, 0.5
        %v3017 = vmul.f32 %v2455, 0.5
        %v3018 = vmul.f32 %v2614, 0.5
        %v3019 = vmul.f32 %v2616, 0.5
        %v3020 = vmul.f32 %v2775, 0.5
        %v3021 = vmul.f32 %v2777, 0.5
        %v3022 = vmul.f32 %v2934, 0.5
        %v3023 = vmul.f32 %v2459, 0.5
        %v3024 = vmul.f32 %v2461, 0.5
        %v3025 = vmul.f32 %v2620, 0.5
        %v3026 = vmul.f32 %v2622, 0.5
        %v3027 = vmul.f32 %v2781, 0.5
        %v3028 = vmul.f32 %v2783, 0.5
        %v3029 = vmul.f32 %v2939, 0.5
        %v3030 = vmul.f32 %v2465, 0.5
        %v3031 = vmul.f32 %v2467, 0.5
        %v3032 = vmul.f32 %v2626, 0.5
        %v3033 = vmul.f32 %v2628, 0.5
        %v3034 = vmul.f32 %v2787, 0.5
        %v3035 = vmul.f32 %v2789, 0.5
        %v3036 = vmul.f32 %v2944, 0.5
        %v3037 = vmul.f32 %v2471, 0.5
        %v3038 = vmul.f32 %v2473, 0.5
        %v3039 = vmul.f32 %v2632, 0.5
        %v3040 = vmul.f32 %v2634, 0.5
        %v3041 = vmul.f32 %v2793, 0.5
        %v3042 = vmul.f32 %v2795, 0.5
        %v3043 = vmul.f32 %v2949, 0.5
        %v3044 = vmul.f32 %v2477, 0.5
        %v3045 = vmul.f32 %v2479, 0.5
        %v3046 = vmul.f32 %v2638, 0.5
        %v3047 = vmul.f32 %v2640, 0.5
        %v3048 = vmul.f32 %v2799, 0.5
        %v3049 = vmul.f32 %v2801, 0.5
        %v3050 = vmul.f32 %v2954, 0.5
        %v3051 = vmul.f32 %v2483, 0.5
        %v3052 = vmul.f32 %v2485, 0.5
        %v3053 = vmul.f32 %v2644, 0.5
        %v3054 = vmul.f32 %v2646, 0.5
        %v3055 = vmul.f32 %v2805, 0.5
        %v3056 = vmul.f32 %v2807, 0.5
        %v3057 = vmul.f32 %v2959, 0.5
        %v3058 = vmul.f32 %v2489, 0.5
        %v3059 = vmul.f32 %v2491, 0.5
        %v3060 = vmul.f32 %v2650, 0.5
        %v3061 = vmul.f32 %v2652, 0.5
        %v3062 = vmul.f32 %v2811, 0.5
        %v3063 = vmul.f32 %v2813, 0.5
        %v3064 = vmul.f32 %v2964, 0.5
        %v3065 = vmul.f32 %v2495, 0.5
        %v3066 = vmul.f32 %v2497, 0.5
        %v3067 = vmul.f32 %v2656, 0.5
        %v3068 = vmul.f32 %v2658, 0.5
        %v3069 = vmul.f32 %v2817, 0.5
        %v3070 = vmul.f32 %v2819, 0.5
        %v3071 = vmul.f32 %v2969, 0.5
        %v3072 = vmul.f32 %v2501, 0.5
        %v3073 = vmul.f32 %v2503, 0.5
        %v3074 = vmul.f32 %v2662, 0.5
        %v3075 = vmul.f32 %v2664, 0.5
        %v3076 = vmul.f32 %v2823, 0.5
        %v3077 = vmul.f32 %v2825, 0.5
        %v3078 = vmul.f32 %v2974, 0.5
        %v3079 = vmul.f32 %v2507, 0.5
        %v3080 = vmul.f32 %v2509, 0.5
        %v3081 = vmul.f32 %v2668, 0.5
        %v3082 = vmul.f32 %v2670, 0.5
        %v3083 = vmul.f32 %v2829, 0.5
        %v3084 = vmul.f32 %v2831, 0.5
        %v3085 = vmul.f32 %v2979, 0.5
        %v3086 = vmul.f32 %v2513, 0.5
        %v3087 = vmul.f32 %v2515, 0.5
        %v3088 = vmul.f32 %v2674, 0.5
        %v3089 = vmul.f32 %v2676, 0.5
        %v3090 = vmul.f32 %v2835, 0.5
        %v3091 = vmul.f32 %v2837, 0.5
        %v3092 = vmul.f32 %v2984, 0.5
        %v3093 = vmul.f32 %v2519, 0.5
        %v3094 = vmul.f32 %v2521, 0.5
        %v3095 = vmul.f32 %v2680, 0.5
        %v3096 = vmul.f32 %v2682, 0.5
        %v3097 = vmul.f32 %v2841, 0.5
        %v3098 = vmul.f32 %v2843, 0.5
        %v3099 = vmul.f32 %v2989, 0.5
        %v3100 = vmul.f32 %v2525, 0.5
        %v3101 = vmul.f32 %v2527, 0.5
        %v3102 = vmul.f32 %v2686, 0.5
        %v3103 = vmul.f32 %v2688, 0.5
        %v3104 = vmul.f32 %v2847, 0.5
        %v3105 = vmul.f32 %v2849, 0.5
        %v3106 = vmul.f32 %v2994, 0.5
        %v3107 = vmul.f32 %v2531, 0.5
        %v3108 = vmul.f32 %v2533, 0.5
        %v3109 = vmul.f32 %v2692, 0.5
        %v3110 = vmul.f32 %v2694, 0.5
        %v3111 = vmul.f32 %v2853, 0.5
        %v3112 = vmul.f32 %v2855, 0.5
        %v3113 = vmul.f32 %v2999, 0.5
        %v3114 = vtanh.pop %v3002
        %v3115 = vtanh.pop %v3003
        %v3116 = vtanh.pop %v3004
        %v3117 = vtanh.pop %v3005
        %v3118 = vtanh.pop %v3006
        %v3119 = vtanh.pop %v3007
        %v3120 = vtanh.pop %v3008
        %v3121 = vtanh.pop %v3009
        %v3122 = vtanh.pop %v3010
        %v3123 = vtanh.pop %v3011
        %v3124 = vtanh.pop %v3012
        %v3125 = vtanh.pop %v3013
        %v3126 = vtanh.pop %v3014
        %v3127 = vtanh.pop %v3015
        %v3128 = vtanh.pop %v3016
        %v3129 = vtanh.pop %v3017
        %v3130 = vtanh.pop %v3018
        %v3131 = vtanh.pop %v3019
        %v3132 = vtanh.pop %v3020
        %v3133 = vtanh.pop %v3021
        %v3134 = vtanh.pop %v3022
        %v3135 = vtanh.pop %v3023
        %v3136 = vtanh.pop %v3024
        %v3137 = vtanh.pop %v3025
        %v3138 = vtanh.pop %v3026
        %v3139 = vtanh.pop %v3027
        %v3140 = vtanh.pop %v3028
        %v3141 = vtanh.pop %v3029
        %v3142 = vtanh.pop %v3030
        %v3143 = vtanh.pop %v3031
        %v3144 = vtanh.pop %v3032
        %v3145 = vtanh.pop %v3033
        %v3146 = vtanh.pop %v3034
        %v3147 = vtanh.pop %v3035
        %v3148 = vtanh.pop %v3036
        %v3149 = vtanh.pop %v3037
        %v3150 = vtanh.pop %v3038
        %v3151 = vtanh.pop %v3039
        %v3152 = vtanh.pop %v3040
        %v3153 = vtanh.pop %v3041
        %v3154 = vtanh.pop %v3042
        %v3155 = vtanh.pop %v3043
        %v3156 = vtanh.pop %v3044
        %v3157 = vtanh.pop %v3045
        %v3158 = vtanh.pop %v3046
        %v3159 = vtanh.pop %v3047
        %v3160 = vtanh.pop %v3048
        %v3161 = vtanh.pop %v3049
        %v3162 = vtanh.pop %v3050
        %v3163 = vtanh.pop %v3051
        %v3164 = vtanh.pop %v3052
        %v3165 = vtanh.pop %v3053
        %v3166 = vtanh.pop %v3054
        %v3167 = vtanh.pop %v3055
        %v3168 = vtanh.pop %v3056
        %v3169 = vtanh.pop %v3057
        %v3170 = vtanh.pop %v3058
        %v3171 = vtanh.pop %v3059
        %v3172 = vtanh.pop %v3060
        %v3173 = vtanh.pop %v3061
        %v3174 = vtanh.pop %v3062
        %v3175 = vtanh.pop %v3063
        %v3176 = vtanh.pop %v3064
        %v3177 = vtanh.pop %v3065
        %v3178 = vtanh.pop %v3066
        %v3179 = vtanh.pop %v3067
        %v3180 = vtanh.pop %v3068
        %v3181 = vtanh.pop %v3069
        %v3182 = vtanh.pop %v3070
        %v3183 = vtanh.pop %v3071
        %v3184 = vtanh.pop %v3072
        %v3185 = vtanh.pop %v3073
        %v3186 = vtanh.pop %v3074
        %v3187 = vtanh.pop %v3075
        %v3188 = vtanh.pop %v3076
        %v3189 = vtanh.pop %v3077
        %v3190 = vtanh.pop %v3078
        %v3191 = vtanh.pop %v3079
        %v3192 = vtanh.pop %v3080
        %v3193 = vtanh.pop %v3081
        %v3194 = vtanh.pop %v3082
        %v3195 = vtanh.pop %v3083
        %v3196 = vtanh.pop %v3084
        %v3197 = vtanh.pop %v3085
        %v3198 = vtanh.pop %v3086
        %v3199 = vtanh.pop %v3087
        %v3200 = vtanh.pop %v3088
        %v3201 = vtanh.pop %v3089
        %v3202 = vtanh.pop %v3090
        %v3203 = vtanh.pop %v3091
        %v3204 = vtanh.pop %v3092
        %v3205 = vtanh.pop %v3093
        %v3206 = vtanh.pop %v3094
        %v3207 = vtanh.pop %v3095
        %v3208 = vtanh.pop %v3096
        %v3209 = vtanh.pop %v3097
        %v3210 = vtanh.pop %v3098
        %v3211 = vtanh.pop %v3099
        %v3212 = vtanh.pop %v3100
        %v3213 = vtanh.pop %v3101
        %v3214 = vtanh.pop %v3102
        %v3215 = vtanh.pop %v3103
        %v3216 = vtanh.pop %v3104
        %v3217 = vtanh.pop %v3105
        %v3218 = vtanh.pop %v3106
        %v3219 = vtanh.pop %v3107
        %v3220 = vtanh.pop %v3108
        %v3221 = vtanh.pop %v3109
        %v3222 = vtanh.pop %v3110
        %v3223 = vtanh.pop %v3111
        %v3224 = vtanh.pop %v3112
        %v3225 = vtanh.pop %v3113
        %v3226 = vadd.f32 %v3114, 1.0
        %v3227 = vadd.f32 %v3115, 1.0
        %v3228 = vadd.f32 %v3116, 1.0
        %v3229 = vadd.f32 %v3117, 1.0
        %v3230 = vadd.f32 %v3118, 1.0
        %v3231 = vadd.f32 %v3119, 1.0
        %v3232 = vadd.f32 %v3120, 1.0
        %v3233 = vadd.f32 %v3121, 1.0
        %v3234 = vadd.f32 %v3122, 1.0
        %v3235 = vadd.f32 %v3123, 1.0
        %v3236 = vadd.f32 %v3124, 1.0
        %v3237 = vadd.f32 %v3125, 1.0
        %v3238 = vadd.f32 %v3126, 1.0
        %v3239 = vadd.f32 %v3127, 1.0
        %v3240 = vadd.f32 %v3128, 1.0
        %v3241 = vadd.f32 %v3129, 1.0
        %v3242 = vadd.f32 %v3130, 1.0
        %v3243 = vadd.f32 %v3131, 1.0
        %v3244 = vadd.f32 %v3132, 1.0
        %v3245 = vadd.f32 %v3133, 1.0
        %v3246 = vadd.f32 %v3134, 1.0
        %v3247 = vadd.f32 %v3135, 1.0
        %v3248 = vadd.f32 %v3136, 1.0
        %v3249 = vadd.f32 %v3137, 1.0
        %v3250 = vadd.f32 %v3138, 1.0
        %v3251 = vadd.f32 %v3139, 1.0
        %v3252 = vadd.f32 %v3140, 1.0
        %v3253 = vadd.f32 %v3141, 1.0
        %v3254 = vadd.f32 %v3142, 1.0
        %v3255 = vadd.f32 %v3143, 1.0
        %v3256 = vadd.f32 %v3144, 1.0
        %v3257 = vadd.f32 %v3145, 1.0
        %v3258 = vadd.f32 %v3146, 1.0
        %v3259 = vadd.f32 %v3147, 1.0
        %v3260 = vadd.f32 %v3148, 1.0
        %v3261 = vadd.f32 %v3149, 1.0
        %v3262 = vadd.f32 %v3150, 1.0
        %v3263 = vadd.f32 %v3151, 1.0
        %v3264 = vadd.f32 %v3152, 1.0
        %v3265 = vadd.f32 %v3153, 1.0
        %v3266 = vadd.f32 %v3154, 1.0
        %v3267 = vadd.f32 %v3155, 1.0
        %v3268 = vadd.f32 %v3156, 1.0
        %v3269 = vadd.f32 %v3157, 1.0
        %v3270 = vadd.f32 %v3158, 1.0
        %v3271 = vadd.f32 %v3159, 1.0
        %v3272 = vadd.f32 %v3160, 1.0
        %v3273 = vadd.f32 %v3161, 1.0
        %v3274 = vadd.f32 %v3162, 1.0
        %v3275 = vadd.f32 %v3163, 1.0
        %v3276 = vadd.f32 %v3164, 1.0
        %v3277 = vadd.f32 %v3165, 1.0
        %v3278 = vadd.f32 %v3166, 1.0
        %v3279 = vadd.f32 %v3167, 1.0
        %v3280 = vadd.f32 %v3168, 1.0
        %v3281 = vadd.f32 %v3169, 1.0
        %v3282 = vadd.f32 %v3170, 1.0
        %v3283 = vadd.f32 %v3171, 1.0
        %v3284 = vadd.f32 %v3172, 1.0
        %v3285 = vadd.f32 %v3173, 1.0
        %v3286 = vadd.f32 %v3174, 1.0
        %v3287 = vadd.f32 %v3175, 1.0
        %v3288 = vadd.f32 %v3176, 1.0
        %v3289 = vadd.f32 %v3177, 1.0
        %v3290 = vadd.f32 %v3178, 1.0
        %v3291 = vadd.f32 %v3179, 1.0
        %v3292 = vadd.f32 %v3180, 1.0
        %v3293 = vadd.f32 %v3181, 1.0
        %v3294 = vadd.f32 %v3182, 1.0
        %v3295 = vadd.f32 %v3183, 1.0
        %v3296 = vadd.f32 %v3184, 1.0
        %v3297 = vadd.f32 %v3185, 1.0
        %v3298 = vadd.f32 %v3186, 1.0
        %v3299 = vadd.f32 %v3187, 1.0
        %v3300 = vadd.f32 %v3188, 1.0
        %v3301 = vadd.f32 %v3189, 1.0
        %v3302 = vadd.f32 %v3190, 1.0
        %v3303 = vadd.f32 %v3191, 1.0
        %v3304 = vadd.f32 %v3192, 1.0
        %v3305 = vadd.f32 %v3193, 1.0
        %v3306 = vadd.f32 %v3194, 1.0
        %v3307 = vadd.f32 %v3195, 1.0
        %v3308 = vadd.f32 %v3196, 1.0
        %v3309 = vadd.f32 %v3197, 1.0
        %v3310 = vadd.f32 %v3198, 1.0
        %v3311 = vadd.f32 %v3199, 1.0
        %v3312 = vadd.f32 %v3200, 1.0
        %v3313 = vadd.f32 %v3201, 1.0
        %v3314 = vadd.f32 %v3202, 1.0
        %v3315 = vadd.f32 %v3203, 1.0
        %v3316 = vadd.f32 %v3204, 1.0
        %v3317 = vadd.f32 %v3205, 1.0
        %v3318 = vadd.f32 %v3206, 1.0
        %v3319 = vadd.f32 %v3207, 1.0
        %v3320 = vadd.f32 %v3208, 1.0
        %v3321 = vadd.f32 %v3209, 1.0
        %v3322 = vadd.f32 %v3210, 1.0
        %v3323 = vadd.f32 %v3211, 1.0
        %v3324 = vadd.f32 %v3212, 1.0
        %v3325 = vadd.f32 %v3213, 1.0
        %v3326 = vadd.f32 %v3214, 1.0
        %v3327 = vadd.f32 %v3215, 1.0
        %v3328 = vadd.f32 %v3216, 1.0
        %v3329 = vadd.f32 %v3217, 1.0
        %v3330 = vadd.f32 %v3218, 1.0
        %v3331 = vadd.f32 %v3219, 1.0
        %v3332 = vadd.f32 %v3220, 1.0
        %v3333 = vadd.f32 %v3221, 1.0
        %v3334 = vadd.f32 %v3222, 1.0
        %v3335 = vadd.f32 %v3223, 1.0
        %v3336 = vadd.f32 %v3224, 1.0
        %v3337 = vadd.f32 %v3225, 1.0
        %v3338 = vmul.f32 %v3226, 0.5
        %v3339 = vmul.f32 %v3227, 0.5
        %v3340 = vmul.f32 %v3228, 0.5
        %v3341 = vmul.f32 %v3229, 0.5
        %v3342 = vmul.f32 %v3230, 0.5
        %v3343 = vmul.f32 %v3231, 0.5
        %v3344 = vmul.f32 %v3232, 0.5
        %v3345 = vmul.f32 %v3233, 0.5
        %v3346 = vmul.f32 %v3234, 0.5
        %v3347 = vmul.f32 %v3235, 0.5
        %v3348 = vmul.f32 %v3236, 0.5
        %v3349 = vmul.f32 %v3237, 0.5
        %v3350 = vmul.f32 %v3238, 0.5
        %v3351 = vmul.f32 %v3239, 0.5
        %v3352 = vmul.f32 %v3240, 0.5
        %v3353 = vmul.f32 %v3241, 0.5
        %v3354 = vmul.f32 %v3242, 0.5
        %v3355 = vmul.f32 %v3243, 0.5
        %v3356 = vmul.f32 %v3244, 0.5
        %v3357 = vmul.f32 %v3245, 0.5
        %v3358 = vmul.f32 %v3246, 0.5
        %v3359 = vmul.f32 %v3247, 0.5
        %v3360 = vmul.f32 %v3248, 0.5
        %v3361 = vmul.f32 %v3249, 0.5
        %v3362 = vmul.f32 %v3250, 0.5
        %v3363 = vmul.f32 %v3251, 0.5
        %v3364 = vmul.f32 %v3252, 0.5
        %v3365 = vmul.f32 %v3253, 0.5
        %v3366 = vmul.f32 %v3254, 0.5
        %v3367 = vmul.f32 %v3255, 0.5
        %v3368 = vmul.f32 %v3256, 0.5
        %v3369 = vmul.f32 %v3257, 0.5
        %v3370 = vmul.f32 %v3258, 0.5
        %v3371 = vmul.f32 %v3259, 0.5
        %v3372 = vmul.f32 %v3260, 0.5
        %v3373 = vmul.f32 %v3261, 0.5
        %v3374 = vmul.f32 %v3262, 0.5
        %v3375 = vmul.f32 %v3263, 0.5
        %v3376 = vmul.f32 %v3264, 0.5
        %v3377 = vmul.f32 %v3265, 0.5
        %v3378 = vmul.f32 %v3266, 0.5
        %v3379 = vmul.f32 %v3267, 0.5
        %v3380 = vmul.f32 %v3268, 0.5
        %v3381 = vmul.f32 %v3269, 0.5
        %v3382 = vmul.f32 %v3270, 0.5
        %v3383 = vmul.f32 %v3271, 0.5
        %v3384 = vmul.f32 %v3272, 0.5
        %v3385 = vmul.f32 %v3273, 0.5
        %v3386 = vmul.f32 %v3274, 0.5
        %v3387 = vmul.f32 %v3275, 0.5
        %v3388 = vmul.f32 %v3276, 0.5
        %v3389 = vmul.f32 %v3277, 0.5
        %v3390 = vmul.f32 %v3278, 0.5
        %v3391 = vmul.f32 %v3279, 0.5
        %v3392 = vmul.f32 %v3280, 0.5
        %v3393 = vmul.f32 %v3281, 0.5
        %v3394 = vmul.f32 %v3282, 0.5
        %v3395 = vmul.f32 %v3283, 0.5
        %v3396 = vmul.f32 %v3284, 0.5
        %v3397 = vmul.f32 %v3285, 0.5
        %v3398 = vmul.f32 %v3286, 0.5
        %v3399 = vmul.f32 %v3287, 0.5
        %v3400 = vmul.f32 %v3288, 0.5
        %v3401 = vmul.f32 %v3289, 0.5
        %v3402 = vmul.f32 %v3290, 0.5
        %v3403 = vmul.f32 %v3291, 0.5
        %v3404 = vmul.f32 %v3292, 0.5
        %v3405 = vmul.f32 %v3293, 0.5
        %v3406 = vmul.f32 %v3294, 0.5
        %v3407 = vmul.f32 %v3295, 0.5
        %v3408 = vmul.f32 %v3296, 0.5
        %v3409 = vmul.f32 %v3297, 0.5
        %v3410 = vmul.f32 %v3298, 0.5
        %v3411 = vmul.f32 %v3299, 0.5
        %v3412 = vmul.f32 %v3300, 0.5
        %v3413 = vmul.f32 %v3301, 0.5
        %v3414 = vmul.f32 %v3302, 0.5
        %v3415 = vmul.f32 %v3303, 0.5
        %v3416 = vmul.f32 %v3304, 0.5
        %v3417 = vmul.f32 %v3305, 0.5
        %v3418 = vmul.f32 %v3306, 0.5
        %v3419 = vmul.f32 %v3307, 0.5
        %v3420 = vmul.f32 %v3308, 0.5
        %v3421 = vmul.f32 %v3309, 0.5
        %v3422 = vmul.f32 %v3310, 0.5
        %v3423 = vmul.f32 %v3311, 0.5
        %v3424 = vmul.f32 %v3312, 0.5
        %v3425 = vmul.f32 %v3313, 0.5
        %v3426 = vmul.f32 %v3314, 0.5
        %v3427 = vmul.f32 %v3315, 0.5
        %v3428 = vmul.f32 %v3316, 0.5
        %v3429 = vmul.f32 %v3317, 0.5
        %v3430 = vmul.f32 %v3318, 0.5
        %v3431 = vmul.f32 %v3319, 0.5
        %v3432 = vmul.f32 %v3320, 0.5
        %v3433 = vmul.f32 %v3321, 0.5
        %v3434 = vmul.f32 %v3322, 0.5
        %v3435 = vmul.f32 %v3323, 0.5
        %v3436 = vmul.f32 %v3324, 0.5
        %v3437 = vmul.f32 %v3325, 0.5
        %v3438 = vmul.f32 %v3326, 0.5
        %v3439 = vmul.f32 %v3327, 0.5
        %v3440 = vmul.f32 %v3328, 0.5
        %v3441 = vmul.f32 %v3329, 0.5
        %v3442 = vmul.f32 %v3330, 0.5
        %v3443 = vmul.f32 %v3331, 0.5
        %v3444 = vmul.f32 %v3332, 0.5
        %v3445 = vmul.f32 %v3333, 0.5
        %v3446 = vmul.f32 %v3334, 0.5
        %v3447 = vmul.f32 %v3335, 0.5
        %v3448 = vmul.f32 %v3336, 0.5
        %v3449 = vmul.f32 %v3337, 0.5
        %3450 = vst [vmem:[%s216] sm:$0xff] %v3338
        %3451 = vst [vmem:[%s216 + $0x8] sm:$0xff] %v3339
        %3452 = vst [vmem:[%s216 + $0x10] sm:$0xff] %v3340
        %3453 = vst [vmem:[%s216 + $0x18] sm:$0xff] %v3341
        %3454 = vst [vmem:[%s216 + $0x20] sm:$0xff] %v3342
        %3455 = vst [vmem:[%s216 + $0x28] sm:$0xff] %v3343
        %3456 = vst [vmem:[%s216 + $0x30] sm:$0xff] %v3344
        %3457 = vst [vmem:[%s216 + $0x40] sm:$0xff] %v3345
        %3458 = vst [vmem:[%s216 + $0x48] sm:$0xff] %v3346
        %3459 = vst [vmem:[%s216 + $0x50] sm:$0xff] %v3347
        %3460 = vst [vmem:[%s216 + $0x58] sm:$0xff] %v3348
        %3461 = vst [vmem:[%s216 + $0x60] sm:$0xff] %v3349
        %3462 = vst [vmem:[%s216 + $0x68] sm:$0xff] %v3350
        %3463 = vst [vmem:[%s216 + $0x70] sm:$0xff] %v3351
        %3464 = vst [vmem:[%s216 + $0x80] sm:$0xff] %v3352
        %3465 = vst [vmem:[%s216 + $0x88] sm:$0xff] %v3353
        %3466 = vst [vmem:[%s216 + $0x90] sm:$0xff] %v3354
        %3467 = vst [vmem:[%s216 + $0x98] sm:$0xff] %v3355
        %3468 = vst [vmem:[%s216 + $0xa0] sm:$0xff] %v3356
        %3469 = vst [vmem:[%s216 + $0xa8] sm:$0xff] %v3357
        %3470 = vst [vmem:[%s216 + $0xb0] sm:$0xff] %v3358
        %3471 = vst [vmem:[%s216 + $0xc0] sm:$0xff] %v3359
        %3472 = vst [vmem:[%s216 + $0xc8] sm:$0xff] %v3360
        %3473 = vst [vmem:[%s216 + $0xd0] sm:$0xff] %v3361
        %3474 = vst [vmem:[%s216 + $0xd8] sm:$0xff] %v3362
        %3475 = vst [vmem:[%s216 + $0xe0] sm:$0xff] %v3363
        %3476 = vst [vmem:[%s216 + $0xe8] sm:$0xff] %v3364
        %3477 = vst [vmem:[%s216 + $0xf0] sm:$0xff] %v3365
        %3478 = vst [vmem:[%s216 + $0x100] sm:$0xff] %v3366
        %3479 = vst [vmem:[%s216 + $0x108] sm:$0xff] %v3367
        %3480 = vst [vmem:[%s216 + $0x110] sm:$0xff] %v3368
        %3481 = vst [vmem:[%s216 + $0x118] sm:$0xff] %v3369
        %3482 = vst [vmem:[%s216 + $0x120] sm:$0xff] %v3370
        %3483 = vst [vmem:[%s216 + $0x128] sm:$0xff] %v3371
        %3484 = vst [vmem:[%s216 + $0x130] sm:$0xff] %v3372
        %3485 = vst [vmem:[%s216 + $0x140] sm:$0xff] %v3373
        %3486 = vst [vmem:[%s216 + $0x148] sm:$0xff] %v3374
        %3487 = vst [vmem:[%s216 + $0x150] sm:$0xff] %v3375
        %3488 = vst [vmem:[%s216 + $0x158] sm:$0xff] %v3376
        %3489 = vst [vmem:[%s216 + $0x160] sm:$0xff] %v3377
        %3490 = vst [vmem:[%s216 + $0x168] sm:$0xff] %v3378
        %3491 = vst [vmem:[%s216 + $0x170] sm:$0xff] %v3379
        %3492 = vst [vmem:[%s216 + $0x180] sm:$0xff] %v3380
        %3493 = vst [vmem:[%s216 + $0x188] sm:$0xff] %v3381
        %3494 = vst [vmem:[%s216 + $0x190] sm:$0xff] %v3382
        %3495 = vst [vmem:[%s216 + $0x198] sm:$0xff] %v3383
        %3496 = vst [vmem:[%s216 + $0x1a0] sm:$0xff] %v3384
        %3497 = vst [vmem:[%s216 + $0x1a8] sm:$0xff] %v3385
        %3498 = vst [vmem:[%s216 + $0x1b0] sm:$0xff] %v3386
        %3499 = vst [vmem:[%s216 + $0x1c0] sm:$0xff] %v3387
        %3500 = vst [vmem:[%s216 + $0x1c8] sm:$0xff] %v3388
        %3501 = vst [vmem:[%s216 + $0x1d0] sm:$0xff] %v3389
        %3502 = vst [vmem:[%s216 + $0x1d8] sm:$0xff] %v3390
        %3503 = vst [vmem:[%s216 + $0x1e0] sm:$0xff] %v3391
        %3504 = vst [vmem:[%s216 + $0x1e8] sm:$0xff] %v3392
        %3505 = vst [vmem:[%s216 + $0x1f0] sm:$0xff] %v3393
        %3506 = vst [vmem:[%s216 + $0x200] sm:$0xff] %v3394
        %3507 = vst [vmem:[%s216 + $0x208] sm:$0xff] %v3395
        %3508 = vst [vmem:[%s216 + $0x210] sm:$0xff] %v3396
        %3509 = vst [vmem:[%s216 + $0x218] sm:$0xff] %v3397
        %3510 = vst [vmem:[%s216 + $0x220] sm:$0xff] %v3398
        %3511 = vst [vmem:[%s216 + $0x228] sm:$0xff] %v3399
        %3512 = vst [vmem:[%s216 + $0x230] sm:$0xff] %v3400
        %3513 = vst [vmem:[%s216 + $0x240] sm:$0xff] %v3401
        %3514 = vst [vmem:[%s216 + $0x248] sm:$0xff] %v3402
        %3515 = vst [vmem:[%s216 + $0x250] sm:$0xff] %v3403
        %3516 = vst [vmem:[%s216 + $0x258] sm:$0xff] %v3404
        %3517 = vst [vmem:[%s216 + $0x260] sm:$0xff] %v3405
        %3518 = vst [vmem:[%s216 + $0x268] sm:$0xff] %v3406
        %3519 = vst [vmem:[%s216 + $0x270] sm:$0xff] %v3407
        %3520 = vst [vmem:[%s216 + $0x280] sm:$0xff] %v3408
        %3521 = vst [vmem:[%s216 + $0x288] sm:$0xff] %v3409
        %3522 = vst [vmem:[%s216 + $0x290] sm:$0xff] %v3410
        %3523 = vst [vmem:[%s216 + $0x298] sm:$0xff] %v3411
        %3524 = vst [vmem:[%s216 + $0x2a0] sm:$0xff] %v3412
        %3525 = vst [vmem:[%s216 + $0x2a8] sm:$0xff] %v3413
        %3526 = vst [vmem:[%s216 + $0x2b0] sm:$0xff] %v3414
        %3527 = vst [vmem:[%s216 + $0x2c0] sm:$0xff] %v3415
        %3528 = vst [vmem:[%s216 + $0x2c8] sm:$0xff] %v3416
        %3529 = vst [vmem:[%s216 + $0x2d0] sm:$0xff] %v3417
        %3530 = vst [vmem:[%s216 + $0x2d8] sm:$0xff] %v3418
        %3531 = vst [vmem:[%s216 + $0x2e0] sm:$0xff] %v3419
        %3532 = vst [vmem:[%s216 + $0x2e8] sm:$0xff] %v3420
        %3533 = vst [vmem:[%s216 + $0x2f0] sm:$0xff] %v3421
        %3534 = vst [vmem:[%s216 + $0x300] sm:$0xff] %v3422
        %3535 = vst [vmem:[%s216 + $0x308] sm:$0xff] %v3423
        %3536 = vst [vmem:[%s216 + $0x310] sm:$0xff] %v3424
        %3537 = vst [vmem:[%s216 + $0x318] sm:$0xff] %v3425
        %3538 = vst [vmem:[%s216 + $0x320] sm:$0xff] %v3426
        %3539 = vst [vmem:[%s216 + $0x328] sm:$0xff] %v3427
        %3540 = vst [vmem:[%s216 + $0x330] sm:$0xff] %v3428
        %3541 = vst [vmem:[%s216 + $0x340] sm:$0xff] %v3429
        %3542 = vst [vmem:[%s216 + $0x348] sm:$0xff] %v3430
        %3543 = vst [vmem:[%s216 + $0x350] sm:$0xff] %v3431
        %3544 = vst [vmem:[%s216 + $0x358] sm:$0xff] %v3432
        %3545 = vst [vmem:[%s216 + $0x360] sm:$0xff] %v3433
        %3546 = vst [vmem:[%s216 + $0x368] sm:$0xff] %v3434
        %3547 = vst [vmem:[%s216 + $0x370] sm:$0xff] %v3435
        %3548 = vst [vmem:[%s216 + $0x380] sm:$0xff] %v3436
        %3549 = vst [vmem:[%s216 + $0x388] sm:$0xff] %v3437
        %3550 = vst [vmem:[%s216 + $0x390] sm:$0xff] %v3438
        %3551 = vst [vmem:[%s216 + $0x398] sm:$0xff] %v3439
        %3552 = vst [vmem:[%s216 + $0x3a0] sm:$0xff] %v3440
        %3553 = vst [vmem:[%s216 + $0x3a8] sm:$0xff] %v3441
        %3554 = vst [vmem:[%s216 + $0x3b0] sm:$0xff] %v3442
        %3555 = vst [vmem:[%s216 + $0x3c0] sm:$0xff] %v3443
        %3556 = vst [vmem:[%s216 + $0x3c8] sm:$0xff] %v3444
        %3557 = vst [vmem:[%s216 + $0x3d0] sm:$0xff] %v3445
        %3558 = vst [vmem:[%s216 + $0x3d8] sm:$0xff] %v3446
        %3559 = vst [vmem:[%s216 + $0x3e0] sm:$0xff] %v3447
        %3560 = vst [vmem:[%s216 + $0x3e8] sm:$0xff] %v3448
        %3561 = vst [vmem:[%s216 + $0x3f0] sm:$0xff] %v3449
        %vm3562 = vcmask 130048
        %3563 = vst.msk [vmem:[%s216 + $0x38] sm:$0xff] %vm3562, %v1595
        %3564 = vst.msk [vmem:[%s216 + $0x78] sm:$0xff] %vm3562, %v1600
        %3565 = vst.msk [vmem:[%s216 + $0xb8] sm:$0xff] %vm3562, %v1605
        %3566 = vst.msk [vmem:[%s216 + $0xf8] sm:$0xff] %vm3562, %v1610
        %3567 = vst.msk [vmem:[%s216 + $0x138] sm:$0xff] %vm3562, %v1615
        %3568 = vst.msk [vmem:[%s216 + $0x178] sm:$0xff] %vm3562, %v1620
        %3569 = vst.msk [vmem:[%s216 + $0x1b8] sm:$0xff] %vm3562, %v1625
        %3570 = vst.msk [vmem:[%s216 + $0x1f8] sm:$0xff] %vm3562, %v1630
        %3571 = vst.msk [vmem:[%s216 + $0x238] sm:$0xff] %vm3562, %v1635
        %3572 = vst.msk [vmem:[%s216 + $0x278] sm:$0xff] %vm3562, %v1640
        %3573 = vst.msk [vmem:[%s216 + $0x2b8] sm:$0xff] %vm3562, %v1645
        %3574 = vst.msk [vmem:[%s216 + $0x2f8] sm:$0xff] %vm3562, %v1650
        %3575 = vst.msk [vmem:[%s216 + $0x338] sm:$0xff] %vm3562, %v1655
        %3576 = vst.msk [vmem:[%s216 + $0x378] sm:$0xff] %vm3562, %v1660
        %3577 = vst.msk [vmem:[%s216 + $0x3b8] sm:$0xff] %vm3562, %v1665
        %3578 = vst.msk [vmem:[%s216 + $0x3f8] sm:$0xff] %vm3562, %v1670
        %s3579 = sand.u32 %s118, 1
        %s3580 = scalar_lea.sflag [#allocation4], %s3579
        %s3581 = sand.u32 %s118, 1
        %s3582 = smul.addr %s3581, 1024
        %s3583 = scalar_lea.vmem [#allocation5], %s3582
        // Predicated region
        $region41: #{tpu_custom_call.1} parent=35 // pred_check
          %p3584 = pneg %p128
        $region42: #{tpu_custom_call.1} parent=35 // pred_check_branch
          %3586 = sbr.rel (%p3584) target = $region44
        $region43: #{tpu_custom_call.1} parent=35 // pred_region
          %s3587 = smul.u32 16, %s21
          %s3589 = ssub.s32 16384, 16384
          %3590 = vsyncadd %s3580, %s3589
          %s3591 = smul.addr %s3587, 8
          %s3592 = smul.addr %s3591, 128
          %s3593 = scalar_lea.hbm %s4, %s3592
          %s3594 = sshll.u32 %s3583, 4
          %s3595 = int_to_ptr.vmem [resolvable:$true] %s3594
          %3600 = dma.vmem_to_hbm [thread:$0]  %s3595, 16384, %s3593, %s3580, 1024, 1024, 64
        $region44: #{tpu_custom_call.1} parent=35 // pred_fallthru
          _
      $region36: #{tpu_custom_call.1} parent=5 // pred_fallthru
        _
      %p3601 = scmp.le.s32.totalorder 2, %s16
      // Predicated region
      $region45: #{tpu_custom_call.1} parent=5 // pred_check
        %p3602 = pneg %p3601
      $region46: #{tpu_custom_call.1} parent=5 // pred_check_branch
        %3604 = sbr.rel (%p3602) target = $region48
      $region47: #{tpu_custom_call.1} parent=5 // pred_region
        %s3605 = ssub.s32 %s16, 2
        // Predicated region
        $region49: #{tpu_custom_call.1} parent=47 // pred_check
          %p3606 = pneg %p134
        $region50: #{tpu_custom_call.1} parent=47 // pred_check_branch
          %3608 = sbr.rel (%p3606) target = $region52
        $region51: #{tpu_custom_call.1} parent=47 // pred_region
          %s3609 = sand.u32 %s119, 1
          %s3610 = scalar_lea.sflag [#allocation4], %s3609
          %s3611 = sand.u32 %s119, 1
          %s3612 = smul.addr %s3611, 1024
          %s3613 = scalar_lea.vmem [#allocation5], %s3612
          %3614 = dma.done %s3610, 16384
        $region52: #{tpu_custom_call.1} parent=47 // pred_fallthru
          _
      $region48: #{tpu_custom_call.1} parent=5 // pred_fallthru
        _
    $region6: #{tpu_custom_call.1} parent=1 // loop_footer
      %s20 = sadd.s32 1, %s16
    $region7: #{tpu_custom_call.1} parent=1 // loop_footer_branch
      %15 = sbr.rel target = $region3
    $region8: #{tpu_custom_call.1} parent=1 // loop_exit
      _
    %3615 = vsyncpa [#allocation3], 1
    %s3616 = scalar_lea.sflag [#allocation3], 1
    %3617 = vsyncpa %s3616, 1
    %3618 = vsyncpa [#allocation4], 1
    %s3619 = scalar_lea.sflag [#allocation4], 1
    %3620 = vsyncpa %s3619, 1

</llo_original>
